<compile_context>
chip_gen: v7x
topology: tpu7x:2x2x1
jax: 0.10.0
libtpu: 0.0.40
codegen_flags: <defaults>
</compile_context>

<pallas_src>
import jax
import jax.numpy as jnp
from jax import lax
from jax.experimental import pallas as pl
from jax.experimental.pallas import tpu as pltpu

# ----------------------------- config (small, consistent with the module) -----------------
BATCH = 2
IN_CH = 3
IMG = 16
PATCH = 8
GRID_HW = IMG // PATCH               # 2
NUM_PATCHES = GRID_HW * GRID_HW      # 4
NUM_TOKENS = NUM_PATCHES + 1         # 5 (CLS + patches)
TOKENS_PAD = 8                       # tokens padded to sublane multiple (masked in attention)
WIDTH = 32                           # backbone.width
HEADS = 2
HEAD_DIM = WIDTH // HEADS
LAYERS = 2
MLP_DIM = 4 * WIDTH
OUTPUT_DIM = 16                      # backbone.output_dim (lp_enable_vit_proj=True)
NUM_CLASSES = 10                     # args.lp_num_classes
CLASSES_PAD = 128                    # lane-dense logits store; sliced to NUM_CLASSES in wrapper
PATCH_DIM = IN_CH * PATCH * PATCH    # 192

LN_EPS = 1e-5
BN_EPS = 1e-6
ATTN_SCALE = HEAD_DIM ** -0.5

BATCH_BLOCK = BATCH                  # images per grid step ("parallel" grid -> both TCs on v7x)

# ----------------------------- packed-parameter blob layout --------------------------------
# All offsets are static, 8-aligned on sublanes, lane-0 starts.
# layer_w blob: [LAYERS, LW_ROWS, 128]
INW_R0 = 0                           # rows   0: 32, cols 0:96   attn in_proj weight  (D, 3D)
OUTW_R0 = 32                         # rows  32: 64, cols 0:32   attn out_proj weight (D, D)
FC1_R0 = 64                          # rows  64: 96, cols 0:128  mlp fc1 (D, 4D)
FC2_R0 = 96                          # rows  96:224, cols 0:32   mlp fc2 (4D, D)
LW_ROWS = FC2_R0 + MLP_DIM           # 224
LW_COLS = 128
# layer_vec blob: [LAYERS, 8, 128] — one vector per sublane row
LN1G_R, LN1B_R, LN2G_R, LN2B_R, INB_R, OUTB_R, FC1B_R, FC2B_R = range(8)
LV_ROWS = 8
# misc blob: [MISC_ROWS, 128]
CONV_R0 = 0                          # rows   0:192, cols 0:32   conv1 patch embed (C*p*p, D)
TOKB_R0 = CONV_R0 + PATCH_DIM        # rows 192:200, cols 0:32   token bias (cls+pos0, pos1.., 0)
PROJ_R0 = TOKB_R0 + TOKENS_PAD       # rows 200:232, cols 0:16   proj (D, OUTPUT_DIM)
LPW_R0 = PROJ_R0 + WIDTH             # rows 232:248, cols 0:128  lp Linear weight (padded classes)
VEC_R0 = LPW_R0 + OUTPUT_DIM         # rows 248:256, one vector per row
LNPRE_G_R, LNPRE_B_R = VEC_R0 + 0, VEC_R0 + 1
LNPOST_G_R, LNPOST_B_R = VEC_R0 + 2, VEC_R0 + 3
BN_MEAN_R, BN_VAR_R = VEC_R0 + 4, VEC_R0 + 5
LPB_R = VEC_R0 + 6
MISC_ROWS = VEC_R0 + 8               # 256


# ----------------------------- fused Pallas kernel -----------------------------------------
def _ln(x, g, b, eps=LN_EPS):
    mu = jnp.mean(x, axis=-1, keepdims=True)
    var = jnp.mean(jnp.square(x - mu), axis=-1, keepdims=True)
    return (x - mu) * lax.rsqrt(var + eps) * g + b


def _vitlens_fused_kernel(patches_ref, lw_ref, lv_ref, misc_ref, o_ref):
    BB, TP, D, HD = BATCH_BLOCK, TOKENS_PAD, WIDTH, HEAD_DIM
    M = BB * TP

    # --- patch embed (Conv2d kernel==stride==patch, bias=False, as matmul) + token bias ---
    conv_w = misc_ref[CONV_R0:CONV_R0 + PATCH_DIM, 0:D]                     # (192, 32)
    x = jnp.dot(patches_ref[...], conv_w, preferred_element_type=jnp.float32)  # (M, D)
    # CLS slot / pad rows are zero rows of the patch matrix -> contribute 0 above.
    tok_bias = misc_ref[TOKB_R0:TOKB_R0 + TP, 0:D]                          # (TP, D)
    x = (x.reshape(BB, TP, D) + tok_bias[None]).reshape(M, D)
    x = _ln(x, misc_ref[LNPRE_G_R:LNPRE_G_R + 1, 0:D],
            misc_ref[LNPRE_B_R:LNPRE_B_R + 1, 0:D])

    # additive key-padding mask: 0 for valid keys (< NUM_TOKENS), -1e30 for padded keys
    key_bias = jnp.where(
        lax.broadcasted_iota(jnp.int32, (1, 1, TP), 2) < NUM_TOKENS, 0.0, -1e30
    ).astype(jnp.float32)
    # NOTE: padded query rows (5..7) flow through the blocks but only the CLS row is pooled.

    # L=2: keep statically unrolled.  TODO(synk): switch to lax.fori_loop + dynamic ref[l]
    # indexing if LAYERS grows beyond a handful (vreg pressure / code size).
    for l in range(LAYERS):
        # ---- attention sub-block: x = x + out_proj(attn(ln_1(x))) ----
        h = _ln(x, lv_ref[l, LN1G_R:LN1G_R + 1, 0:D], lv_ref[l, LN1B_R:LN1B_R + 1, 0:D])
        qkv = jnp.dot(h, lw_ref[l, INW_R0:INW_R0 + D, 0:3 * D],
                      preferred_element_type=jnp.float32) + lv_ref[l, INB_R:INB_R + 1, 0:3 * D]
        attn = lv_ref[l, OUTB_R:OUTB_R + 1, 0:D]            # start from out_proj bias (1, D)
        for hd in range(HEADS):
            q = qkv[:, 0 * D + hd * HD: 0 * D + (hd + 1) * HD].reshape(BB, TP, HD)
            k = qkv[:, 1 * D + hd * HD: 1 * D + (hd + 1) * HD].reshape(BB, TP, HD)
            v = qkv[:, 2 * D + hd * HD: 2 * D + (hd + 1) * HD].reshape(BB, TP, HD)
            s = jnp.einsum("bqd,bkd->bqk", q, k,
                           preferred_element_type=jnp.float32) * ATTN_SCALE + key_bias
            s = s - jnp.max(s, axis=-1, keepdims=True)
            p = jnp.exp(s)
            p = p * pl.reciprocal(jnp.sum(p, axis=-1, keepdims=True), approx=True)
            oh = jnp.einsum("bqk,bkd->bqd", p, v,
                            preferred_element_type=jnp.float32).reshape(M, HD)
            # head-split out_proj (no lane concat): sum_h oh @ W_out[h*HD:(h+1)*HD, :]
            attn = attn + jnp.dot(
                oh, lw_ref[l, OUTW_R0 + hd * HD: OUTW_R0 + (hd + 1) * HD, 0:D],
                preferred_element_type=jnp.float32)
        x = x + attn

        # ---- MLP sub-block (QuickGELU): x = x + fc2(quick_gelu(fc1(ln_2(x)))) ----
        h = _ln(x, lv_ref[l, LN2G_R:LN2G_R + 1, 0:D], lv_ref[l, LN2B_R:LN2B_R + 1, 0:D])
        h = jnp.dot(h, lw_ref[l, FC1_R0:FC1_R0 + D, 0:MLP_DIM],
                    preferred_element_type=jnp.float32) + lv_ref[l, FC1B_R:FC1B_R + 1, 0:MLP_DIM]
        h = h * jax.nn.sigmoid(1.702 * h)
        h = jnp.dot(h, lw_ref[l, FC2_R0:FC2_R0 + MLP_DIM, 0:D],
                    preferred_element_type=jnp.float32) + lv_ref[l, FC2B_R:FC2B_R + 1, 0:D]
        x = x + h

    # ---- epilogue: CLS pool -> ln_post -> proj -> BN(eval) -> lp Linear (lane-dense) ----
    pooled = x.reshape(BB, TP, D)[:, 0, :]                                  # (BB, D)
    pooled = _ln(pooled, misc_ref[LNPOST_G_R:LNPOST_G_R + 1, 0:D],
                 misc_ref[LNPOST_B_R:LNPOST_B_R + 1, 0:D])
    feat = jnp.dot(pooled, misc_ref[PROJ_R0:PROJ_R0 + D, 0:OUTPUT_DIM],
                   preferred_element_type=jnp.float32)                      # (BB, OUTPUT_DIM)
    # Dropout(eval) is identity; BatchNorm1d(affine=False, eps=1e-6) with running stats.
    xn = (feat - misc_ref[BN_MEAN_R:BN_MEAN_R + 1, 0:OUTPUT_DIM]) * lax.rsqrt(
        misc_ref[BN_VAR_R:BN_VAR_R + 1, 0:OUTPUT_DIM] + BN_EPS)
    o_ref[...] = jnp.dot(xn, misc_ref[LPW_R0:LPW_R0 + OUTPUT_DIM, 0:CLASSES_PAD],
                         preferred_element_type=jnp.float32) + \
                 misc_ref[LPB_R:LPB_R + 1, 0:CLASSES_PAD]


# ----------------------------- wrapper ------------------------------------------------------
def vitlens_lp_forward(x, packed):
    B, C, H, W = x.shape
    p = PATCH
    gh, gw = H // p, W // p
    assert gh * gw == NUM_PATCHES and C * p * p == PATCH_DIM
    assert B % BATCH_BLOCK == 0
    # NCHW -> [B, NP, C*p*p] patch matrix, padded to TOKENS_PAD rows per image:
    # row 0 = CLS slot (zeros), rows 1..NP = patches, rows NP+1.. = pad (zeros).
    # TODO(synk): this relayout stays in the wrapper (XLA); could be fused into the kernel
    # operand via CompilerParams(allow_input_fusion=...) if the standalone transpose matters.
    patches = (x.reshape(B, C, gh, p, gw, p)
                 .transpose(0, 2, 4, 1, 3, 5)
                 .reshape(B, NUM_PATCHES, PATCH_DIM))
    patches = jnp.pad(patches, ((0, 0), (1, TOKENS_PAD - 1 - NUM_PATCHES), (0, 0)))
    patches = patches.reshape(B * TOKENS_PAD, PATCH_DIM)

    out = pl.pallas_call(
        _vitlens_fused_kernel,
        out_shape=jax.ShapeDtypeStruct((B, CLASSES_PAD), jnp.float32),
        grid=(B // BATCH_BLOCK,),
        in_specs=[
            pl.BlockSpec((BATCH_BLOCK * TOKENS_PAD, PATCH_DIM), lambda i: (i, 0)),
            pl.BlockSpec((LAYERS, LW_ROWS, LW_COLS), lambda i: (0, 0, 0)),
            pl.BlockSpec((LAYERS, LV_ROWS, 128), lambda i: (0, 0, 0)),
            pl.BlockSpec((MISC_ROWS, 128), lambda i: (0, 0)),
        ],
        out_specs=pl.BlockSpec((BATCH_BLOCK, CLASSES_PAD), lambda i: (i, 0)),
        compiler_params=pltpu.CompilerParams(dimension_semantics=("parallel",)),
    )(patches, packed["layer_w"], packed["layer_vec"], packed["misc"])
    return out[:, :NUM_CLASSES]


# ----------------------------- deterministic parameter init -------------------------------
def init_params(key):
    def nrm(k, shape, scale=0.02):
        return (scale * jax.random.normal(k, shape)).astype(jnp.float32)

    keys = iter(jax.random.split(key, 16))
    D, L = WIDTH, LAYERS
    return {
        "conv_w": nrm(next(keys), (PATCH_DIM, D)),
        "class_emb": nrm(next(keys), (D,), D ** -0.5),
        "pos_emb": nrm(next(keys), (NUM_TOKENS, D), D ** -0.5),
        "ln_pre_g": jnp.ones((D,), jnp.float32), "ln_pre_b": jnp.zeros((D,), jnp.float32),
        "ln1_g": jnp.ones((L, D), jnp.float32), "ln1_b": jnp.zeros((L, D), jnp.float32),
        "in_w": nrm(next(keys), (L, D, 3 * D)), "in_b": jnp.zeros((L, 3 * D), jnp.float32),
        "out_w": nrm(next(keys), (L, D, D)), "out_b": jnp.zeros((L, D), jnp.float32),
        "ln2_g": jnp.ones((L, D), jnp.float32), "ln2_b": jnp.zeros((L, D), jnp.float32),
        "fc1_w": nrm(next(keys), (L, D, MLP_DIM)), "fc1_b": jnp.zeros((L, MLP_DIM), jnp.float32),
        "fc2_w": nrm(next(keys), (L, MLP_DIM, D)), "fc2_b": jnp.zeros((L, D), jnp.float32),
        "ln_post_g": jnp.ones((D,), jnp.float32), "ln_post_b": jnp.zeros((D,), jnp.float32),
        "proj": nrm(next(keys), (D, OUTPUT_DIM), D ** -0.5),
        "bn_mean": nrm(next(keys), (OUTPUT_DIM,), 0.1),
        "bn_var": (1.0 + 0.1 * jax.nn.sigmoid(
            jax.random.normal(next(keys), (OUTPUT_DIM,)))).astype(jnp.float32),
        "lp_w": nrm(next(keys), (OUTPUT_DIM, NUM_CLASSES)),
        "lp_b": jnp.zeros((NUM_CLASSES,), jnp.float32),
    }


def pack_params(p):
    """Pack the logical parameter arrays into 3 contiguous, (8,128)-aligned blobs (done once).

    Keeping f32 storage (safe on v5e); on v6e/v7x these blobs could be stored bf16 with f32
    matmul accumulation to halve DMA bytes if the model were scaled up.
    """
    f32 = jnp.float32
    lw = jnp.zeros((LAYERS, LW_ROWS, LW_COLS), f32)
    lw = lw.at[:, INW_R0:INW_R0 + WIDTH, 0:3 * WIDTH].set(p["in_w"])
    lw = lw.at[:, OUTW_R0:OUTW_R0 + WIDTH, 0:WIDTH].set(p["out_w"])
    lw = lw.at[:, FC1_R0:FC1_R0 + WIDTH, 0:MLP_DIM].set(p["fc1_w"])
    lw = lw.at[:, FC2_R0:FC2_R0 + MLP_DIM, 0:WIDTH].set(p["fc2_w"])

    lv = jnp.zeros((LAYERS, LV_ROWS, 128), f32)
    lv = lv.at[:, LN1G_R, 0:WIDTH].set(p["ln1_g"])
    lv = lv.at[:, LN1B_R, 0:WIDTH].set(p["ln1_b"])
    lv = lv.at[:, LN2G_R, 0:WIDTH].set(p["ln2_g"])
    lv = lv.at[:, LN2B_R, 0:WIDTH].set(p["ln2_b"])
    lv = lv.at[:, INB_R, 0:3 * WIDTH].set(p["in_b"])
    lv = lv.at[:, OUTB_R, 0:WIDTH].set(p["out_b"])
    lv = lv.at[:, FC1B_R, 0:MLP_DIM].set(p["fc1_b"])
    lv = lv.at[:, FC2B_R, 0:WIDTH].set(p["fc2_b"])

    # token bias: row 0 = class_emb + pos_emb[0]; rows 1..NUM_TOKENS-1 = pos_emb[1:]; rest 0
    tok_bias = jnp.zeros((TOKENS_PAD, WIDTH), f32)
    tok_bias = tok_bias.at[0].set(p["class_emb"] + p["pos_emb"][0])
    tok_bias = tok_bias.at[1:NUM_TOKENS].set(p["pos_emb"][1:])

    misc = jnp.zeros((MISC_ROWS, 128), f32)
    misc = misc.at[CONV_R0:CONV_R0 + PATCH_DIM, 0:WIDTH].set(p["conv_w"])
    misc = misc.at[TOKB_R0:TOKB_R0 + TOKENS_PAD, 0:WIDTH].set(tok_bias)
    misc = misc.at[PROJ_R0:PROJ_R0 + WIDTH, 0:OUTPUT_DIM].set(p["proj"])
    misc = misc.at[LPW_R0:LPW_R0 + OUTPUT_DIM, 0:NUM_CLASSES].set(p["lp_w"])
    misc = misc.at[LNPRE_G_R, 0:WIDTH].set(p["ln_pre_g"])
    misc = misc.at[LNPRE_B_R, 0:WIDTH].set(p["ln_pre_b"])
    misc = misc.at[LNPOST_G_R, 0:WIDTH].set(p["ln_post_g"])
    misc = misc.at[LNPOST_B_R, 0:WIDTH].set(p["ln_post_b"])
    misc = misc.at[BN_MEAN_R, 0:OUTPUT_DIM].set(p["bn_mean"])
    misc = misc.at[BN_VAR_R, 0:OUTPUT_DIM].set(p["bn_var"])
    misc = misc.at[LPB_R, 0:NUM_CLASSES].set(p["lp_b"])
    return {"layer_w": lw, "layer_vec": lv, "misc": misc}


# ----------------------------- main --------------------------------------------------------
if __name__ == "__main__":
    key = jax.random.PRNGKey(0)
    k_x, k_p = jax.random.split(key)
    x = jax.random.normal(k_x, (BATCH, IN_CH, IMG, IMG), dtype=jnp.float32)  # NCHW like PyTorch
    packed = pack_params(init_params(k_p))

    fwd = jax.jit(vitlens_lp_forward)
    logits = jax.block_until_ready(fwd(x, packed))

    assert logits.shape == (BATCH, NUM_CLASSES), logits.shape
    assert logits.dtype == jnp.float32
    assert bool(jnp.all(jnp.isfinite(logits)))
    print("KERNEL_OK")
</pallas_src>

<mosaic_0001>
module attributes {stable_mosaic.version = 11 : i64} {
  func.func @_vitlens_fused_kernel(%arg0: i32, %arg1: memref<16x192xf32, #tpu.memory_space<vmem>>, %arg2: memref<2x224x128xf32, #tpu.memory_space<vmem>>, %arg3: memref<2x8x128xf32, #tpu.memory_space<vmem>>, %arg4: memref<256x128xf32, #tpu.memory_space<vmem>>, %arg5: memref<2x128xf32, #tpu.memory_space<vmem>>) attributes {dimension_semantics = [#tpu.dimension_semantics<parallel>], iteration_bounds = array<i64: 1>, scalar_prefetch = 0 : i64, scratch_operands = 0 : i64, tpu.core_type = #tpu.core_type<tc>, window_params = [{transform_indices = @transform_0, window_bounds = array<i64: 16, 192>}, {pipeline_mode = #tpu.pipeline_mode<synchronous>, transform_indices = @transform_1, window_bounds = array<i64: 2, 224, 128>}, {pipeline_mode = #tpu.pipeline_mode<synchronous>, transform_indices = @transform_2, window_bounds = array<i64: 2, 8, 128>}, {pipeline_mode = #tpu.pipeline_mode<synchronous>, transform_indices = @transform_3, window_bounds = array<i64: 256, 128>}, {transform_indices = @transform_4, window_bounds = array<i64: 2, 128>}]} {
    %c0 = arith.constant 0 : index
    %c0_0 = arith.constant 0 : index
    %0 = vector.load %arg4[%c0, %c0_0] : memref<256x128xf32, #tpu.memory_space<vmem>>, vector<192x32xf32>
    %c0_1 = arith.constant 0 : index
    %c0_2 = arith.constant 0 : index
    %1 = vector.load %arg1[%c0_1, %c0_2] : memref<16x192xf32, #tpu.memory_space<vmem>>, vector<16x192xf32>
    %cst = arith.constant dense<0.000000e+00> : vector<16x32xf32>
    %2 = tpu.matmul %1, %0, %cst {dimension_numbers = #tpu.dot_dimension_numbers<[1], [0], [0], [1], [0, 0, 1, 1], [], []>} : vector<16x192xf32>, vector<192x32xf32>, vector<16x32xf32> -> vector<16x32xf32>
    %c192 = arith.constant 192 : index
    %c0_3 = arith.constant 0 : index
    %3 = vector.load %arg4[%c192, %c0_3] : memref<256x128xf32, #tpu.memory_space<vmem>>, vector<8x32xf32>
    %4 = vector.shape_cast %2 : vector<16x32xf32> to vector<2x8x32xf32>
    %5 = vector.shape_cast %3 : vector<8x32xf32> to vector<1x8x32xf32>
    %6 = vector.broadcast %5 : vector<1x8x32xf32> to vector<2x8x32xf32>
    %7 = arith.addf %4, %6 : vector<2x8x32xf32>
    %8 = vector.shape_cast %7 : vector<2x8x32xf32> to vector<16x32xf32>
    %c248 = arith.constant 248 : index
    %c0_4 = arith.constant 0 : index
    %9 = vector.load %arg4[%c248, %c0_4] : memref<256x128xf32, #tpu.memory_space<vmem>>, vector<1x32xf32>
    %c249 = arith.constant 249 : index
    %c0_5 = arith.constant 0 : index
    %10 = vector.load %arg4[%c249, %c0_5] : memref<256x128xf32, #tpu.memory_space<vmem>>, vector<1x32xf32>
    %cst_6 = arith.constant dense<0.000000e+00> : vector<16xf32>
    %11 = vector.multi_reduction <add>, %8, %cst_6 [1] : vector<16x32xf32> to vector<16xf32>
    %12 = vector.shape_cast %11 : vector<16xf32> to vector<16x1xf32>
    %cst_7 = arith.constant 3.200000e+01 : f32
    %13 = vector.broadcast %cst_7 : f32 to vector<16x1xf32>
    %14 = arith.divf %12, %13 : vector<16x1xf32>
    %15 = vector.broadcast %14 : vector<16x1xf32> to vector<16x32xf32>
    %16 = arith.subf %8, %15 : vector<16x32xf32>
    %17 = arith.mulf %16, %16 : vector<16x32xf32>
    %cst_8 = arith.constant dense<0.000000e+00> : vector<16xf32>
    %18 = vector.multi_reduction <add>, %17, %cst_8 [1] : vector<16x32xf32> to vector<16xf32>
    %19 = vector.shape_cast %18 : vector<16xf32> to vector<16x1xf32>
    %cst_9 = arith.constant 3.200000e+01 : f32
    %20 = vector.broadcast %cst_9 : f32 to vector<16x1xf32>
    %21 = arith.divf %19, %20 : vector<16x1xf32>
    %22 = vector.broadcast %14 : vector<16x1xf32> to vector<16x32xf32>
    %23 = arith.subf %8, %22 : vector<16x32xf32>
    %cst_10 = arith.constant 9.99999974E-6 : f32
    %24 = vector.broadcast %cst_10 : f32 to vector<16x1xf32>
    %25 = arith.addf %21, %24 : vector<16x1xf32>
    %26 = math.rsqrt %25 : vector<16x1xf32>
    %27 = vector.broadcast %26 : vector<16x1xf32> to vector<16x32xf32>
    %28 = arith.mulf %23, %27 : vector<16x32xf32>
    %29 = vector.broadcast %9 : vector<1x32xf32> to vector<16x32xf32>
    %30 = arith.mulf %28, %29 : vector<16x32xf32>
    %31 = vector.broadcast %10 : vector<1x32xf32> to vector<16x32xf32>
    %32 = arith.addf %30, %31 : vector<16x32xf32>
    %33 = tpu.iota {dimensions = array<i32: 2>} : vector<1x1x8xi32>
    %c5_i32 = arith.constant 5 : i32
    %34 = vector.broadcast %c5_i32 : i32 to vector<1x1x8xi32>
    %35 = arith.cmpi slt, %33, %34 : vector<1x1x8xi32>
    %cst_11 = arith.constant 0.000000e+00 : f32
    %cst_12 = arith.constant -1.000000e+30 : f32
    %36 = vector.broadcast %cst_11 : f32 to vector<1x1x8xf32>
    %37 = vector.broadcast %cst_12 : f32 to vector<1x1x8xf32>
    %38 = arith.select %35, %36, %37 : vector<1x1x8xi1>, vector<1x1x8xf32>
    %c0_13 = arith.constant 0 : index
    %c0_14 = arith.constant 0 : index
    %c0_15 = arith.constant 0 : index
    %39 = vector.load %arg3[%c0_13, %c0_14, %c0_15] : memref<2x8x128xf32, #tpu.memory_space<vmem>>, vector<1x1x32xf32>
    %40 = vector.shape_cast %39 : vector<1x1x32xf32> to vector<1x32xf32>
    %c0_16 = arith.constant 0 : index
    %c1 = arith.constant 1 : index
    %c0_17 = arith.constant 0 : index
    %41 = vector.load %arg3[%c0_16, %c1, %c0_17] : memref<2x8x128xf32, #tpu.memory_space<vmem>>, vector<1x1x32xf32>
    %42 = vector.shape_cast %41 : vector<1x1x32xf32> to vector<1x32xf32>
    %cst_18 = arith.constant dense<0.000000e+00> : vector<16xf32>
    %43 = vector.multi_reduction <add>, %32, %cst_18 [1] : vector<16x32xf32> to vector<16xf32>
    %44 = vector.shape_cast %43 : vector<16xf32> to vector<16x1xf32>
    %cst_19 = arith.constant 3.200000e+01 : f32
    %45 = vector.broadcast %cst_19 : f32 to vector<16x1xf32>
    %46 = arith.divf %44, %45 : vector<16x1xf32>
    %47 = vector.broadcast %46 : vector<16x1xf32> to vector<16x32xf32>
    %48 = arith.subf %32, %47 : vector<16x32xf32>
    %49 = arith.mulf %48, %48 : vector<16x32xf32>
    %cst_20 = arith.constant dense<0.000000e+00> : vector<16xf32>
    %50 = vector.multi_reduction <add>, %49, %cst_20 [1] : vector<16x32xf32> to vector<16xf32>
    %51 = vector.shape_cast %50 : vector<16xf32> to vector<16x1xf32>
    %cst_21 = arith.constant 3.200000e+01 : f32
    %52 = vector.broadcast %cst_21 : f32 to vector<16x1xf32>
    %53 = arith.divf %51, %52 : vector<16x1xf32>
    %54 = vector.broadcast %46 : vector<16x1xf32> to vector<16x32xf32>
    %55 = arith.subf %32, %54 : vector<16x32xf32>
    %cst_22 = arith.constant 9.99999974E-6 : f32
    %56 = vector.broadcast %cst_22 : f32 to vector<16x1xf32>
    %57 = arith.addf %53, %56 : vector<16x1xf32>
    %58 = math.rsqrt %57 : vector<16x1xf32>
    %59 = vector.broadcast %58 : vector<16x1xf32> to vector<16x32xf32>
    %60 = arith.mulf %55, %59 : vector<16x32xf32>
    %61 = vector.broadcast %40 : vector<1x32xf32> to vector<16x32xf32>
    %62 = arith.mulf %60, %61 : vector<16x32xf32>
    %63 = vector.broadcast %42 : vector<1x32xf32> to vector<16x32xf32>
    %64 = arith.addf %62, %63 : vector<16x32xf32>
    %c0_23 = arith.constant 0 : index
    %c0_24 = arith.constant 0 : index
    %c0_25 = arith.constant 0 : index
    %65 = vector.load %arg2[%c0_23, %c0_24, %c0_25] : memref<2x224x128xf32, #tpu.memory_space<vmem>>, vector<1x32x96xf32>
    %66 = vector.shape_cast %65 : vector<1x32x96xf32> to vector<32x96xf32>
    %cst_26 = arith.constant dense<0.000000e+00> : vector<16x96xf32>
    %67 = tpu.matmul %64, %66, %cst_26 {dimension_numbers = #tpu.dot_dimension_numbers<[1], [0], [0], [1], [0, 0, 1, 1], [], []>} : vector<16x32xf32>, vector<32x96xf32>, vector<16x96xf32> -> vector<16x96xf32>
    %c0_27 = arith.constant 0 : index
    %c4 = arith.constant 4 : index
    %c0_28 = arith.constant 0 : index
    %68 = vector.load %arg3[%c0_27, %c4, %c0_28] : memref<2x8x128xf32, #tpu.memory_space<vmem>>, vector<1x1x96xf32>
    %69 = vector.shape_cast %68 : vector<1x1x96xf32> to vector<1x96xf32>
    %70 = vector.broadcast %69 : vector<1x96xf32> to vector<16x96xf32>
    %71 = arith.addf %67, %70 : vector<16x96xf32>
    %c0_29 = arith.constant 0 : index
    %c5 = arith.constant 5 : index
    %c0_30 = arith.constant 0 : index
    %72 = vector.load %arg3[%c0_29, %c5, %c0_30] : memref<2x8x128xf32, #tpu.memory_space<vmem>>, vector<1x1x32xf32>
    %73 = vector.shape_cast %72 : vector<1x1x32xf32> to vector<1x32xf32>
    %74 = vector.extract_strided_slice %71 {offsets = [0, 0], sizes = [16, 16], strides = [1, 1]} : vector<16x96xf32> to vector<16x16xf32>
    %75 = vector.shape_cast %74 : vector<16x16xf32> to vector<2x8x16xf32>
    %76 = vector.extract_strided_slice %71 {offsets = [0, 32], sizes = [16, 16], strides = [1, 1]} : vector<16x96xf32> to vector<16x16xf32>
    %77 = vector.shape_cast %76 : vector<16x16xf32> to vector<2x8x16xf32>
    %78 = vector.extract_strided_slice %71 {offsets = [0, 64], sizes = [16, 16], strides = [1, 1]} : vector<16x96xf32> to vector<16x16xf32>
    %79 = vector.shape_cast %78 : vector<16x16xf32> to vector<2x8x16xf32>
    "tpu.trace_start"() <{level = 10 : i32, message = "bqd,bkd->bqk"}> : () -> ()
    %cst_31 = arith.constant dense<0.000000e+00> : vector<2x8x8xf32>
    %80 = tpu.matmul %75, %77, %cst_31 {dimension_numbers = #tpu.dot_dimension_numbers<[2], [2], [1], [1], [0, 0, 0, 1, 1, 1], [0], [0]>} : vector<2x8x16xf32>, vector<2x8x16xf32>, vector<2x8x8xf32> -> vector<2x8x8xf32>
    "tpu.trace_stop"() : () -> ()
    %cst_32 = arith.constant 2.500000e-01 : f32
    %81 = vector.broadcast %cst_32 : f32 to vector<2x8x8xf32>
    %82 = arith.mulf %80, %81 : vector<2x8x8xf32>
    %83 = vector.broadcast %38 : vector<1x1x8xf32> to vector<2x8x8xf32>
    %84 = arith.addf %82, %83 : vector<2x8x8xf32>
    %cst_33 = arith.constant dense<0xFF800000> : vector<2x8xf32>
    %85 = vector.multi_reduction <maximumf>, %84, %cst_33 [2] : vector<2x8x8xf32> to vector<2x8xf32>
    %86 = vector.shape_cast %85 : vector<2x8xf32> to vector<2x8x1xf32>
    %87 = vector.broadcast %86 : vector<2x8x1xf32> to vector<2x8x8xf32>
    %88 = arith.subf %84, %87 : vector<2x8x8xf32>
    %89 = math.exp %88 : vector<2x8x8xf32>
    %cst_34 = arith.constant dense<0.000000e+00> : vector<2x8xf32>
    %90 = vector.multi_reduction <add>, %89, %cst_34 [2] : vector<2x8x8xf32> to vector<2x8xf32>
    %91 = vector.shape_cast %90 : vector<2x8xf32> to vector<2x8x1xf32>
    %92 = tpu.reciprocal %91 {approx = true} : vector<2x8x1xf32> -> vector<2x8x1xf32>
    %93 = vector.broadcast %92 : vector<2x8x1xf32> to vector<2x8x8xf32>
    %94 = arith.mulf %89, %93 : vector<2x8x8xf32>
    "tpu.trace_start"() <{level = 10 : i32, message = "bqk,bkd->bqd"}> : () -> ()
    %cst_35 = arith.constant dense<0.000000e+00> : vector<2x8x16xf32>
    %95 = tpu.matmul %94, %79, %cst_35 {dimension_numbers = #tpu.dot_dimension_numbers<[2], [1], [1], [2], [0, 0, 0, 1, 1, 2], [0], [0]>} : vector<2x8x8xf32>, vector<2x8x16xf32>, vector<2x8x16xf32> -> vector<2x8x16xf32>
    "tpu.trace_stop"() : () -> ()
    %96 = vector.shape_cast %95 : vector<2x8x16xf32> to vector<16x16xf32>
    %c0_36 = arith.constant 0 : index
    %c32 = arith.constant 32 : index
    %c0_37 = arith.constant 0 : index
    %97 = vector.load %arg2[%c0_36, %c32, %c0_37] : memref<2x224x128xf32, #tpu.memory_space<vmem>>, vector<1x16x32xf32>
    %98 = vector.shape_cast %97 : vector<1x16x32xf32> to vector<16x32xf32>
    %cst_38 = arith.constant dense<0.000000e+00> : vector<16x32xf32>
    %99 = tpu.matmul %96, %98, %cst_38 {dimension_numbers = #tpu.dot_dimension_numbers<[1], [0], [0], [1], [0, 0, 1, 1], [], []>} : vector<16x16xf32>, vector<16x32xf32>, vector<16x32xf32> -> vector<16x32xf32>
    %100 = vector.broadcast %73 : vector<1x32xf32> to vector<16x32xf32>
    %101 = arith.addf %100, %99 : vector<16x32xf32>
    %102 = vector.extract_strided_slice %71 {offsets = [0, 16], sizes = [16, 16], strides = [1, 1]} : vector<16x96xf32> to vector<16x16xf32>
    %103 = vector.shape_cast %102 : vector<16x16xf32> to vector<2x8x16xf32>
    %104 = vector.extract_strided_slice %71 {offsets = [0, 48], sizes = [16, 16], strides = [1, 1]} : vector<16x96xf32> to vector<16x16xf32>
    %105 = vector.shape_cast %104 : vector<16x16xf32> to vector<2x8x16xf32>
    %106 = vector.extract_strided_slice %71 {offsets = [0, 80], sizes = [16, 16], strides = [1, 1]} : vector<16x96xf32> to vector<16x16xf32>
    %107 = vector.shape_cast %106 : vector<16x16xf32> to vector<2x8x16xf32>
    "tpu.trace_start"() <{level = 10 : i32, message = "bqd,bkd->bqk"}> : () -> ()
    %cst_39 = arith.constant dense<0.000000e+00> : vector<2x8x8xf32>
    %108 = tpu.matmul %103, %105, %cst_39 {dimension_numbers = #tpu.dot_dimension_numbers<[2], [2], [1], [1], [0, 0, 0, 1, 1, 1], [0], [0]>} : vector<2x8x16xf32>, vector<2x8x16xf32>, vector<2x8x8xf32> -> vector<2x8x8xf32>
    "tpu.trace_stop"() : () -> ()
    %cst_40 = arith.constant 2.500000e-01 : f32
    %109 = vector.broadcast %cst_40 : f32 to vector<2x8x8xf32>
    %110 = arith.mulf %108, %109 : vector<2x8x8xf32>
    %111 = vector.broadcast %38 : vector<1x1x8xf32> to vector<2x8x8xf32>
    %112 = arith.addf %110, %111 : vector<2x8x8xf32>
    %cst_41 = arith.constant dense<0xFF800000> : vector<2x8xf32>
    %113 = vector.multi_reduction <maximumf>, %112, %cst_41 [2] : vector<2x8x8xf32> to vector<2x8xf32>
    %114 = vector.shape_cast %113 : vector<2x8xf32> to vector<2x8x1xf32>
    %115 = vector.broadcast %114 : vector<2x8x1xf32> to vector<2x8x8xf32>
    %116 = arith.subf %112, %115 : vector<2x8x8xf32>
    %117 = math.exp %116 : vector<2x8x8xf32>
    %cst_42 = arith.constant dense<0.000000e+00> : vector<2x8xf32>
    %118 = vector.multi_reduction <add>, %117, %cst_42 [2] : vector<2x8x8xf32> to vector<2x8xf32>
    %119 = vector.shape_cast %118 : vector<2x8xf32> to vector<2x8x1xf32>
    %120 = tpu.reciprocal %119 {approx = true} : vector<2x8x1xf32> -> vector<2x8x1xf32>
    %121 = vector.broadcast %120 : vector<2x8x1xf32> to vector<2x8x8xf32>
    %122 = arith.mulf %117, %121 : vector<2x8x8xf32>
    "tpu.trace_start"() <{level = 10 : i32, message = "bqk,bkd->bqd"}> : () -> ()
    %cst_43 = arith.constant dense<0.000000e+00> : vector<2x8x16xf32>
    %123 = tpu.matmul %122, %107, %cst_43 {dimension_numbers = #tpu.dot_dimension_numbers<[2], [1], [1], [2], [0, 0, 0, 1, 1, 2], [0], [0]>} : vector<2x8x8xf32>, vector<2x8x16xf32>, vector<2x8x16xf32> -> vector<2x8x16xf32>
    "tpu.trace_stop"() : () -> ()
    %124 = vector.shape_cast %123 : vector<2x8x16xf32> to vector<16x16xf32>
    %c0_44 = arith.constant 0 : index
    %c48 = arith.constant 48 : index
    %c0_45 = arith.constant 0 : index
    %125 = vector.load %arg2[%c0_44, %c48, %c0_45] : memref<2x224x128xf32, #tpu.memory_space<vmem>>, vector<1x16x32xf32>
    %126 = vector.shape_cast %125 : vector<1x16x32xf32> to vector<16x32xf32>
    %cst_46 = arith.constant dense<0.000000e+00> : vector<16x32xf32>
    %127 = tpu.matmul %124, %126, %cst_46 {dimension_numbers = #tpu.dot_dimension_numbers<[1], [0], [0], [1], [0, 0, 1, 1], [], []>} : vector<16x16xf32>, vector<16x32xf32>, vector<16x32xf32> -> vector<16x32xf32>
    %128 = arith.addf %101, %127 : vector<16x32xf32>
    %129 = arith.addf %32, %128 : vector<16x32xf32>
    %c0_47 = arith.constant 0 : index
    %c2 = arith.constant 2 : index
    %c0_48 = arith.constant 0 : index
    %130 = vector.load %arg3[%c0_47, %c2, %c0_48] : memref<2x8x128xf32, #tpu.memory_space<vmem>>, vector<1x1x32xf32>
    %131 = vector.shape_cast %130 : vector<1x1x32xf32> to vector<1x32xf32>
    %c0_49 = arith.constant 0 : index
    %c3 = arith.constant 3 : index
    %c0_50 = arith.constant 0 : index
    %132 = vector.load %arg3[%c0_49, %c3, %c0_50] : memref<2x8x128xf32, #tpu.memory_space<vmem>>, vector<1x1x32xf32>
    %133 = vector.shape_cast %132 : vector<1x1x32xf32> to vector<1x32xf32>
    %cst_51 = arith.constant dense<0.000000e+00> : vector<16xf32>
    %134 = vector.multi_reduction <add>, %129, %cst_51 [1] : vector<16x32xf32> to vector<16xf32>
    %135 = vector.shape_cast %134 : vector<16xf32> to vector<16x1xf32>
    %cst_52 = arith.constant 3.200000e+01 : f32
    %136 = vector.broadcast %cst_52 : f32 to vector<16x1xf32>
    %137 = arith.divf %135, %136 : vector<16x1xf32>
    %138 = vector.broadcast %137 : vector<16x1xf32> to vector<16x32xf32>
    %139 = arith.subf %129, %138 : vector<16x32xf32>
    %140 = arith.mulf %139, %139 : vector<16x32xf32>
    %cst_53 = arith.constant dense<0.000000e+00> : vector<16xf32>
    %141 = vector.multi_reduction <add>, %140, %cst_53 [1] : vector<16x32xf32> to vector<16xf32>
    %142 = vector.shape_cast %141 : vector<16xf32> to vector<16x1xf32>
    %cst_54 = arith.constant 3.200000e+01 : f32
    %143 = vector.broadcast %cst_54 : f32 to vector<16x1xf32>
    %144 = arith.divf %142, %143 : vector<16x1xf32>
    %145 = vector.broadcast %137 : vector<16x1xf32> to vector<16x32xf32>
    %146 = arith.subf %129, %145 : vector<16x32xf32>
    %cst_55 = arith.constant 9.99999974E-6 : f32
    %147 = vector.broadcast %cst_55 : f32 to vector<16x1xf32>
    %148 = arith.addf %144, %147 : vector<16x1xf32>
    %149 = math.rsqrt %148 : vector<16x1xf32>
    %150 = vector.broadcast %149 : vector<16x1xf32> to vector<16x32xf32>
    %151 = arith.mulf %146, %150 : vector<16x32xf32>
    %152 = vector.broadcast %131 : vector<1x32xf32> to vector<16x32xf32>
    %153 = arith.mulf %151, %152 : vector<16x32xf32>
    %154 = vector.broadcast %133 : vector<1x32xf32> to vector<16x32xf32>
    %155 = arith.addf %153, %154 : vector<16x32xf32>
    %c0_56 = arith.constant 0 : index
    %c64 = arith.constant 64 : index
    %c0_57 = arith.constant 0 : index
    %156 = vector.load %arg2[%c0_56, %c64, %c0_57] : memref<2x224x128xf32, #tpu.memory_space<vmem>>, vector<1x32x128xf32>
    %157 = vector.shape_cast %156 : vector<1x32x128xf32> to vector<32x128xf32>
    %cst_58 = arith.constant dense<0.000000e+00> : vector<16x128xf32>
    %158 = tpu.matmul %155, %157, %cst_58 {dimension_numbers = #tpu.dot_dimension_numbers<[1], [0], [0], [1], [0, 0, 1, 1], [], []>} : vector<16x32xf32>, vector<32x128xf32>, vector<16x128xf32> -> vector<16x128xf32>
    %c0_59 = arith.constant 0 : index
    %c6 = arith.constant 6 : index
    %c0_60 = arith.constant 0 : index
    %159 = vector.load %arg3[%c0_59, %c6, %c0_60] : memref<2x8x128xf32, #tpu.memory_space<vmem>>, vector<1x1x128xf32>
    %160 = vector.shape_cast %159 : vector<1x1x128xf32> to vector<1x128xf32>
    %161 = vector.broadcast %160 : vector<1x128xf32> to vector<16x128xf32>
    %162 = arith.addf %158, %161 : vector<16x128xf32>
    %cst_61 = arith.constant 1.702000e+00 : f32
    %163 = vector.broadcast %cst_61 : f32 to vector<16x128xf32>
    %164 = arith.mulf %163, %162 : vector<16x128xf32>
    %165 = arith.negf %164 : vector<16x128xf32>
    %166 = math.exp %165 : vector<16x128xf32>
    %cst_62 = arith.constant 1.000000e+00 : f32
    %167 = vector.broadcast %cst_62 : f32 to vector<16x128xf32>
    %168 = arith.addf %167, %166 : vector<16x128xf32>
    %169 = arith.divf %167, %168 : vector<16x128xf32>
    %170 = arith.mulf %162, %169 : vector<16x128xf32>
    %c0_63 = arith.constant 0 : index
    %c96 = arith.constant 96 : index
    %c0_64 = arith.constant 0 : index
    %171 = vector.load %arg2[%c0_63, %c96, %c0_64] : memref<2x224x128xf32, #tpu.memory_space<vmem>>, vector<1x128x32xf32>
    %172 = vector.shape_cast %171 : vector<1x128x32xf32> to vector<128x32xf32>
    %cst_65 = arith.constant dense<0.000000e+00> : vector<16x32xf32>
    %173 = tpu.matmul %170, %172, %cst_65 {dimension_numbers = #tpu.dot_dimension_numbers<[1], [0], [0], [1], [0, 0, 1, 1], [], []>} : vector<16x128xf32>, vector<128x32xf32>, vector<16x32xf32> -> vector<16x32xf32>
    %c0_66 = arith.constant 0 : index
    %c7 = arith.constant 7 : index
    %c0_67 = arith.constant 0 : index
    %174 = vector.load %arg3[%c0_66, %c7, %c0_67] : memref<2x8x128xf32, #tpu.memory_space<vmem>>, vector<1x1x32xf32>
    %175 = vector.shape_cast %174 : vector<1x1x32xf32> to vector<1x32xf32>
    %176 = vector.broadcast %175 : vector<1x32xf32> to vector<16x32xf32>
    %177 = arith.addf %173, %176 : vector<16x32xf32>
    %178 = arith.addf %129, %177 : vector<16x32xf32>
    %c1_68 = arith.constant 1 : index
    %c0_69 = arith.constant 0 : index
    %c0_70 = arith.constant 0 : index
    %179 = vector.load %arg3[%c1_68, %c0_69, %c0_70] : memref<2x8x128xf32, #tpu.memory_space<vmem>>, vector<1x1x32xf32>
    %180 = vector.shape_cast %179 : vector<1x1x32xf32> to vector<1x32xf32>
    %c1_71 = arith.constant 1 : index
    %c1_72 = arith.constant 1 : index
    %c0_73 = arith.constant 0 : index
    %181 = vector.load %arg3[%c1_71, %c1_72, %c0_73] : memref<2x8x128xf32, #tpu.memory_space<vmem>>, vector<1x1x32xf32>
    %182 = vector.shape_cast %181 : vector<1x1x32xf32> to vector<1x32xf32>
    %cst_74 = arith.constant dense<0.000000e+00> : vector<16xf32>
    %183 = vector.multi_reduction <add>, %178, %cst_74 [1] : vector<16x32xf32> to vector<16xf32>
    %184 = vector.shape_cast %183 : vector<16xf32> to vector<16x1xf32>
    %cst_75 = arith.constant 3.200000e+01 : f32
    %185 = vector.broadcast %cst_75 : f32 to vector<16x1xf32>
    %186 = arith.divf %184, %185 : vector<16x1xf32>
    %187 = vector.broadcast %186 : vector<16x1xf32> to vector<16x32xf32>
    %188 = arith.subf %178, %187 : vector<16x32xf32>
    %189 = arith.mulf %188, %188 : vector<16x32xf32>
    %cst_76 = arith.constant dense<0.000000e+00> : vector<16xf32>
    %190 = vector.multi_reduction <add>, %189, %cst_76 [1] : vector<16x32xf32> to vector<16xf32>
    %191 = vector.shape_cast %190 : vector<16xf32> to vector<16x1xf32>
    %cst_77 = arith.constant 3.200000e+01 : f32
    %192 = vector.broadcast %cst_77 : f32 to vector<16x1xf32>
    %193 = arith.divf %191, %192 : vector<16x1xf32>
    %194 = vector.broadcast %186 : vector<16x1xf32> to vector<16x32xf32>
    %195 = arith.subf %178, %194 : vector<16x32xf32>
    %cst_78 = arith.constant 9.99999974E-6 : f32
    %196 = vector.broadcast %cst_78 : f32 to vector<16x1xf32>
    %197 = arith.addf %193, %196 : vector<16x1xf32>
    %198 = math.rsqrt %197 : vector<16x1xf32>
    %199 = vector.broadcast %198 : vector<16x1xf32> to vector<16x32xf32>
    %200 = arith.mulf %195, %199 : vector<16x32xf32>
    %201 = vector.broadcast %180 : vector<1x32xf32> to vector<16x32xf32>
    %202 = arith.mulf %200, %201 : vector<16x32xf32>
    %203 = vector.broadcast %182 : vector<1x32xf32> to vector<16x32xf32>
    %204 = arith.addf %202, %203 : vector<16x32xf32>
    %c1_79 = arith.constant 1 : index
    %c0_80 = arith.constant 0 : index
    %c0_81 = arith.constant 0 : index
    %205 = vector.load %arg2[%c1_79, %c0_80, %c0_81] : memref<2x224x128xf32, #tpu.memory_space<vmem>>, vector<1x32x96xf32>
    %206 = vector.shape_cast %205 : vector<1x32x96xf32> to vector<32x96xf32>
    %cst_82 = arith.constant dense<0.000000e+00> : vector<16x96xf32>
    %207 = tpu.matmul %204, %206, %cst_82 {dimension_numbers = #tpu.dot_dimension_numbers<[1], [0], [0], [1], [0, 0, 1, 1], [], []>} : vector<16x32xf32>, vector<32x96xf32>, vector<16x96xf32> -> vector<16x96xf32>
    %c1_83 = arith.constant 1 : index
    %c4_84 = arith.constant 4 : index
    %c0_85 = arith.constant 0 : index
    %208 = vector.load %arg3[%c1_83, %c4_84, %c0_85] : memref<2x8x128xf32, #tpu.memory_space<vmem>>, vector<1x1x96xf32>
    %209 = vector.shape_cast %208 : vector<1x1x96xf32> to vector<1x96xf32>
    %210 = vector.broadcast %209 : vector<1x96xf32> to vector<16x96xf32>
    %211 = arith.addf %207, %210 : vector<16x96xf32>
    %c1_86 = arith.constant 1 : index
    %c5_87 = arith.constant 5 : index
    %c0_88 = arith.constant 0 : index
    %212 = vector.load %arg3[%c1_86, %c5_87, %c0_88] : memref<2x8x128xf32, #tpu.memory_space<vmem>>, vector<1x1x32xf32>
    %213 = vector.shape_cast %212 : vector<1x1x32xf32> to vector<1x32xf32>
    %214 = vector.extract_strided_slice %211 {offsets = [0, 0], sizes = [16, 16], strides = [1, 1]} : vector<16x96xf32> to vector<16x16xf32>
    %215 = vector.shape_cast %214 : vector<16x16xf32> to vector<2x8x16xf32>
    %216 = vector.extract_strided_slice %211 {offsets = [0, 32], sizes = [16, 16], strides = [1, 1]} : vector<16x96xf32> to vector<16x16xf32>
    %217 = vector.shape_cast %216 : vector<16x16xf32> to vector<2x8x16xf32>
    %218 = vector.extract_strided_slice %211 {offsets = [0, 64], sizes = [16, 16], strides = [1, 1]} : vector<16x96xf32> to vector<16x16xf32>
    %219 = vector.shape_cast %218 : vector<16x16xf32> to vector<2x8x16xf32>
    "tpu.trace_start"() <{level = 10 : i32, message = "bqd,bkd->bqk"}> : () -> ()
    %cst_89 = arith.constant dense<0.000000e+00> : vector<2x8x8xf32>
    %220 = tpu.matmul %215, %217, %cst_89 {dimension_numbers = #tpu.dot_dimension_numbers<[2], [2], [1], [1], [0, 0, 0, 1, 1, 1], [0], [0]>} : vector<2x8x16xf32>, vector<2x8x16xf32>, vector<2x8x8xf32> -> vector<2x8x8xf32>
    "tpu.trace_stop"() : () -> ()
    %cst_90 = arith.constant 2.500000e-01 : f32
    %221 = vector.broadcast %cst_90 : f32 to vector<2x8x8xf32>
    %222 = arith.mulf %220, %221 : vector<2x8x8xf32>
    %223 = vector.broadcast %38 : vector<1x1x8xf32> to vector<2x8x8xf32>
    %224 = arith.addf %222, %223 : vector<2x8x8xf32>
    %cst_91 = arith.constant dense<0xFF800000> : vector<2x8xf32>
    %225 = vector.multi_reduction <maximumf>, %224, %cst_91 [2] : vector<2x8x8xf32> to vector<2x8xf32>
    %226 = vector.shape_cast %225 : vector<2x8xf32> to vector<2x8x1xf32>
    %227 = vector.broadcast %226 : vector<2x8x1xf32> to vector<2x8x8xf32>
    %228 = arith.subf %224, %227 : vector<2x8x8xf32>
    %229 = math.exp %228 : vector<2x8x8xf32>
    %cst_92 = arith.constant dense<0.000000e+00> : vector<2x8xf32>
    %230 = vector.multi_reduction <add>, %229, %cst_92 [2] : vector<2x8x8xf32> to vector<2x8xf32>
    %231 = vector.shape_cast %230 : vector<2x8xf32> to vector<2x8x1xf32>
    %232 = tpu.reciprocal %231 {approx = true} : vector<2x8x1xf32> -> vector<2x8x1xf32>
    %233 = vector.broadcast %232 : vector<2x8x1xf32> to vector<2x8x8xf32>
    %234 = arith.mulf %229, %233 : vector<2x8x8xf32>
    "tpu.trace_start"() <{level = 10 : i32, message = "bqk,bkd->bqd"}> : () -> ()
    %cst_93 = arith.constant dense<0.000000e+00> : vector<2x8x16xf32>
    %235 = tpu.matmul %234, %219, %cst_93 {dimension_numbers = #tpu.dot_dimension_numbers<[2], [1], [1], [2], [0, 0, 0, 1, 1, 2], [0], [0]>} : vector<2x8x8xf32>, vector<2x8x16xf32>, vector<2x8x16xf32> -> vector<2x8x16xf32>
    "tpu.trace_stop"() : () -> ()
    %236 = vector.shape_cast %235 : vector<2x8x16xf32> to vector<16x16xf32>
    %c1_94 = arith.constant 1 : index
    %c32_95 = arith.constant 32 : index
    %c0_96 = arith.constant 0 : index
    %237 = vector.load %arg2[%c1_94, %c32_95, %c0_96] : memref<2x224x128xf32, #tpu.memory_space<vmem>>, vector<1x16x32xf32>
    %238 = vector.shape_cast %237 : vector<1x16x32xf32> to vector<16x32xf32>
    %cst_97 = arith.constant dense<0.000000e+00> : vector<16x32xf32>
    %239 = tpu.matmul %236, %238, %cst_97 {dimension_numbers = #tpu.dot_dimension_numbers<[1], [0], [0], [1], [0, 0, 1, 1], [], []>} : vector<16x16xf32>, vector<16x32xf32>, vector<16x32xf32> -> vector<16x32xf32>
    %240 = vector.broadcast %213 : vector<1x32xf32> to vector<16x32xf32>
    %241 = arith.addf %240, %239 : vector<16x32xf32>
    %242 = vector.extract_strided_slice %211 {offsets = [0, 16], sizes = [16, 16], strides = [1, 1]} : vector<16x96xf32> to vector<16x16xf32>
    %243 = vector.shape_cast %242 : vector<16x16xf32> to vector<2x8x16xf32>
    %244 = vector.extract_strided_slice %211 {offsets = [0, 48], sizes = [16, 16], strides = [1, 1]} : vector<16x96xf32> to vector<16x16xf32>
    %245 = vector.shape_cast %244 : vector<16x16xf32> to vector<2x8x16xf32>
    %246 = vector.extract_strided_slice %211 {offsets = [0, 80], sizes = [16, 16], strides = [1, 1]} : vector<16x96xf32> to vector<16x16xf32>
    %247 = vector.shape_cast %246 : vector<16x16xf32> to vector<2x8x16xf32>
    "tpu.trace_start"() <{level = 10 : i32, message = "bqd,bkd->bqk"}> : () -> ()
    %cst_98 = arith.constant dense<0.000000e+00> : vector<2x8x8xf32>
    %248 = tpu.matmul %243, %245, %cst_98 {dimension_numbers = #tpu.dot_dimension_numbers<[2], [2], [1], [1], [0, 0, 0, 1, 1, 1], [0], [0]>} : vector<2x8x16xf32>, vector<2x8x16xf32>, vector<2x8x8xf32> -> vector<2x8x8xf32>
    "tpu.trace_stop"() : () -> ()
    %cst_99 = arith.constant 2.500000e-01 : f32
    %249 = vector.broadcast %cst_99 : f32 to vector<2x8x8xf32>
    %250 = arith.mulf %248, %249 : vector<2x8x8xf32>
    %251 = vector.broadcast %38 : vector<1x1x8xf32> to vector<2x8x8xf32>
    %252 = arith.addf %250, %251 : vector<2x8x8xf32>
    %cst_100 = arith.constant dense<0xFF800000> : vector<2x8xf32>
    %253 = vector.multi_reduction <maximumf>, %252, %cst_100 [2] : vector<2x8x8xf32> to vector<2x8xf32>
    %254 = vector.shape_cast %253 : vector<2x8xf32> to vector<2x8x1xf32>
    %255 = vector.broadcast %254 : vector<2x8x1xf32> to vector<2x8x8xf32>
    %256 = arith.subf %252, %255 : vector<2x8x8xf32>
    %257 = math.exp %256 : vector<2x8x8xf32>
    %cst_101 = arith.constant dense<0.000000e+00> : vector<2x8xf32>
    %258 = vector.multi_reduction <add>, %257, %cst_101 [2] : vector<2x8x8xf32> to vector<2x8xf32>
    %259 = vector.shape_cast %258 : vector<2x8xf32> to vector<2x8x1xf32>
    %260 = tpu.reciprocal %259 {approx = true} : vector<2x8x1xf32> -> vector<2x8x1xf32>
    %261 = vector.broadcast %260 : vector<2x8x1xf32> to vector<2x8x8xf32>
    %262 = arith.mulf %257, %261 : vector<2x8x8xf32>
    "tpu.trace_start"() <{level = 10 : i32, message = "bqk,bkd->bqd"}> : () -> ()
    %cst_102 = arith.constant dense<0.000000e+00> : vector<2x8x16xf32>
    %263 = tpu.matmul %262, %247, %cst_102 {dimension_numbers = #tpu.dot_dimension_numbers<[2], [1], [1], [2], [0, 0, 0, 1, 1, 2], [0], [0]>} : vector<2x8x8xf32>, vector<2x8x16xf32>, vector<2x8x16xf32> -> vector<2x8x16xf32>
    "tpu.trace_stop"() : () -> ()
    %264 = vector.shape_cast %263 : vector<2x8x16xf32> to vector<16x16xf32>
    %c1_103 = arith.constant 1 : index
    %c48_104 = arith.constant 48 : index
    %c0_105 = arith.constant 0 : index
    %265 = vector.load %arg2[%c1_103, %c48_104, %c0_105] : memref<2x224x128xf32, #tpu.memory_space<vmem>>, vector<1x16x32xf32>
    %266 = vector.shape_cast %265 : vector<1x16x32xf32> to vector<16x32xf32>
    %cst_106 = arith.constant dense<0.000000e+00> : vector<16x32xf32>
    %267 = tpu.matmul %264, %266, %cst_106 {dimension_numbers = #tpu.dot_dimension_numbers<[1], [0], [0], [1], [0, 0, 1, 1], [], []>} : vector<16x16xf32>, vector<16x32xf32>, vector<16x32xf32> -> vector<16x32xf32>
    %268 = arith.addf %241, %267 : vector<16x32xf32>
    %269 = arith.addf %178, %268 : vector<16x32xf32>
    %c1_107 = arith.constant 1 : index
    %c2_108 = arith.constant 2 : index
    %c0_109 = arith.constant 0 : index
    %270 = vector.load %arg3[%c1_107, %c2_108, %c0_109] : memref<2x8x128xf32, #tpu.memory_space<vmem>>, vector<1x1x32xf32>
    %271 = vector.shape_cast %270 : vector<1x1x32xf32> to vector<1x32xf32>
    %c1_110 = arith.constant 1 : index
    %c3_111 = arith.constant 3 : index
    %c0_112 = arith.constant 0 : index
    %272 = vector.load %arg3[%c1_110, %c3_111, %c0_112] : memref<2x8x128xf32, #tpu.memory_space<vmem>>, vector<1x1x32xf32>
    %273 = vector.shape_cast %272 : vector<1x1x32xf32> to vector<1x32xf32>
    %cst_113 = arith.constant dense<0.000000e+00> : vector<16xf32>
    %274 = vector.multi_reduction <add>, %269, %cst_113 [1] : vector<16x32xf32> to vector<16xf32>
    %275 = vector.shape_cast %274 : vector<16xf32> to vector<16x1xf32>
    %cst_114 = arith.constant 3.200000e+01 : f32
    %276 = vector.broadcast %cst_114 : f32 to vector<16x1xf32>
    %277 = arith.divf %275, %276 : vector<16x1xf32>
    %278 = vector.broadcast %277 : vector<16x1xf32> to vector<16x32xf32>
    %279 = arith.subf %269, %278 : vector<16x32xf32>
    %280 = arith.mulf %279, %279 : vector<16x32xf32>
    %cst_115 = arith.constant dense<0.000000e+00> : vector<16xf32>
    %281 = vector.multi_reduction <add>, %280, %cst_115 [1] : vector<16x32xf32> to vector<16xf32>
    %282 = vector.shape_cast %281 : vector<16xf32> to vector<16x1xf32>
    %cst_116 = arith.constant 3.200000e+01 : f32
    %283 = vector.broadcast %cst_116 : f32 to vector<16x1xf32>
    %284 = arith.divf %282, %283 : vector<16x1xf32>
    %285 = vector.broadcast %277 : vector<16x1xf32> to vector<16x32xf32>
    %286 = arith.subf %269, %285 : vector<16x32xf32>
    %cst_117 = arith.constant 9.99999974E-6 : f32
    %287 = vector.broadcast %cst_117 : f32 to vector<16x1xf32>
    %288 = arith.addf %284, %287 : vector<16x1xf32>
    %289 = math.rsqrt %288 : vector<16x1xf32>
    %290 = vector.broadcast %289 : vector<16x1xf32> to vector<16x32xf32>
    %291 = arith.mulf %286, %290 : vector<16x32xf32>
    %292 = vector.broadcast %271 : vector<1x32xf32> to vector<16x32xf32>
    %293 = arith.mulf %291, %292 : vector<16x32xf32>
    %294 = vector.broadcast %273 : vector<1x32xf32> to vector<16x32xf32>
    %295 = arith.addf %293, %294 : vector<16x32xf32>
    %c1_118 = arith.constant 1 : index
    %c64_119 = arith.constant 64 : index
    %c0_120 = arith.constant 0 : index
    %296 = vector.load %arg2[%c1_118, %c64_119, %c0_120] : memref<2x224x128xf32, #tpu.memory_space<vmem>>, vector<1x32x128xf32>
    %297 = vector.shape_cast %296 : vector<1x32x128xf32> to vector<32x128xf32>
    %cst_121 = arith.constant dense<0.000000e+00> : vector<16x128xf32>
    %298 = tpu.matmul %295, %297, %cst_121 {dimension_numbers = #tpu.dot_dimension_numbers<[1], [0], [0], [1], [0, 0, 1, 1], [], []>} : vector<16x32xf32>, vector<32x128xf32>, vector<16x128xf32> -> vector<16x128xf32>
    %c1_122 = arith.constant 1 : index
    %c6_123 = arith.constant 6 : index
    %c0_124 = arith.constant 0 : index
    %299 = vector.load %arg3[%c1_122, %c6_123, %c0_124] : memref<2x8x128xf32, #tpu.memory_space<vmem>>, vector<1x1x128xf32>
    %300 = vector.shape_cast %299 : vector<1x1x128xf32> to vector<1x128xf32>
    %301 = vector.broadcast %300 : vector<1x128xf32> to vector<16x128xf32>
    %302 = arith.addf %298, %301 : vector<16x128xf32>
    %cst_125 = arith.constant 1.702000e+00 : f32
    %303 = vector.broadcast %cst_125 : f32 to vector<16x128xf32>
    %304 = arith.mulf %303, %302 : vector<16x128xf32>
    %305 = arith.negf %304 : vector<16x128xf32>
    %306 = math.exp %305 : vector<16x128xf32>
    %cst_126 = arith.constant 1.000000e+00 : f32
    %307 = vector.broadcast %cst_126 : f32 to vector<16x128xf32>
    %308 = arith.addf %307, %306 : vector<16x128xf32>
    %309 = arith.divf %307, %308 : vector<16x128xf32>
    %310 = arith.mulf %302, %309 : vector<16x128xf32>
    %c1_127 = arith.constant 1 : index
    %c96_128 = arith.constant 96 : index
    %c0_129 = arith.constant 0 : index
    %311 = vector.load %arg2[%c1_127, %c96_128, %c0_129] : memref<2x224x128xf32, #tpu.memory_space<vmem>>, vector<1x128x32xf32>
    %312 = vector.shape_cast %311 : vector<1x128x32xf32> to vector<128x32xf32>
    %cst_130 = arith.constant dense<0.000000e+00> : vector<16x32xf32>
    %313 = tpu.matmul %310, %312, %cst_130 {dimension_numbers = #tpu.dot_dimension_numbers<[1], [0], [0], [1], [0, 0, 1, 1], [], []>} : vector<16x128xf32>, vector<128x32xf32>, vector<16x32xf32> -> vector<16x32xf32>
    %c1_131 = arith.constant 1 : index
    %c7_132 = arith.constant 7 : index
    %c0_133 = arith.constant 0 : index
    %314 = vector.load %arg3[%c1_131, %c7_132, %c0_133] : memref<2x8x128xf32, #tpu.memory_space<vmem>>, vector<1x1x32xf32>
    %315 = vector.shape_cast %314 : vector<1x1x32xf32> to vector<1x32xf32>
    %316 = vector.broadcast %315 : vector<1x32xf32> to vector<16x32xf32>
    %317 = arith.addf %313, %316 : vector<16x32xf32>
    %318 = arith.addf %269, %317 : vector<16x32xf32>
    %319 = vector.shape_cast %318 : vector<16x32xf32> to vector<2x8x32xf32>
    %320 = vector.extract_strided_slice %319 {offsets = [0, 0, 0], sizes = [2, 1, 32], strides = [1, 1, 1]} : vector<2x8x32xf32> to vector<2x1x32xf32>
    %321 = vector.shape_cast %320 : vector<2x1x32xf32> to vector<2x32xf32>
    %c250 = arith.constant 250 : index
    %c0_134 = arith.constant 0 : index
    %322 = vector.load %arg4[%c250, %c0_134] : memref<256x128xf32, #tpu.memory_space<vmem>>, vector<1x32xf32>
    %c251 = arith.constant 251 : index
    %c0_135 = arith.constant 0 : index
    %323 = vector.load %arg4[%c251, %c0_135] : memref<256x128xf32, #tpu.memory_space<vmem>>, vector<1x32xf32>
    %cst_136 = arith.constant dense<0.000000e+00> : vector<2xf32>
    %324 = vector.multi_reduction <add>, %321, %cst_136 [1] : vector<2x32xf32> to vector<2xf32>
    %325 = vector.shape_cast %324 : vector<2xf32> to vector<2x1xf32>
    %cst_137 = arith.constant 3.200000e+01 : f32
    %326 = vector.broadcast %cst_137 : f32 to vector<2x1xf32>
    %327 = arith.divf %325, %326 : vector<2x1xf32>
    %328 = vector.broadcast %327 : vector<2x1xf32> to vector<2x32xf32>
    %329 = arith.subf %321, %328 : vector<2x32xf32>
    %330 = arith.mulf %329, %329 : vector<2x32xf32>
    %cst_138 = arith.constant dense<0.000000e+00> : vector<2xf32>
    %331 = vector.multi_reduction <add>, %330, %cst_138 [1] : vector<2x32xf32> to vector<2xf32>
    %332 = vector.shape_cast %331 : vector<2xf32> to vector<2x1xf32>
    %cst_139 = arith.constant 3.200000e+01 : f32
    %333 = vector.broadcast %cst_139 : f32 to vector<2x1xf32>
    %334 = arith.divf %332, %333 : vector<2x1xf32>
    %335 = vector.broadcast %327 : vector<2x1xf32> to vector<2x32xf32>
    %336 = arith.subf %321, %335 : vector<2x32xf32>
    %cst_140 = arith.constant 9.99999974E-6 : f32
    %337 = vector.broadcast %cst_140 : f32 to vector<2x1xf32>
    %338 = arith.addf %334, %337 : vector<2x1xf32>
    %339 = math.rsqrt %338 : vector<2x1xf32>
    %340 = vector.broadcast %339 : vector<2x1xf32> to vector<2x32xf32>
    %341 = arith.mulf %336, %340 : vector<2x32xf32>
    %342 = vector.broadcast %322 : vector<1x32xf32> to vector<2x32xf32>
    %343 = arith.mulf %341, %342 : vector<2x32xf32>
    %344 = vector.broadcast %323 : vector<1x32xf32> to vector<2x32xf32>
    %345 = arith.addf %343, %344 : vector<2x32xf32>
    %c200 = arith.constant 200 : index
    %c0_141 = arith.constant 0 : index
    %346 = vector.load %arg4[%c200, %c0_141] : memref<256x128xf32, #tpu.memory_space<vmem>>, vector<32x16xf32>
    %cst_142 = arith.constant dense<0.000000e+00> : vector<2x16xf32>
    %347 = tpu.matmul %345, %346, %cst_142 {dimension_numbers = #tpu.dot_dimension_numbers<[1], [0], [0], [1], [0, 0, 1, 1], [], []>} : vector<2x32xf32>, vector<32x16xf32>, vector<2x16xf32> -> vector<2x16xf32>
    %c252 = arith.constant 252 : index
    %c0_143 = arith.constant 0 : index
    %348 = vector.load %arg4[%c252, %c0_143] : memref<256x128xf32, #tpu.memory_space<vmem>>, vector<1x16xf32>
    %349 = vector.broadcast %348 : vector<1x16xf32> to vector<2x16xf32>
    %350 = arith.subf %347, %349 : vector<2x16xf32>
    %c253 = arith.constant 253 : index
    %c0_144 = arith.constant 0 : index
    %351 = vector.load %arg4[%c253, %c0_144] : memref<256x128xf32, #tpu.memory_space<vmem>>, vector<1x16xf32>
    %cst_145 = arith.constant 9.99999997E-7 : f32
    %352 = vector.broadcast %cst_145 : f32 to vector<1x16xf32>
    %353 = arith.addf %351, %352 : vector<1x16xf32>
    %354 = math.rsqrt %353 : vector<1x16xf32>
    %355 = vector.broadcast %354 : vector<1x16xf32> to vector<2x16xf32>
    %356 = arith.mulf %350, %355 : vector<2x16xf32>
    %c232 = arith.constant 232 : index
    %c0_146 = arith.constant 0 : index
    %357 = vector.load %arg4[%c232, %c0_146] : memref<256x128xf32, #tpu.memory_space<vmem>>, vector<16x128xf32>
    %cst_147 = arith.constant dense<0.000000e+00> : vector<2x128xf32>
    %358 = tpu.matmul %356, %357, %cst_147 {dimension_numbers = #tpu.dot_dimension_numbers<[1], [0], [0], [1], [0, 0, 1, 1], [], []>} : vector<2x16xf32>, vector<16x128xf32>, vector<2x128xf32> -> vector<2x128xf32>
    %c254 = arith.constant 254 : index
    %c0_148 = arith.constant 0 : index
    %359 = vector.load %arg4[%c254, %c0_148] : memref<256x128xf32, #tpu.memory_space<vmem>>, vector<1x128xf32>
    %360 = vector.broadcast %359 : vector<1x128xf32> to vector<2x128xf32>
    %361 = arith.addf %358, %360 : vector<2x128xf32>
    %c0_149 = arith.constant 0 : index
    %c0_150 = arith.constant 0 : index
    %362 = vector.load %arg5[%c0_149, %c0_150] : memref<2x128xf32, #tpu.memory_space<vmem>>, vector<2x128xf32>
    tpu.vector_store %arg5[%c0_149, %c0_150], %361 {strides = array<i32>} : memref<2x128xf32, #tpu.memory_space<vmem>>, vector<2x128xf32>,
    return
  }
  func.func @transform_0(%arg0: i32) -> (i32, i32) {
    %c0_i32 = arith.constant 0 : i32
    %c0_i32_0 = arith.constant 0 : i32
    return %arg0, %c0_i32 : i32, i32
  }
  func.func @transform_1(%arg0: i32) -> (i32, i32, i32) {
    %c0_i32 = arith.constant 0 : i32
    %c0_i32_0 = arith.constant 0 : i32
    %c0_i32_1 = arith.constant 0 : i32
    %c0_i32_2 = arith.constant 0 : i32
    return %c0_i32, %c0_i32_0, %c0_i32_1 : i32, i32, i32
  }
  func.func @transform_2(%arg0: i32) -> (i32, i32, i32) {
    %c0_i32 = arith.constant 0 : i32
    %c0_i32_0 = arith.constant 0 : i32
    %c0_i32_1 = arith.constant 0 : i32
    %c0_i32_2 = arith.constant 0 : i32
    return %c0_i32, %c0_i32_0, %c0_i32_1 : i32, i32, i32
  }
  func.func @transform_3(%arg0: i32) -> (i32, i32) {
    %c0_i32 = arith.constant 0 : i32
    %c0_i32_0 = arith.constant 0 : i32
    %c0_i32_1 = arith.constant 0 : i32
    return %c0_i32, %c0_i32_0 : i32, i32
  }
  func.func @transform_4(%arg0: i32) -> (i32, i32) {
    %c0_i32 = arith.constant 0 : i32
    %c0_i32_0 = arith.constant 0 : i32
    return %arg0, %c0_i32 : i32, i32
  }
}

</mosaic_0001>

<llo_original>
// kernel: vitlens_lp_forward.1
$region0: #{vitlens_lp_forward.1}
  #allocation0 [shape = 'u32[]', space=smem, size = 0x4, offset = 0x4, fixed_abs, tag = 'smem constant byte address 0x4 - core index']
  #allocation1 [shape = 'u32[144,128]{1,0:T(1,128)}', space=vmem, size = 0x12000, scoped, tag = 'internal scratch']
  %s0 = inlined_call_operand.vmem [shape: f32[16,192], index: 0, kind: input, shape index: {}]
  %s1 = inlined_call_operand.vmem [shape: f32[2,224,128], index: 1, kind: input, shape index: {}]
  %s2 = inlined_call_operand.vmem [shape: f32[2,8,128], index: 2, kind: input, shape index: {}]
  %s3 = inlined_call_operand.vmem [shape: f32[256,128], index: 3, kind: input, shape index: {}]
  %s4 = inlined_call_operand.hbm [shape: f32[2,128], index: 4, kind: output, shape index: {}]
  %s5 = sld [smem:[#allocation0]]
  $region26: #{vitlens_lp_forward.1} parent=0
    _
  %s7 = ssub.s32 1, %s5
  %s8 = scalar_select 0, %s7, %s5
  $region1: #{vitlens_lp_forward.1} parent=0
    #allocation2 [shape = 'u8[1024]{0}', space=vmem, size = 0x400, scoped, tag = 'output window, operand 0, single buffered']
    #allocation3 [shape = 's32[1]{0}', space=sflag, size = 0x4, scoped, tag = 'scoped memory for vitlens_lp_forward.1']
    %9 = vsyncpa [#allocation3], 0
    // Predicated region
    $region2: #{vitlens_lp_forward.1} parent=1 // pred_check
      _
    $region3: #{vitlens_lp_forward.1} parent=1 // pred_check_branch
      %11 = sbr.rel (0) target = $region5
    $region4: #{vitlens_lp_forward.1} parent=1 // pred_region
      _
    $region5: #{vitlens_lp_forward.1} parent=1 // pred_fallthru
      _
    // Predicated region
    $region6: #{vitlens_lp_forward.1} parent=1 // pred_check
      _
    $region7: #{vitlens_lp_forward.1} parent=1 // pred_check_branch
      %13 = sbr.rel (0) target = $region9
    $region8: #{vitlens_lp_forward.1} parent=1 // pred_region
      _
    $region9: #{vitlens_lp_forward.1} parent=1 // pred_fallthru
      _
    // Predicated region
    $region10: #{vitlens_lp_forward.1} parent=1 // pred_check
      _
    $region11: #{vitlens_lp_forward.1} parent=1 // pred_check_branch
      %15 = sbr.rel (0) target = $region13
    $region12: #{vitlens_lp_forward.1} parent=1 // pred_region
      _
    $region13: #{vitlens_lp_forward.1} parent=1 // pred_fallthru
      _
    // Predicated region
    $region14: #{vitlens_lp_forward.1} parent=1 // pred_check
      _
    $region15: #{vitlens_lp_forward.1} parent=1 // pred_check_branch
      %17 = sbr.rel (0) target = $region17
    $region16: #{vitlens_lp_forward.1} parent=1 // pred_region
      _
    $region17: #{vitlens_lp_forward.1} parent=1 // pred_fallthru
      _
    %v18 = vld [vmem:[%s3] sm:$0xff]
    %v19 = vld [vmem:[%s3 + $0x8] sm:$0xff]
    %v20 = vld [vmem:[%s3 + $0x10] sm:$0xff]
    %v21 = vld [vmem:[%s3 + $0x18] sm:$0xff]
    %v22 = vld [vmem:[%s3 + $0x20] sm:$0xff]
    %v23 = vld [vmem:[%s3 + $0x28] sm:$0xff]
    %v24 = vld [vmem:[%s3 + $0x30] sm:$0xff]
    %v25 = vld [vmem:[%s3 + $0x38] sm:$0xff]
    %v26 = vld [vmem:[%s3 + $0x40] sm:$0xff]
    %v27 = vld [vmem:[%s3 + $0x48] sm:$0xff]
    %v28 = vld [vmem:[%s3 + $0x50] sm:$0xff]
    %v29 = vld [vmem:[%s3 + $0x58] sm:$0xff]
    %v30 = vld [vmem:[%s3 + $0x60] sm:$0xff]
    %v31 = vld [vmem:[%s3 + $0x68] sm:$0xff]
    %v32 = vld [vmem:[%s3 + $0x70] sm:$0xff]
    %v33 = vld [vmem:[%s3 + $0x78] sm:$0xff]
    %v34 = vld [vmem:[%s3 + $0x80] sm:$0xff]
    %v35 = vld [vmem:[%s3 + $0x88] sm:$0xff]
    %v36 = vld [vmem:[%s3 + $0x90] sm:$0xff]
    %v37 = vld [vmem:[%s3 + $0x98] sm:$0xff]
    %v38 = vld [vmem:[%s3 + $0xa0] sm:$0xff]
    %v39 = vld [vmem:[%s3 + $0xa8] sm:$0xff]
    %v40 = vld [vmem:[%s3 + $0xb0] sm:$0xff]
    %v41 = vld [vmem:[%s3 + $0xb8] sm:$0xff]
    %v42 = vld [vmem:[%s0] sm:$0xff]
    %v43 = vld [vmem:[%s0 + $0x8] sm:$0xff]
    %v44 = vld [vmem:[%s0 + $0x10] sm:$0xff]
    %v45 = vld [vmem:[%s0 + $0x18] sm:$0xff]
    %vm46 = vcmask 523264
    %v48 = vsel %vm46, %v43, 0
    %v51 = vsel %vm46, %v45, 0
    %53 = vmatprep.subr.mxu0 0.0
    %54 = vmatpush1.msra.mxu0 %v18
    %55 = vmatprep.subr.mxu0 0.0
    %56 = vmatpush1.msra.mxu0 %v19
    %57 = vmatprep.subr.mxu0 0.0
    %58 = vmatpush1.msra.mxu0 %v20
    %59 = vmatprep.subr.mxu0 0.0
    %60 = vmatpush1.msra.mxu0 %v21
    %61 = vmatprep.subr.mxu0 0.0
    %62 = vmatpush1.msra.mxu0 %v22
    %63 = vmatprep.subr.mxu0 0.0
    %64 = vmatpush1.msra.mxu0 %v23
    %65 = vmatprep.subr.mxu0 0.0
    %66 = vmatpush1.msra.mxu0 %v24
    %67 = vmatprep.subr.mxu0 0.0
    %68 = vmatpush1.msra.mxu0 %v25
    %69 = vmatprep.subr.mxu0 0.0
    %70 = vmatpush1.msra.mxu0 %v26
    %71 = vmatprep.subr.mxu0 0.0
    %72 = vmatpush1.msra.mxu0 %v27
    %73 = vmatprep.subr.mxu0 0.0
    %74 = vmatpush1.msra.mxu0 %v28
    %75 = vmatprep.subr.mxu0 0.0
    %76 = vmatpush1.msra.mxu0 %v29
    %77 = vmatprep.subr.mxu0 0.0
    %78 = vmatpush1.msra.mxu0 %v30
    %79 = vmatprep.subr.mxu0 0.0
    %80 = vmatpush1.msra.mxu0 %v31
    %81 = vmatprep.subr.mxu0 0.0
    %82 = vmatpush1.msra.mxu0 %v32
    %83 = vmatprep.subr.mxu0 0.0
    %84 = vmatpush1.msra.mxu0 %v33
    %85 = vmatprep.subr.mxu0 0.0
    %86 = vmatpush1.msra.mxu0 %v34
    %87 = vmatprep.subr.mxu0 0.0
    %88 = vmatpush1.msra.mxu0 %v35
    %89 = vmatprep.subr.mxu0 0.0
    %90 = vmatpush1.msra.mxu0 %v36
    %91 = vmatprep.subr.mxu0 0.0
    %92 = vmatpush1.msra.mxu0 %v37
    %93 = vmatprep.subr.mxu0 0.0
    %94 = vmatpush1.msra.mxu0 %v38
    %95 = vmatprep.subr.mxu0 0.0
    %96 = vmatpush1.msra.mxu0 %v39
    %97 = vmatprep.subr.mxu0 0.0
    %98 = vmatpush1.msra.mxu0 %v40
    %99 = vmatprep.subr.mxu0 0.0
    %100 = vmatpush1.msra.mxu0 %v41
    %101 = vmatprep.subr.mxu0 0.0
    %102 = vmatpush1.msra.mxu0 0.0
    %103 = vmatprep.subr.mxu0 0.0
    %104 = vmatpush1.msra.mxu0 0.0
    %105 = vmatprep.subr.mxu0 0.0
    %106 = vmatpush1.msra.mxu0 0.0
    %107 = vmatprep.subr.mxu0 0.0
    %108 = vmatpush1.msra.mxu0 0.0
    %109 = vmatprep.subr.mxu0 0.0
    %110 = vmatpush1.msra.mxu0 0.0
    %111 = vmatprep.subr.mxu0 0.0
    %112 = vmatpush1.msra.mxu0 0.0
    %113 = vmatprep.subr.mxu0 0.0
    %114 = vmatpush1.msra.mxu0 0.0
    %115 = vmatprep.subr.mxu0 0.0
    %116 = vmatpush1.msra.mxu0 0.0
    %117 = vmatprep.mubr.f32.mxu0 %v48
    %118 = vmatmul.mubr.f32.gmra.mrb[0].mxu0 %v42
    %v119 = vpop.f32.mrb[0].mxu0
    %v120 = vadd.f32 0.0, %v119
    %v121 = vpop.f32.mrb[0].mxu0
    %122 = vmatprep.mubr.f32.mxu0 %v51
    %123 = vmatmul.mubr.f32.gmra.mrb[0].mxu0 %v44
    %v124 = vpop.f32.mrb[0].mxu0
    %v125 = vadd.f32 0.0, %v124
    %v126 = vpop.f32.mrb[0].mxu0
    %127 = vdwg.mxu0
    %v128 = vld [vmem:[%s3 + $0xc0] sm:$0xff]
    %v129 = vadd.f32 %v120, %v128
    %v130 = vadd.f32 %v125, %v128
    %v131 = vld [vmem:[%s3 + $0xf8] sm:$0x1]
    %v132 = vld [vmem:[%s3 + $0xf9] sm:$0x1]
    %vm133 = vcmask 261120
    %v134 = vsel %vm133, %v129, 0.0
    %135 = vadd.xlane.f32.xlu0 %v134
    %v136 = vpop.xlane.xlu0 %135
    %v137 = vsel %vm133, %v130, 0.0
    %138 = vadd.xlane.f32.xlu0 %v137
    %v139 = vpop.xlane.xlu0 %138
    %v140 = vrcp.pop 32.0
    %v141 = vmul.f32 %v136, %v140
    %v142 = vmul.f32 %v139, %v140
    %v143 = vsub.f32 %v129, %v141
    %v144 = vsub.f32 %v130, %v142
    %v145 = vmul.f32 %v143, %v143
    %v146 = vmul.f32 %v144, %v144
    %v147 = vsel %vm133, %v145, 0.0
    %148 = vadd.xlane.f32.xlu0 %v147
    %v149 = vpop.xlane.xlu0 %148
    %v150 = vsel %vm133, %v146, 0.0
    %151 = vadd.xlane.f32.xlu0 %v150
    %v152 = vpop.xlane.xlu0 %151
    %v153 = vmul.f32 %v149, %v140
    %v154 = vmul.f32 %v152, %v140
    %v155 = vadd.f32 %v153, 1e-05
    %v156 = vadd.f32 %v154, 1e-05
    %v157 = vrsqrt.pop %v155
    %v158 = vrsqrt.pop %v156
    %v159 = vmul.f32 %v143, %v157
    %v160 = vmul.f32 %v144, %v158
    %v161 = vlaneseq
    %v162 = vshrl.u32 %v161, 7
    %v163 = vsub.s32 0, %v162
    %v164 = vrot.slane %v131, %v163
    %v165 = vmul.f32 %v159, %v164
    %v166 = vmul.f32 %v160, %v164
    %v167 = vlaneseq
    %v168 = vshrl.u32 %v167, 7
    %v169 = vsub.s32 0, %v168
    %v170 = vrot.slane %v132, %v169
    %v171 = vadd.f32 %v165, %v170
    %v172 = vadd.f32 %v166, %v170
    %v173 = vlaneseq
    %v174 = vand.u32 %v173, 127
    %vm175 = vcmp.lt.s32.totalorder %v174, 5
    %v176 = vsel %vm175, 0.0, -1e+30
    %v177 = vld [vmem:[%s2] sm:$0x1]
    %v178 = vld [vmem:[%s2 + $0x1] sm:$0x1]
    %v179 = vsel %vm133, %v171, 0.0
    %180 = vadd.xlane.f32.xlu0 %v179
    %v181 = vpop.xlane.xlu0 %180
    %v182 = vsel %vm133, %v172, 0.0
    %183 = vadd.xlane.f32.xlu0 %v182
    %v184 = vpop.xlane.xlu0 %183
    %v185 = vmul.f32 %v181, %v140
    %v186 = vmul.f32 %v184, %v140
    %v187 = vsub.f32 %v171, %v185
    %v188 = vsub.f32 %v172, %v186
    %v189 = vmul.f32 %v187, %v187
    %v190 = vmul.f32 %v188, %v188
    %v191 = vsel %vm133, %v189, 0.0
    %192 = vadd.xlane.f32.xlu0 %v191
    %v193 = vpop.xlane.xlu0 %192
    %v194 = vsel %vm133, %v190, 0.0
    %195 = vadd.xlane.f32.xlu0 %v194
    %v196 = vpop.xlane.xlu0 %195
    %v197 = vmul.f32 %v193, %v140
    %v198 = vmul.f32 %v196, %v140
    %v199 = vadd.f32 %v197, 1e-05
    %v200 = vadd.f32 %v198, 1e-05
    %v201 = vrsqrt.pop %v199
    %v202 = vrsqrt.pop %v200
    %v203 = vmul.f32 %v187, %v201
    %v204 = vmul.f32 %v188, %v202
    %v205 = vlaneseq
    %v206 = vshrl.u32 %v205, 7
    %v207 = vsub.s32 0, %v206
    %v208 = vrot.slane %v177, %v207
    %v209 = vmul.f32 %v203, %v208
    %v210 = vmul.f32 %v204, %v208
    %v211 = vlaneseq
    %v212 = vshrl.u32 %v211, 7
    %v213 = vsub.s32 0, %v212
    %v214 = vrot.slane %v178, %v213
    %v215 = vadd.f32 %v209, %v214
    %v216 = vadd.f32 %v210, %v214
    %v217 = vld [vmem:[%s1] sm:$0xff]
    %v218 = vld [vmem:[%s1 + $0x8] sm:$0xff]
    %v219 = vld [vmem:[%s1 + $0x10] sm:$0xff]
    %v220 = vld [vmem:[%s1 + $0x18] sm:$0xff]
    %v221 = vld [vmem:[%s2 + $0x4] sm:$0x1]
    %v222 = vlaneseq
    %v223 = vshrl.u32 %v222, 7
    %v224 = vsub.s32 0, %v223
    %v225 = vrot.slane %v221, %v224
    %v227 = vsel %vm133, %v215, 0
    %v230 = vsel %vm133, %v216, 0
    %232 = vmatprep.subr.mxu0 0.0
    %233 = vmatpush1.msra.mxu0 %v217
    %234 = vmatprep.subr.mxu0 0.0
    %235 = vmatpush1.msra.mxu0 %v218
    %236 = vmatprep.subr.mxu0 0.0
    %237 = vmatpush1.msra.mxu0 %v219
    %238 = vmatprep.subr.mxu0 0.0
    %239 = vmatpush1.msra.mxu0 %v220
    %240 = vmatprep.subr.mxu0 0.0
    %241 = vmatpush1.msra.mxu0 0.0
    %242 = vmatprep.subr.mxu0 0.0
    %243 = vmatpush1.msra.mxu0 0.0
    %244 = vmatprep.subr.mxu0 0.0
    %245 = vmatpush1.msra.mxu0 0.0
    %246 = vmatprep.subr.mxu0 0.0
    %247 = vmatpush1.msra.mxu0 0.0
    %248 = vmatprep.subr.mxu0 0.0
    %249 = vmatpush1.msra.mxu0 0.0
    %250 = vmatprep.subr.mxu0 0.0
    %251 = vmatpush1.msra.mxu0 0.0
    %252 = vmatprep.subr.mxu0 0.0
    %253 = vmatpush1.msra.mxu0 0.0
    %254 = vmatprep.subr.mxu0 0.0
    %255 = vmatpush1.msra.mxu0 0.0
    %256 = vmatprep.subr.mxu0 0.0
    %257 = vmatpush1.msra.mxu0 0.0
    %258 = vmatprep.subr.mxu0 0.0
    %259 = vmatpush1.msra.mxu0 0.0
    %260 = vmatprep.subr.mxu0 0.0
    %261 = vmatpush1.msra.mxu0 0.0
    %262 = vmatprep.subr.mxu0 0.0
    %263 = vmatpush1.msra.mxu0 0.0
    %264 = vmatprep.subr.mxu0 0.0
    %265 = vmatpush1.msra.mxu0 0.0
    %266 = vmatprep.subr.mxu0 0.0
    %267 = vmatpush1.msra.mxu0 0.0
    %268 = vmatprep.subr.mxu0 0.0
    %269 = vmatpush1.msra.mxu0 0.0
    %270 = vmatprep.subr.mxu0 0.0
    %271 = vmatpush1.msra.mxu0 0.0
    %272 = vmatprep.subr.mxu0 0.0
    %273 = vmatpush1.msra.mxu0 0.0
    %274 = vmatprep.subr.mxu0 0.0
    %275 = vmatpush1.msra.mxu0 0.0
    %276 = vmatprep.subr.mxu0 0.0
    %277 = vmatpush1.msra.mxu0 0.0
    %278 = vmatprep.subr.mxu0 0.0
    %279 = vmatpush1.msra.mxu0 0.0
    %280 = vmatprep.subr.mxu0 0.0
    %281 = vmatpush1.msra.mxu0 0.0
    %282 = vmatprep.subr.mxu0 0.0
    %283 = vmatpush1.msra.mxu0 0.0
    %284 = vmatprep.subr.mxu0 0.0
    %285 = vmatpush1.msra.mxu0 0.0
    %286 = vmatprep.subr.mxu0 0.0
    %287 = vmatpush1.msra.mxu0 0.0
    %288 = vmatprep.subr.mxu0 0.0
    %289 = vmatpush1.msra.mxu0 0.0
    %290 = vmatprep.subr.mxu0 0.0
    %291 = vmatpush1.msra.mxu0 0.0
    %292 = vmatprep.subr.mxu0 0.0
    %293 = vmatpush1.msra.mxu0 0.0
    %294 = vmatprep.subr.mxu0 0.0
    %295 = vmatpush1.msra.mxu0 0.0
    %296 = vmatprep.mubr.f32.mxu0 0.0
    %297 = vmatmul.mubr.f32.gmra.mrb[0].mxu0 %v227
    %v298 = vpop.f32.mrb[0].mxu0
    %v299 = vadd.f32 %v225, %v298
    %v300 = vpop.f32.mrb[0].mxu0
    %301 = vmatprep.mubr.f32.mxu0 0.0
    %302 = vmatmul.mubr.f32.gmra.mrb[0].mxu0 %v230
    %v303 = vpop.f32.mrb[0].mxu0
    %v304 = vadd.f32 %v225, %v303
    %v305 = vpop.f32.mrb[0].mxu0
    %306 = vdwg.mxu0
    %v307 = vld [vmem:[%s2 + $0x5] sm:$0x1]
    %309 = vrot.lane.b32.xlu0 %v299, 96
    %v310 = vpop.permute.xlu0 %309
    %vm311 = vcmask 130048
    %v312 = vsel %vm311, %v299, 0
    %v314 = vsel %vm311, %v310, 0
    %316 = vmatprep.subr.mxu0 0.0
    %317 = vmatpush1.xpose.msra.mxu0 %v314
    %318 = vmatprep.subr.mxu0 0.0
    %319 = vmatpush1.xpose.msra.mxu0 0.0
    %320 = vmatprep.subr.mxu0 0.0
    %321 = vmatpush1.xpose.msra.mxu0 0.0
    %322 = vmatprep.subr.mxu0 0.0
    %323 = vmatpush1.xpose.msra.mxu0 0.0
    %324 = vmatprep.subr.mxu0 0.0
    %325 = vmatpush1.xpose.msra.mxu0 0.0
    %326 = vmatprep.subr.mxu0 0.0
    %327 = vmatpush1.xpose.msra.mxu0 0.0
    %328 = vmatprep.subr.mxu0 0.0
    %329 = vmatpush1.xpose.msra.mxu0 0.0
    %330 = vmatprep.subr.mxu0 0.0
    %331 = vmatpush1.xpose.msra.mxu0 0.0
    %332 = vmatprep.subr.mxu0 0.0
    %333 = vmatpush1.xpose.msra.mxu0 0.0
    %334 = vmatprep.subr.mxu0 0.0
    %335 = vmatpush1.xpose.msra.mxu0 0.0
    %336 = vmatprep.subr.mxu0 0.0
    %337 = vmatpush1.xpose.msra.mxu0 0.0
    %338 = vmatprep.subr.mxu0 0.0
    %339 = vmatpush1.xpose.msra.mxu0 0.0
    %340 = vmatprep.subr.mxu0 0.0
    %341 = vmatpush1.xpose.msra.mxu0 0.0
    %342 = vmatprep.subr.mxu0 0.0
    %343 = vmatpush1.xpose.msra.mxu0 0.0
    %344 = vmatprep.subr.mxu0 0.0
    %345 = vmatpush1.xpose.msra.mxu0 0.0
    %346 = vmatprep.subr.mxu0 0.0
    %347 = vmatpush1.xpose.msra.mxu0 0.0
    %348 = vmatprep.subr.mxu0 0.0
    %349 = vmatpush1.xpose.msra.mxu0 0.0
    %350 = vmatprep.subr.mxu0 0.0
    %351 = vmatpush1.xpose.msra.mxu0 0.0
    %352 = vmatprep.subr.mxu0 0.0
    %353 = vmatpush1.xpose.msra.mxu0 0.0
    %354 = vmatprep.subr.mxu0 0.0
    %355 = vmatpush1.xpose.msra.mxu0 0.0
    %356 = vmatprep.subr.mxu0 0.0
    %357 = vmatpush1.xpose.msra.mxu0 0.0
    %358 = vmatprep.subr.mxu0 0.0
    %359 = vmatpush1.xpose.msra.mxu0 0.0
    %360 = vmatprep.subr.mxu0 0.0
    %361 = vmatpush1.xpose.msra.mxu0 0.0
    %362 = vmatprep.subr.mxu0 0.0
    %363 = vmatpush1.xpose.msra.mxu0 0.0
    %364 = vmatprep.subr.mxu0 0.0
    %365 = vmatpush1.xpose.msra.mxu0 0.0
    %366 = vmatprep.subr.mxu0 0.0
    %367 = vmatpush1.xpose.msra.mxu0 0.0
    %368 = vmatprep.subr.mxu0 0.0
    %369 = vmatpush1.xpose.msra.mxu0 0.0
    %370 = vmatprep.subr.mxu0 0.0
    %371 = vmatpush1.xpose.msra.mxu0 0.0
    %372 = vmatprep.subr.mxu0 0.0
    %373 = vmatpush1.xpose.msra.mxu0 0.0
    %374 = vmatprep.subr.mxu0 0.0
    %375 = vmatpush1.xpose.msra.mxu0 0.0
    %376 = vmatprep.subr.mxu0 0.0
    %377 = vmatpush1.xpose.msra.mxu0 0.0
    %378 = vmatprep.subr.mxu0 0.0
    %379 = vmatpush1.xpose.msra.mxu0 0.0
    %380 = vmatprep.mubr.f32.mxu0 0.0
    %381 = vmatmul.mubr.f32.gmra.mrb[0].mxu0 %v312
    %v382 = vpop.f32.mrb[0].mxu0
    %v383 = vadd.f32 0.0, %v382
    %v384 = vpop.f32.mrb[0].mxu0
    %385 = vdwg.mxu0
    %387 = vrot.lane.b32.xlu0 %v304, 96
    %v388 = vpop.permute.xlu0 %387
    %v389 = vsel %vm311, %v304, 0
    %v391 = vsel %vm311, %v388, 0
    %393 = vmatprep.subr.mxu0 0.0
    %394 = vmatpush1.xpose.msra.mxu0 %v391
    %395 = vmatprep.subr.mxu0 0.0
    %396 = vmatpush1.xpose.msra.mxu0 0.0
    %397 = vmatprep.subr.mxu0 0.0
    %398 = vmatpush1.xpose.msra.mxu0 0.0
    %399 = vmatprep.subr.mxu0 0.0
    %400 = vmatpush1.xpose.msra.mxu0 0.0
    %401 = vmatprep.subr.mxu0 0.0
    %402 = vmatpush1.xpose.msra.mxu0 0.0
    %403 = vmatprep.subr.mxu0 0.0
    %404 = vmatpush1.xpose.msra.mxu0 0.0
    %405 = vmatprep.subr.mxu0 0.0
    %406 = vmatpush1.xpose.msra.mxu0 0.0
    %407 = vmatprep.subr.mxu0 0.0
    %408 = vmatpush1.xpose.msra.mxu0 0.0
    %409 = vmatprep.subr.mxu0 0.0
    %410 = vmatpush1.xpose.msra.mxu0 0.0
    %411 = vmatprep.subr.mxu0 0.0
    %412 = vmatpush1.xpose.msra.mxu0 0.0
    %413 = vmatprep.subr.mxu0 0.0
    %414 = vmatpush1.xpose.msra.mxu0 0.0
    %415 = vmatprep.subr.mxu0 0.0
    %416 = vmatpush1.xpose.msra.mxu0 0.0
    %417 = vmatprep.subr.mxu0 0.0
    %418 = vmatpush1.xpose.msra.mxu0 0.0
    %419 = vmatprep.subr.mxu0 0.0
    %420 = vmatpush1.xpose.msra.mxu0 0.0
    %421 = vmatprep.subr.mxu0 0.0
    %422 = vmatpush1.xpose.msra.mxu0 0.0
    %423 = vmatprep.subr.mxu0 0.0
    %424 = vmatpush1.xpose.msra.mxu0 0.0
    %425 = vmatprep.subr.mxu0 0.0
    %426 = vmatpush1.xpose.msra.mxu0 0.0
    %427 = vmatprep.subr.mxu0 0.0
    %428 = vmatpush1.xpose.msra.mxu0 0.0
    %429 = vmatprep.subr.mxu0 0.0
    %430 = vmatpush1.xpose.msra.mxu0 0.0
    %431 = vmatprep.subr.mxu0 0.0
    %432 = vmatpush1.xpose.msra.mxu0 0.0
    %433 = vmatprep.subr.mxu0 0.0
    %434 = vmatpush1.xpose.msra.mxu0 0.0
    %435 = vmatprep.subr.mxu0 0.0
    %436 = vmatpush1.xpose.msra.mxu0 0.0
    %437 = vmatprep.subr.mxu0 0.0
    %438 = vmatpush1.xpose.msra.mxu0 0.0
    %439 = vmatprep.subr.mxu0 0.0
    %440 = vmatpush1.xpose.msra.mxu0 0.0
    %441 = vmatprep.subr.mxu0 0.0
    %442 = vmatpush1.xpose.msra.mxu0 0.0
    %443 = vmatprep.subr.mxu0 0.0
    %444 = vmatpush1.xpose.msra.mxu0 0.0
    %445 = vmatprep.subr.mxu0 0.0
    %446 = vmatpush1.xpose.msra.mxu0 0.0
    %447 = vmatprep.subr.mxu0 0.0
    %448 = vmatpush1.xpose.msra.mxu0 0.0
    %449 = vmatprep.subr.mxu0 0.0
    %450 = vmatpush1.xpose.msra.mxu0 0.0
    %451 = vmatprep.subr.mxu0 0.0
    %452 = vmatpush1.xpose.msra.mxu0 0.0
    %453 = vmatprep.subr.mxu0 0.0
    %454 = vmatpush1.xpose.msra.mxu0 0.0
    %455 = vmatprep.subr.mxu0 0.0
    %456 = vmatpush1.xpose.msra.mxu0 0.0
    %457 = vmatprep.mubr.f32.mxu0 0.0
    %458 = vmatmul.mubr.f32.gmra.mrb[0].mxu0 %v389
    %v459 = vpop.f32.mrb[0].mxu0
    %v460 = vadd.f32 0.0, %v459
    %v461 = vpop.f32.mrb[0].mxu0
    %462 = vdwg.mxu0
    %v463 = vmul.f32 %v383, 0.25
    %v464 = vmul.f32 %v460, 0.25
    %v465 = vadd.f32 %v463, %v176
    %v466 = vadd.f32 %v464, %v176
    %vm467 = vcmask 64512
    %v468 = vsel %vm467, %v465, -inf
    %469 = vmax.xlane.f32.xlu0 %v468
    %v470 = vpop.xlane.xlu0 %469
    %v471 = vsel %vm467, %v466, -inf
    %472 = vmax.xlane.f32.xlu0 %v471
    %v473 = vpop.xlane.xlu0 %472
    %v474 = vsub.f32 %v465, %v470
    %v475 = vsub.f32 %v466, %v473
    %v476 = vmul.f32 %v474, 1.442695
    %v477 = vpow.pop %v476
    %v478 = vmul.f32 %v475, 1.442695
    %v479 = vpow.pop %v478
    %v480 = vsel %vm467, %v477, 0.0
    %481 = vadd.xlane.f32.xlu0 %v480
    %v482 = vpop.xlane.xlu0 %481
    %v483 = vsel %vm467, %v479, 0.0
    %484 = vadd.xlane.f32.xlu0 %v483
    %v485 = vpop.xlane.xlu0 %484
    %v486 = vrcp.pop %v482
    %v487 = vrcp.pop %v485
    %v488 = vmul.f32 %v477, %v486
    %v489 = vmul.f32 %v479, %v487
    %490 = vrot.lane.b32.xlu0 %v299, 64
    %v491 = vpop.permute.xlu0 %490
    %v494 = vsel %vm467, %v488, 0
    %496 = vmatprep.subr.mxu0 0.0
    %497 = vmatpush1.msra.mxu0 %v491
    %498 = vmatprep.subr.mxu0 0.0
    %499 = vmatpush1.msra.mxu0 0.0
    %500 = vmatprep.subr.mxu0 0.0
    %501 = vmatpush1.msra.mxu0 0.0
    %502 = vmatprep.subr.mxu0 0.0
    %503 = vmatpush1.msra.mxu0 0.0
    %504 = vmatprep.subr.mxu0 0.0
    %505 = vmatpush1.msra.mxu0 0.0
    %506 = vmatprep.subr.mxu0 0.0
    %507 = vmatpush1.msra.mxu0 0.0
    %508 = vmatprep.subr.mxu0 0.0
    %509 = vmatpush1.msra.mxu0 0.0
    %510 = vmatprep.subr.mxu0 0.0
    %511 = vmatpush1.msra.mxu0 0.0
    %512 = vmatprep.subr.mxu0 0.0
    %513 = vmatpush1.msra.mxu0 0.0
    %514 = vmatprep.subr.mxu0 0.0
    %515 = vmatpush1.msra.mxu0 0.0
    %516 = vmatprep.subr.mxu0 0.0
    %517 = vmatpush1.msra.mxu0 0.0
    %518 = vmatprep.subr.mxu0 0.0
    %519 = vmatpush1.msra.mxu0 0.0
    %520 = vmatprep.subr.mxu0 0.0
    %521 = vmatpush1.msra.mxu0 0.0
    %522 = vmatprep.subr.mxu0 0.0
    %523 = vmatpush1.msra.mxu0 0.0
    %524 = vmatprep.subr.mxu0 0.0
    %525 = vmatpush1.msra.mxu0 0.0
    %526 = vmatprep.subr.mxu0 0.0
    %527 = vmatpush1.msra.mxu0 0.0
    %528 = vmatprep.subr.mxu0 0.0
    %529 = vmatpush1.msra.mxu0 0.0
    %530 = vmatprep.subr.mxu0 0.0
    %531 = vmatpush1.msra.mxu0 0.0
    %532 = vmatprep.subr.mxu0 0.0
    %533 = vmatpush1.msra.mxu0 0.0
    %534 = vmatprep.subr.mxu0 0.0
    %535 = vmatpush1.msra.mxu0 0.0
    %536 = vmatprep.subr.mxu0 0.0
    %537 = vmatpush1.msra.mxu0 0.0
    %538 = vmatprep.subr.mxu0 0.0
    %539 = vmatpush1.msra.mxu0 0.0
    %540 = vmatprep.subr.mxu0 0.0
    %541 = vmatpush1.msra.mxu0 0.0
    %542 = vmatprep.subr.mxu0 0.0
    %543 = vmatpush1.msra.mxu0 0.0
    %544 = vmatprep.subr.mxu0 0.0
    %545 = vmatpush1.msra.mxu0 0.0
    %546 = vmatprep.subr.mxu0 0.0
    %547 = vmatpush1.msra.mxu0 0.0
    %548 = vmatprep.subr.mxu0 0.0
    %549 = vmatpush1.msra.mxu0 0.0
    %550 = vmatprep.subr.mxu0 0.0
    %551 = vmatpush1.msra.mxu0 0.0
    %552 = vmatprep.subr.mxu0 0.0
    %553 = vmatpush1.msra.mxu0 0.0
    %554 = vmatprep.subr.mxu0 0.0
    %555 = vmatpush1.msra.mxu0 0.0
    %556 = vmatprep.subr.mxu0 0.0
    %557 = vmatpush1.msra.mxu0 0.0
    %558 = vmatprep.subr.mxu0 0.0
    %559 = vmatpush1.msra.mxu0 0.0
    %560 = vmatprep.mubr.f32.mxu0 0.0
    %561 = vmatmul.mubr.f32.gmra.mrb[0].mxu0 %v494
    %v562 = vpop.f32.mrb[0].mxu0
    %v563 = vadd.f32 0.0, %v562
    %v564 = vpop.f32.mrb[0].mxu0
    %565 = vdwg.mxu0
    %566 = vrot.lane.b32.xlu0 %v304, 64
    %v567 = vpop.permute.xlu0 %566
    %v570 = vsel %vm467, %v489, 0
    %572 = vmatprep.subr.mxu0 0.0
    %573 = vmatpush1.msra.mxu0 %v567
    %574 = vmatprep.subr.mxu0 0.0
    %575 = vmatpush1.msra.mxu0 0.0
    %576 = vmatprep.subr.mxu0 0.0
    %577 = vmatpush1.msra.mxu0 0.0
    %578 = vmatprep.subr.mxu0 0.0
    %579 = vmatpush1.msra.mxu0 0.0
    %580 = vmatprep.subr.mxu0 0.0
    %581 = vmatpush1.msra.mxu0 0.0
    %582 = vmatprep.subr.mxu0 0.0
    %583 = vmatpush1.msra.mxu0 0.0
    %584 = vmatprep.subr.mxu0 0.0
    %585 = vmatpush1.msra.mxu0 0.0
    %586 = vmatprep.subr.mxu0 0.0
    %587 = vmatpush1.msra.mxu0 0.0
    %588 = vmatprep.subr.mxu0 0.0
    %589 = vmatpush1.msra.mxu0 0.0
    %590 = vmatprep.subr.mxu0 0.0
    %591 = vmatpush1.msra.mxu0 0.0
    %592 = vmatprep.subr.mxu0 0.0
    %593 = vmatpush1.msra.mxu0 0.0
    %594 = vmatprep.subr.mxu0 0.0
    %595 = vmatpush1.msra.mxu0 0.0
    %596 = vmatprep.subr.mxu0 0.0
    %597 = vmatpush1.msra.mxu0 0.0
    %598 = vmatprep.subr.mxu0 0.0
    %599 = vmatpush1.msra.mxu0 0.0
    %600 = vmatprep.subr.mxu0 0.0
    %601 = vmatpush1.msra.mxu0 0.0
    %602 = vmatprep.subr.mxu0 0.0
    %603 = vmatpush1.msra.mxu0 0.0
    %604 = vmatprep.subr.mxu0 0.0
    %605 = vmatpush1.msra.mxu0 0.0
    %606 = vmatprep.subr.mxu0 0.0
    %607 = vmatpush1.msra.mxu0 0.0
    %608 = vmatprep.subr.mxu0 0.0
    %609 = vmatpush1.msra.mxu0 0.0
    %610 = vmatprep.subr.mxu0 0.0
    %611 = vmatpush1.msra.mxu0 0.0
    %612 = vmatprep.subr.mxu0 0.0
    %613 = vmatpush1.msra.mxu0 0.0
    %614 = vmatprep.subr.mxu0 0.0
    %615 = vmatpush1.msra.mxu0 0.0
    %616 = vmatprep.subr.mxu0 0.0
    %617 = vmatpush1.msra.mxu0 0.0
    %618 = vmatprep.subr.mxu0 0.0
    %619 = vmatpush1.msra.mxu0 0.0
    %620 = vmatprep.subr.mxu0 0.0
    %621 = vmatpush1.msra.mxu0 0.0
    %622 = vmatprep.subr.mxu0 0.0
    %623 = vmatpush1.msra.mxu0 0.0
    %624 = vmatprep.subr.mxu0 0.0
    %625 = vmatpush1.msra.mxu0 0.0
    %626 = vmatprep.subr.mxu0 0.0
    %627 = vmatpush1.msra.mxu0 0.0
    %628 = vmatprep.subr.mxu0 0.0
    %629 = vmatpush1.msra.mxu0 0.0
    %630 = vmatprep.subr.mxu0 0.0
    %631 = vmatpush1.msra.mxu0 0.0
    %632 = vmatprep.subr.mxu0 0.0
    %633 = vmatpush1.msra.mxu0 0.0
    %634 = vmatprep.subr.mxu0 0.0
    %635 = vmatpush1.msra.mxu0 0.0
    %636 = vmatprep.mubr.f32.mxu0 0.0
    %637 = vmatmul.mubr.f32.gmra.mrb[0].mxu0 %v570
    %v638 = vpop.f32.mrb[0].mxu0
    %v639 = vadd.f32 0.0, %v638
    %v640 = vpop.f32.mrb[0].mxu0
    %641 = vdwg.mxu0
    %v642 = vld [vmem:[%s1 + $0x20] sm:$0xff]
    %v643 = vld [vmem:[%s1 + $0x28] sm:$0xff]
    %v645 = vsel %vm311, %v563, 0
    %v648 = vsel %vm311, %v639, 0
    %650 = vmatprep.subr.mxu0 0.0
    %651 = vmatpush1.msra.mxu0 %v642
    %652 = vmatprep.subr.mxu0 0.0
    %653 = vmatpush1.msra.mxu0 %v643
    %654 = vmatprep.subr.mxu0 0.0
    %655 = vmatpush1.msra.mxu0 0.0
    %656 = vmatprep.subr.mxu0 0.0
    %657 = vmatpush1.msra.mxu0 0.0
    %658 = vmatprep.subr.mxu0 0.0
    %659 = vmatpush1.msra.mxu0 0.0
    %660 = vmatprep.subr.mxu0 0.0
    %661 = vmatpush1.msra.mxu0 0.0
    %662 = vmatprep.subr.mxu0 0.0
    %663 = vmatpush1.msra.mxu0 0.0
    %664 = vmatprep.subr.mxu0 0.0
    %665 = vmatpush1.msra.mxu0 0.0
    %666 = vmatprep.subr.mxu0 0.0
    %667 = vmatpush1.msra.mxu0 0.0
    %668 = vmatprep.subr.mxu0 0.0
    %669 = vmatpush1.msra.mxu0 0.0
    %670 = vmatprep.subr.mxu0 0.0
    %671 = vmatpush1.msra.mxu0 0.0
    %672 = vmatprep.subr.mxu0 0.0
    %673 = vmatpush1.msra.mxu0 0.0
    %674 = vmatprep.subr.mxu0 0.0
    %675 = vmatpush1.msra.mxu0 0.0
    %676 = vmatprep.subr.mxu0 0.0
    %677 = vmatpush1.msra.mxu0 0.0
    %678 = vmatprep.subr.mxu0 0.0
    %679 = vmatpush1.msra.mxu0 0.0
    %680 = vmatprep.subr.mxu0 0.0
    %681 = vmatpush1.msra.mxu0 0.0
    %682 = vmatprep.subr.mxu0 0.0
    %683 = vmatpush1.msra.mxu0 0.0
    %684 = vmatprep.subr.mxu0 0.0
    %685 = vmatpush1.msra.mxu0 0.0
    %686 = vmatprep.subr.mxu0 0.0
    %687 = vmatpush1.msra.mxu0 0.0
    %688 = vmatprep.subr.mxu0 0.0
    %689 = vmatpush1.msra.mxu0 0.0
    %690 = vmatprep.subr.mxu0 0.0
    %691 = vmatpush1.msra.mxu0 0.0
    %692 = vmatprep.subr.mxu0 0.0
    %693 = vmatpush1.msra.mxu0 0.0
    %694 = vmatprep.subr.mxu0 0.0
    %695 = vmatpush1.msra.mxu0 0.0
    %696 = vmatprep.subr.mxu0 0.0
    %697 = vmatpush1.msra.mxu0 0.0
    %698 = vmatprep.subr.mxu0 0.0
    %699 = vmatpush1.msra.mxu0 0.0
    %700 = vmatprep.subr.mxu0 0.0
    %701 = vmatpush1.msra.mxu0 0.0
    %702 = vmatprep.subr.mxu0 0.0
    %703 = vmatpush1.msra.mxu0 0.0
    %704 = vmatprep.subr.mxu0 0.0
    %705 = vmatpush1.msra.mxu0 0.0
    %706 = vmatprep.subr.mxu0 0.0
    %707 = vmatpush1.msra.mxu0 0.0
    %708 = vmatprep.subr.mxu0 0.0
    %709 = vmatpush1.msra.mxu0 0.0
    %710 = vmatprep.subr.mxu0 0.0
    %711 = vmatpush1.msra.mxu0 0.0
    %712 = vmatprep.subr.mxu0 0.0
    %713 = vmatpush1.msra.mxu0 0.0
    %714 = vmatprep.mubr.f32.mxu0 0.0
    %715 = vmatmul.mubr.f32.gmra.mrb[0].mxu0 %v645
    %v716 = vpop.f32.mrb[0].mxu0
    %v717 = vadd.f32 0.0, %v716
    %v718 = vpop.f32.mrb[0].mxu0
    %719 = vmatprep.mubr.f32.mxu0 0.0
    %720 = vmatmul.mubr.f32.gmra.mrb[0].mxu0 %v648
    %v721 = vpop.f32.mrb[0].mxu0
    %v722 = vadd.f32 0.0, %v721
    %v723 = vpop.f32.mrb[0].mxu0
    %724 = vdwg.mxu0
    %v725 = vlaneseq
    %v726 = vshrl.u32 %v725, 7
    %v727 = vsub.s32 0, %v726
    %v728 = vrot.slane %v307, %v727
    %v729 = vadd.f32 %v728, %v717
    %v730 = vadd.f32 %v728, %v722
    %731 = vrot.lane.b32.xlu0 %v299, 112
    %v732 = vpop.permute.xlu0 %731
    %733 = vrot.lane.b32.xlu0 %v299, 80
    %v734 = vpop.permute.xlu0 %733
    %v735 = vsel %vm311, %v732, 0
    %v737 = vsel %vm311, %v734, 0
    %739 = vmatprep.subr.mxu0 0.0
    %740 = vmatpush1.xpose.msra.mxu0 %v737
    %741 = vmatprep.subr.mxu0 0.0
    %742 = vmatpush1.xpose.msra.mxu0 0.0
    %743 = vmatprep.subr.mxu0 0.0
    %744 = vmatpush1.xpose.msra.mxu0 0.0
    %745 = vmatprep.subr.mxu0 0.0
    %746 = vmatpush1.xpose.msra.mxu0 0.0
    %747 = vmatprep.subr.mxu0 0.0
    %748 = vmatpush1.xpose.msra.mxu0 0.0
    %749 = vmatprep.subr.mxu0 0.0
    %750 = vmatpush1.xpose.msra.mxu0 0.0
    %751 = vmatprep.subr.mxu0 0.0
    %752 = vmatpush1.xpose.msra.mxu0 0.0
    %753 = vmatprep.subr.mxu0 0.0
    %754 = vmatpush1.xpose.msra.mxu0 0.0
    %755 = vmatprep.subr.mxu0 0.0
    %756 = vmatpush1.xpose.msra.mxu0 0.0
    %757 = vmatprep.subr.mxu0 0.0
    %758 = vmatpush1.xpose.msra.mxu0 0.0
    %759 = vmatprep.subr.mxu0 0.0
    %760 = vmatpush1.xpose.msra.mxu0 0.0
    %761 = vmatprep.subr.mxu0 0.0
    %762 = vmatpush1.xpose.msra.mxu0 0.0
    %763 = vmatprep.subr.mxu0 0.0
    %764 = vmatpush1.xpose.msra.mxu0 0.0
    %765 = vmatprep.subr.mxu0 0.0
    %766 = vmatpush1.xpose.msra.mxu0 0.0
    %767 = vmatprep.subr.mxu0 0.0
    %768 = vmatpush1.xpose.msra.mxu0 0.0
    %769 = vmatprep.subr.mxu0 0.0
    %770 = vmatpush1.xpose.msra.mxu0 0.0
    %771 = vmatprep.subr.mxu0 0.0
    %772 = vmatpush1.xpose.msra.mxu0 0.0
    %773 = vmatprep.subr.mxu0 0.0
    %774 = vmatpush1.xpose.msra.mxu0 0.0
    %775 = vmatprep.subr.mxu0 0.0
    %776 = vmatpush1.xpose.msra.mxu0 0.0
    %777 = vmatprep.subr.mxu0 0.0
    %778 = vmatpush1.xpose.msra.mxu0 0.0
    %779 = vmatprep.subr.mxu0 0.0
    %780 = vmatpush1.xpose.msra.mxu0 0.0
    %781 = vmatprep.subr.mxu0 0.0
    %782 = vmatpush1.xpose.msra.mxu0 0.0
    %783 = vmatprep.subr.mxu0 0.0
    %784 = vmatpush1.xpose.msra.mxu0 0.0
    %785 = vmatprep.subr.mxu0 0.0
    %786 = vmatpush1.xpose.msra.mxu0 0.0
    %787 = vmatprep.subr.mxu0 0.0
    %788 = vmatpush1.xpose.msra.mxu0 0.0
    %789 = vmatprep.subr.mxu0 0.0
    %790 = vmatpush1.xpose.msra.mxu0 0.0
    %791 = vmatprep.subr.mxu0 0.0
    %792 = vmatpush1.xpose.msra.mxu0 0.0
    %793 = vmatprep.subr.mxu0 0.0
    %794 = vmatpush1.xpose.msra.mxu0 0.0
    %795 = vmatprep.subr.mxu0 0.0
    %796 = vmatpush1.xpose.msra.mxu0 0.0
    %797 = vmatprep.subr.mxu0 0.0
    %798 = vmatpush1.xpose.msra.mxu0 0.0
    %799 = vmatprep.subr.mxu0 0.0
    %800 = vmatpush1.xpose.msra.mxu0 0.0
    %801 = vmatprep.subr.mxu0 0.0
    %802 = vmatpush1.xpose.msra.mxu0 0.0
    %803 = vmatprep.mubr.f32.mxu0 0.0
    %804 = vmatmul.mubr.f32.gmra.mrb[0].mxu0 %v735
    %v805 = vpop.f32.mrb[0].mxu0
    %v806 = vadd.f32 0.0, %v805
    %v807 = vpop.f32.mrb[0].mxu0
    %808 = vdwg.mxu0
    %809 = vrot.lane.b32.xlu0 %v304, 112
    %v810 = vpop.permute.xlu0 %809
    %811 = vrot.lane.b32.xlu0 %v304, 80
    %v812 = vpop.permute.xlu0 %811
    %v813 = vsel %vm311, %v810, 0
    %v815 = vsel %vm311, %v812, 0
    %817 = vmatprep.subr.mxu0 0.0
    %818 = vmatpush1.xpose.msra.mxu0 %v815
    %819 = vmatprep.subr.mxu0 0.0
    %820 = vmatpush1.xpose.msra.mxu0 0.0
    %821 = vmatprep.subr.mxu0 0.0
    %822 = vmatpush1.xpose.msra.mxu0 0.0
    %823 = vmatprep.subr.mxu0 0.0
    %824 = vmatpush1.xpose.msra.mxu0 0.0
    %825 = vmatprep.subr.mxu0 0.0
    %826 = vmatpush1.xpose.msra.mxu0 0.0
    %827 = vmatprep.subr.mxu0 0.0
    %828 = vmatpush1.xpose.msra.mxu0 0.0
    %829 = vmatprep.subr.mxu0 0.0
    %830 = vmatpush1.xpose.msra.mxu0 0.0
    %831 = vmatprep.subr.mxu0 0.0
    %832 = vmatpush1.xpose.msra.mxu0 0.0
    %833 = vmatprep.subr.mxu0 0.0
    %834 = vmatpush1.xpose.msra.mxu0 0.0
    %835 = vmatprep.subr.mxu0 0.0
    %836 = vmatpush1.xpose.msra.mxu0 0.0
    %837 = vmatprep.subr.mxu0 0.0
    %838 = vmatpush1.xpose.msra.mxu0 0.0
    %839 = vmatprep.subr.mxu0 0.0
    %840 = vmatpush1.xpose.msra.mxu0 0.0
    %841 = vmatprep.subr.mxu0 0.0
    %842 = vmatpush1.xpose.msra.mxu0 0.0
    %843 = vmatprep.subr.mxu0 0.0
    %844 = vmatpush1.xpose.msra.mxu0 0.0
    %845 = vmatprep.subr.mxu0 0.0
    %846 = vmatpush1.xpose.msra.mxu0 0.0
    %847 = vmatprep.subr.mxu0 0.0
    %848 = vmatpush1.xpose.msra.mxu0 0.0
    %849 = vmatprep.subr.mxu0 0.0
    %850 = vmatpush1.xpose.msra.mxu0 0.0
    %851 = vmatprep.subr.mxu0 0.0
    %852 = vmatpush1.xpose.msra.mxu0 0.0
    %853 = vmatprep.subr.mxu0 0.0
    %854 = vmatpush1.xpose.msra.mxu0 0.0
    %855 = vmatprep.subr.mxu0 0.0
    %856 = vmatpush1.xpose.msra.mxu0 0.0
    %857 = vmatprep.subr.mxu0 0.0
    %858 = vmatpush1.xpose.msra.mxu0 0.0
    %859 = vmatprep.subr.mxu0 0.0
    %860 = vmatpush1.xpose.msra.mxu0 0.0
    %861 = vmatprep.subr.mxu0 0.0
    %862 = vmatpush1.xpose.msra.mxu0 0.0
    %863 = vmatprep.subr.mxu0 0.0
    %864 = vmatpush1.xpose.msra.mxu0 0.0
    %865 = vmatprep.subr.mxu0 0.0
    %866 = vmatpush1.xpose.msra.mxu0 0.0
    %867 = vmatprep.subr.mxu0 0.0
    %868 = vmatpush1.xpose.msra.mxu0 0.0
    %869 = vmatprep.subr.mxu0 0.0
    %870 = vmatpush1.xpose.msra.mxu0 0.0
    %871 = vmatprep.subr.mxu0 0.0
    %872 = vmatpush1.xpose.msra.mxu0 0.0
    %873 = vmatprep.subr.mxu0 0.0
    %874 = vmatpush1.xpose.msra.mxu0 0.0
    %875 = vmatprep.subr.mxu0 0.0
    %876 = vmatpush1.xpose.msra.mxu0 0.0
    %877 = vmatprep.subr.mxu0 0.0
    %878 = vmatpush1.xpose.msra.mxu0 0.0
    %879 = vmatprep.subr.mxu0 0.0
    %880 = vmatpush1.xpose.msra.mxu0 0.0
    %881 = vmatprep.mubr.f32.mxu0 0.0
    %882 = vmatmul.mubr.f32.gmra.mrb[0].mxu0 %v813
    %v883 = vpop.f32.mrb[0].mxu0
    %v884 = vadd.f32 0.0, %v883
    %v885 = vpop.f32.mrb[0].mxu0
    %886 = vdwg.mxu0
    %v887 = vmul.f32 %v806, 0.25
    %v888 = vmul.f32 %v884, 0.25
    %v889 = vadd.f32 %v887, %v176
    %v890 = vadd.f32 %v888, %v176
    %v891 = vsel %vm467, %v889, -inf
    %892 = vmax.xlane.f32.xlu0 %v891
    %v893 = vpop.xlane.xlu0 %892
    %v894 = vsel %vm467, %v890, -inf
    %895 = vmax.xlane.f32.xlu0 %v894
    %v896 = vpop.xlane.xlu0 %895
    %v897 = vsub.f32 %v889, %v893
    %v898 = vsub.f32 %v890, %v896
    %v899 = vmul.f32 %v897, 1.442695
    %v900 = vpow.pop %v899
    %v901 = vmul.f32 %v898, 1.442695
    %v902 = vpow.pop %v901
    %v903 = vsel %vm467, %v900, 0.0
    %904 = vadd.xlane.f32.xlu0 %v903
    %v905 = vpop.xlane.xlu0 %904
    %v906 = vsel %vm467, %v902, 0.0
    %907 = vadd.xlane.f32.xlu0 %v906
    %v908 = vpop.xlane.xlu0 %907
    %v909 = vrcp.pop %v905
    %v910 = vrcp.pop %v908
    %v911 = vmul.f32 %v900, %v909
    %v912 = vmul.f32 %v902, %v910
    %913 = vrot.lane.b32.xlu0 %v299, 48
    %v914 = vpop.permute.xlu0 %913
    %v917 = vsel %vm467, %v911, 0
    %919 = vmatprep.subr.mxu0 0.0
    %920 = vmatpush1.msra.mxu0 %v914
    %921 = vmatprep.subr.mxu0 0.0
    %922 = vmatpush1.msra.mxu0 0.0
    %923 = vmatprep.subr.mxu0 0.0
    %924 = vmatpush1.msra.mxu0 0.0
    %925 = vmatprep.subr.mxu0 0.0
    %926 = vmatpush1.msra.mxu0 0.0
    %927 = vmatprep.subr.mxu0 0.0
    %928 = vmatpush1.msra.mxu0 0.0
    %929 = vmatprep.subr.mxu0 0.0
    %930 = vmatpush1.msra.mxu0 0.0
    %931 = vmatprep.subr.mxu0 0.0
    %932 = vmatpush1.msra.mxu0 0.0
    %933 = vmatprep.subr.mxu0 0.0
    %934 = vmatpush1.msra.mxu0 0.0
    %935 = vmatprep.subr.mxu0 0.0
    %936 = vmatpush1.msra.mxu0 0.0
    %937 = vmatprep.subr.mxu0 0.0
    %938 = vmatpush1.msra.mxu0 0.0
    %939 = vmatprep.subr.mxu0 0.0
    %940 = vmatpush1.msra.mxu0 0.0
    %941 = vmatprep.subr.mxu0 0.0
    %942 = vmatpush1.msra.mxu0 0.0
    %943 = vmatprep.subr.mxu0 0.0
    %944 = vmatpush1.msra.mxu0 0.0
    %945 = vmatprep.subr.mxu0 0.0
    %946 = vmatpush1.msra.mxu0 0.0
    %947 = vmatprep.subr.mxu0 0.0
    %948 = vmatpush1.msra.mxu0 0.0
    %949 = vmatprep.subr.mxu0 0.0
    %950 = vmatpush1.msra.mxu0 0.0
    %951 = vmatprep.subr.mxu0 0.0
    %952 = vmatpush1.msra.mxu0 0.0
    %953 = vmatprep.subr.mxu0 0.0
    %954 = vmatpush1.msra.mxu0 0.0
    %955 = vmatprep.subr.mxu0 0.0
    %956 = vmatpush1.msra.mxu0 0.0
    %957 = vmatprep.subr.mxu0 0.0
    %958 = vmatpush1.msra.mxu0 0.0
    %959 = vmatprep.subr.mxu0 0.0
    %960 = vmatpush1.msra.mxu0 0.0
    %961 = vmatprep.subr.mxu0 0.0
    %962 = vmatpush1.msra.mxu0 0.0
    %963 = vmatprep.subr.mxu0 0.0
    %964 = vmatpush1.msra.mxu0 0.0
    %965 = vmatprep.subr.mxu0 0.0
    %966 = vmatpush1.msra.mxu0 0.0
    %967 = vmatprep.subr.mxu0 0.0
    %968 = vmatpush1.msra.mxu0 0.0
    %969 = vmatprep.subr.mxu0 0.0
    %970 = vmatpush1.msra.mxu0 0.0
    %971 = vmatprep.subr.mxu0 0.0
    %972 = vmatpush1.msra.mxu0 0.0
    %973 = vmatprep.subr.mxu0 0.0
    %974 = vmatpush1.msra.mxu0 0.0
    %975 = vmatprep.subr.mxu0 0.0
    %976 = vmatpush1.msra.mxu0 0.0
    %977 = vmatprep.subr.mxu0 0.0
    %978 = vmatpush1.msra.mxu0 0.0
    %979 = vmatprep.subr.mxu0 0.0
    %980 = vmatpush1.msra.mxu0 0.0
    %981 = vmatprep.subr.mxu0 0.0
    %982 = vmatpush1.msra.mxu0 0.0
    %983 = vmatprep.mubr.f32.mxu0 0.0
    %984 = vmatmul.mubr.f32.gmra.mrb[0].mxu0 %v917
    %v985 = vpop.f32.mrb[0].mxu0
    %v986 = vadd.f32 0.0, %v985
    %v987 = vpop.f32.mrb[0].mxu0
    %988 = vdwg.mxu0
    %989 = vrot.lane.b32.xlu0 %v304, 48
    %v990 = vpop.permute.xlu0 %989
    %v993 = vsel %vm467, %v912, 0
    %995 = vmatprep.subr.mxu0 0.0
    %996 = vmatpush1.msra.mxu0 %v990
    %997 = vmatprep.subr.mxu0 0.0
    %998 = vmatpush1.msra.mxu0 0.0
    %999 = vmatprep.subr.mxu0 0.0
    %1000 = vmatpush1.msra.mxu0 0.0
    %1001 = vmatprep.subr.mxu0 0.0
    %1002 = vmatpush1.msra.mxu0 0.0
    %1003 = vmatprep.subr.mxu0 0.0
    %1004 = vmatpush1.msra.mxu0 0.0
    %1005 = vmatprep.subr.mxu0 0.0
    %1006 = vmatpush1.msra.mxu0 0.0
    %1007 = vmatprep.subr.mxu0 0.0
    %1008 = vmatpush1.msra.mxu0 0.0
    %1009 = vmatprep.subr.mxu0 0.0
    %1010 = vmatpush1.msra.mxu0 0.0
    %1011 = vmatprep.subr.mxu0 0.0
    %1012 = vmatpush1.msra.mxu0 0.0
    %1013 = vmatprep.subr.mxu0 0.0
    %1014 = vmatpush1.msra.mxu0 0.0
    %1015 = vmatprep.subr.mxu0 0.0
    %1016 = vmatpush1.msra.mxu0 0.0
    %1017 = vmatprep.subr.mxu0 0.0
    %1018 = vmatpush1.msra.mxu0 0.0
    %1019 = vmatprep.subr.mxu0 0.0
    %1020 = vmatpush1.msra.mxu0 0.0
    %1021 = vmatprep.subr.mxu0 0.0
    %1022 = vmatpush1.msra.mxu0 0.0
    %1023 = vmatprep.subr.mxu0 0.0
    %1024 = vmatpush1.msra.mxu0 0.0
    %1025 = vmatprep.subr.mxu0 0.0
    %1026 = vmatpush1.msra.mxu0 0.0
    %1027 = vmatprep.subr.mxu0 0.0
    %1028 = vmatpush1.msra.mxu0 0.0
    %1029 = vmatprep.subr.mxu0 0.0
    %1030 = vmatpush1.msra.mxu0 0.0
    %1031 = vmatprep.subr.mxu0 0.0
    %1032 = vmatpush1.msra.mxu0 0.0
    %1033 = vmatprep.subr.mxu0 0.0
    %1034 = vmatpush1.msra.mxu0 0.0
    %1035 = vmatprep.subr.mxu0 0.0
    %1036 = vmatpush1.msra.mxu0 0.0
    %1037 = vmatprep.subr.mxu0 0.0
    %1038 = vmatpush1.msra.mxu0 0.0
    %1039 = vmatprep.subr.mxu0 0.0
    %1040 = vmatpush1.msra.mxu0 0.0
    %1041 = vmatprep.subr.mxu0 0.0
    %1042 = vmatpush1.msra.mxu0 0.0
    %1043 = vmatprep.subr.mxu0 0.0
    %1044 = vmatpush1.msra.mxu0 0.0
    %1045 = vmatprep.subr.mxu0 0.0
    %1046 = vmatpush1.msra.mxu0 0.0
    %1047 = vmatprep.subr.mxu0 0.0
    %1048 = vmatpush1.msra.mxu0 0.0
    %1049 = vmatprep.subr.mxu0 0.0
    %1050 = vmatpush1.msra.mxu0 0.0
    %1051 = vmatprep.subr.mxu0 0.0
    %1052 = vmatpush1.msra.mxu0 0.0
    %1053 = vmatprep.subr.mxu0 0.0
    %1054 = vmatpush1.msra.mxu0 0.0
    %1055 = vmatprep.subr.mxu0 0.0
    %1056 = vmatpush1.msra.mxu0 0.0
    %1057 = vmatprep.subr.mxu0 0.0
    %1058 = vmatpush1.msra.mxu0 0.0
    %1059 = vmatprep.mubr.f32.mxu0 0.0
    %1060 = vmatmul.mubr.f32.gmra.mrb[0].mxu0 %v993
    %v1061 = vpop.f32.mrb[0].mxu0
    %v1062 = vadd.f32 0.0, %v1061
    %v1063 = vpop.f32.mrb[0].mxu0
    %1064 = vdwg.mxu0
    %v1065 = vld [vmem:[%s1 + $0x30] sm:$0xff]
    %v1066 = vld [vmem:[%s1 + $0x38] sm:$0xff]
    %v1068 = vsel %vm311, %v986, 0
    %v1071 = vsel %vm311, %v1062, 0
    %1073 = vmatprep.subr.mxu0 0.0
    %1074 = vmatpush1.msra.mxu0 %v1065
    %1075 = vmatprep.subr.mxu0 0.0
    %1076 = vmatpush1.msra.mxu0 %v1066
    %1077 = vmatprep.subr.mxu0 0.0
    %1078 = vmatpush1.msra.mxu0 0.0
    %1079 = vmatprep.subr.mxu0 0.0
    %1080 = vmatpush1.msra.mxu0 0.0
    %1081 = vmatprep.subr.mxu0 0.0
    %1082 = vmatpush1.msra.mxu0 0.0
    %1083 = vmatprep.subr.mxu0 0.0
    %1084 = vmatpush1.msra.mxu0 0.0
    %1085 = vmatprep.subr.mxu0 0.0
    %1086 = vmatpush1.msra.mxu0 0.0
    %1087 = vmatprep.subr.mxu0 0.0
    %1088 = vmatpush1.msra.mxu0 0.0
    %1089 = vmatprep.subr.mxu0 0.0
    %1090 = vmatpush1.msra.mxu0 0.0
    %1091 = vmatprep.subr.mxu0 0.0
    %1092 = vmatpush1.msra.mxu0 0.0
    %1093 = vmatprep.subr.mxu0 0.0
    %1094 = vmatpush1.msra.mxu0 0.0
    %1095 = vmatprep.subr.mxu0 0.0
    %1096 = vmatpush1.msra.mxu0 0.0
    %1097 = vmatprep.subr.mxu0 0.0
    %1098 = vmatpush1.msra.mxu0 0.0
    %1099 = vmatprep.subr.mxu0 0.0
    %1100 = vmatpush1.msra.mxu0 0.0
    %1101 = vmatprep.subr.mxu0 0.0
    %1102 = vmatpush1.msra.mxu0 0.0
    %1103 = vmatprep.subr.mxu0 0.0
    %1104 = vmatpush1.msra.mxu0 0.0
    %1105 = vmatprep.subr.mxu0 0.0
    %1106 = vmatpush1.msra.mxu0 0.0
    %1107 = vmatprep.subr.mxu0 0.0
    %1108 = vmatpush1.msra.mxu0 0.0
    %1109 = vmatprep.subr.mxu0 0.0
    %1110 = vmatpush1.msra.mxu0 0.0
    %1111 = vmatprep.subr.mxu0 0.0
    %1112 = vmatpush1.msra.mxu0 0.0
    %1113 = vmatprep.subr.mxu0 0.0
    %1114 = vmatpush1.msra.mxu0 0.0
    %1115 = vmatprep.subr.mxu0 0.0
    %1116 = vmatpush1.msra.mxu0 0.0
    %1117 = vmatprep.subr.mxu0 0.0
    %1118 = vmatpush1.msra.mxu0 0.0
    %1119 = vmatprep.subr.mxu0 0.0
    %1120 = vmatpush1.msra.mxu0 0.0
    %1121 = vmatprep.subr.mxu0 0.0
    %1122 = vmatpush1.msra.mxu0 0.0
    %1123 = vmatprep.subr.mxu0 0.0
    %1124 = vmatpush1.msra.mxu0 0.0
    %1125 = vmatprep.subr.mxu0 0.0
    %1126 = vmatpush1.msra.mxu0 0.0
    %1127 = vmatprep.subr.mxu0 0.0
    %1128 = vmatpush1.msra.mxu0 0.0
    %1129 = vmatprep.subr.mxu0 0.0
    %1130 = vmatpush1.msra.mxu0 0.0
    %1131 = vmatprep.subr.mxu0 0.0
    %1132 = vmatpush1.msra.mxu0 0.0
    %1133 = vmatprep.subr.mxu0 0.0
    %1134 = vmatpush1.msra.mxu0 0.0
    %1135 = vmatprep.subr.mxu0 0.0
    %1136 = vmatpush1.msra.mxu0 0.0
    %1137 = vmatprep.mubr.f32.mxu0 0.0
    %1138 = vmatmul.mubr.f32.gmra.mrb[0].mxu0 %v1068
    %v1139 = vpop.f32.mrb[0].mxu0
    %v1140 = vadd.f32 0.0, %v1139
    %v1141 = vpop.f32.mrb[0].mxu0
    %1142 = vmatprep.mubr.f32.mxu0 0.0
    %1143 = vmatmul.mubr.f32.gmra.mrb[0].mxu0 %v1071
    %v1144 = vpop.f32.mrb[0].mxu0
    %v1145 = vadd.f32 0.0, %v1144
    %v1146 = vpop.f32.mrb[0].mxu0
    %1147 = vdwg.mxu0
    %v1148 = vadd.f32 %v729, %v1140
    %v1149 = vadd.f32 %v730, %v1145
    %v1150 = vadd.f32 %v171, %v1148
    %v1151 = vadd.f32 %v172, %v1149
    %v1152 = vld [vmem:[%s2 + $0x2] sm:$0x1]
    %v1153 = vld [vmem:[%s2 + $0x3] sm:$0x1]
    %v1154 = vsel %vm133, %v1150, 0.0
    %1155 = vadd.xlane.f32.xlu0 %v1154
    %v1156 = vpop.xlane.xlu0 %1155
    %v1157 = vsel %vm133, %v1151, 0.0
    %1158 = vadd.xlane.f32.xlu0 %v1157
    %v1159 = vpop.xlane.xlu0 %1158
    %v1160 = vmul.f32 %v1156, %v140
    %v1161 = vmul.f32 %v1159, %v140
    %v1162 = vsub.f32 %v1150, %v1160
    %v1163 = vsub.f32 %v1151, %v1161
    %v1164 = vmul.f32 %v1162, %v1162
    %v1165 = vmul.f32 %v1163, %v1163
    %v1166 = vsel %vm133, %v1164, 0.0
    %1167 = vadd.xlane.f32.xlu0 %v1166
    %v1168 = vpop.xlane.xlu0 %1167
    %v1169 = vsel %vm133, %v1165, 0.0
    %1170 = vadd.xlane.f32.xlu0 %v1169
    %v1171 = vpop.xlane.xlu0 %1170
    %v1172 = vmul.f32 %v1168, %v140
    %v1173 = vmul.f32 %v1171, %v140
    %v1174 = vadd.f32 %v1172, 1e-05
    %v1175 = vadd.f32 %v1173, 1e-05
    %v1176 = vrsqrt.pop %v1174
    %v1177 = vrsqrt.pop %v1175
    %v1178 = vmul.f32 %v1162, %v1176
    %v1179 = vmul.f32 %v1163, %v1177
    %v1180 = vlaneseq
    %v1181 = vshrl.u32 %v1180, 7
    %v1182 = vsub.s32 0, %v1181
    %v1183 = vrot.slane %v1152, %v1182
    %v1184 = vmul.f32 %v1178, %v1183
    %v1185 = vmul.f32 %v1179, %v1183
    %v1186 = vlaneseq
    %v1187 = vshrl.u32 %v1186, 7
    %v1188 = vsub.s32 0, %v1187
    %v1189 = vrot.slane %v1153, %v1188
    %v1190 = vadd.f32 %v1184, %v1189
    %v1191 = vadd.f32 %v1185, %v1189
    %v1192 = vld [vmem:[%s1 + $0x40] sm:$0xff]
    %v1193 = vld [vmem:[%s1 + $0x48] sm:$0xff]
    %v1194 = vld [vmem:[%s1 + $0x50] sm:$0xff]
    %v1195 = vld [vmem:[%s1 + $0x58] sm:$0xff]
    %v1196 = vld [vmem:[%s2 + $0x6] sm:$0x1]
    %v1197 = vlaneseq
    %v1198 = vshrl.u32 %v1197, 7
    %v1199 = vsub.s32 0, %v1198
    %v1200 = vrot.slane %v1196, %v1199
    %v1202 = vsel %vm133, %v1190, 0
    %v1205 = vsel %vm133, %v1191, 0
    %1207 = vmatprep.subr.mxu0 0.0
    %1208 = vmatpush1.msra.mxu0 %v1192
    %1209 = vmatprep.subr.mxu0 0.0
    %1210 = vmatpush1.msra.mxu0 %v1193
    %1211 = vmatprep.subr.mxu0 0.0
    %1212 = vmatpush1.msra.mxu0 %v1194
    %1213 = vmatprep.subr.mxu0 0.0
    %1214 = vmatpush1.msra.mxu0 %v1195
    %1215 = vmatprep.subr.mxu0 0.0
    %1216 = vmatpush1.msra.mxu0 0.0
    %1217 = vmatprep.subr.mxu0 0.0
    %1218 = vmatpush1.msra.mxu0 0.0
    %1219 = vmatprep.subr.mxu0 0.0
    %1220 = vmatpush1.msra.mxu0 0.0
    %1221 = vmatprep.subr.mxu0 0.0
    %1222 = vmatpush1.msra.mxu0 0.0
    %1223 = vmatprep.subr.mxu0 0.0
    %1224 = vmatpush1.msra.mxu0 0.0
    %1225 = vmatprep.subr.mxu0 0.0
    %1226 = vmatpush1.msra.mxu0 0.0
    %1227 = vmatprep.subr.mxu0 0.0
    %1228 = vmatpush1.msra.mxu0 0.0
    %1229 = vmatprep.subr.mxu0 0.0
    %1230 = vmatpush1.msra.mxu0 0.0
    %1231 = vmatprep.subr.mxu0 0.0
    %1232 = vmatpush1.msra.mxu0 0.0
    %1233 = vmatprep.subr.mxu0 0.0
    %1234 = vmatpush1.msra.mxu0 0.0
    %1235 = vmatprep.subr.mxu0 0.0
    %1236 = vmatpush1.msra.mxu0 0.0
    %1237 = vmatprep.subr.mxu0 0.0
    %1238 = vmatpush1.msra.mxu0 0.0
    %1239 = vmatprep.subr.mxu0 0.0
    %1240 = vmatpush1.msra.mxu0 0.0
    %1241 = vmatprep.subr.mxu0 0.0
    %1242 = vmatpush1.msra.mxu0 0.0
    %1243 = vmatprep.subr.mxu0 0.0
    %1244 = vmatpush1.msra.mxu0 0.0
    %1245 = vmatprep.subr.mxu0 0.0
    %1246 = vmatpush1.msra.mxu0 0.0
    %1247 = vmatprep.subr.mxu0 0.0
    %1248 = vmatpush1.msra.mxu0 0.0
    %1249 = vmatprep.subr.mxu0 0.0
    %1250 = vmatpush1.msra.mxu0 0.0
    %1251 = vmatprep.subr.mxu0 0.0
    %1252 = vmatpush1.msra.mxu0 0.0
    %1253 = vmatprep.subr.mxu0 0.0
    %1254 = vmatpush1.msra.mxu0 0.0
    %1255 = vmatprep.subr.mxu0 0.0
    %1256 = vmatpush1.msra.mxu0 0.0
    %1257 = vmatprep.subr.mxu0 0.0
    %1258 = vmatpush1.msra.mxu0 0.0
    %1259 = vmatprep.subr.mxu0 0.0
    %1260 = vmatpush1.msra.mxu0 0.0
    %1261 = vmatprep.subr.mxu0 0.0
    %1262 = vmatpush1.msra.mxu0 0.0
    %1263 = vmatprep.subr.mxu0 0.0
    %1264 = vmatpush1.msra.mxu0 0.0
    %1265 = vmatprep.subr.mxu0 0.0
    %1266 = vmatpush1.msra.mxu0 0.0
    %1267 = vmatprep.subr.mxu0 0.0
    %1268 = vmatpush1.msra.mxu0 0.0
    %1269 = vmatprep.subr.mxu0 0.0
    %1270 = vmatpush1.msra.mxu0 0.0
    %1271 = vmatprep.mubr.f32.mxu0 0.0
    %1272 = vmatmul.mubr.f32.gmra.mrb[0].mxu0 %v1202
    %v1273 = vpop.f32.mrb[0].mxu0
    %v1274 = vadd.f32 %v1200, %v1273
    %v1275 = vpop.f32.mrb[0].mxu0
    %1276 = vmatprep.mubr.f32.mxu0 0.0
    %1277 = vmatmul.mubr.f32.gmra.mrb[0].mxu0 %v1205
    %v1278 = vpop.f32.mrb[0].mxu0
    %v1279 = vadd.f32 %v1200, %v1278
    %v1280 = vpop.f32.mrb[0].mxu0
    %1281 = vdwg.mxu0
    %v1282 = vmul.f32 %v1274, 1.702
    %v1283 = vmul.f32 %v1279, 1.702
    %v1284 = vxor.u32 %v1282, 2147483648
    %v1285 = vxor.u32 %v1283, 2147483648
    %v1286 = vmul.f32 %v1284, 1.442695
    %v1287 = vpow.pop %v1286
    %v1288 = vmul.f32 %v1285, 1.442695
    %v1289 = vpow.pop %v1288
    %v1290 = vadd.f32 %v1287, 1.0
    %v1291 = vadd.f32 %v1289, 1.0
    %v1292 = vrcp.pop %v1290
    %v1293 = vmul.f32 1.0, %v1292
    %v1294 = vrcp.pop %v1291
    %v1295 = vmul.f32 1.0, %v1294
    %v1296 = vmul.f32 %v1274, %v1293
    %v1297 = vmul.f32 %v1279, %v1295
    %v1298 = vld [vmem:[%s1 + $0x60] sm:$0xff]
    %v1299 = vld [vmem:[%s1 + $0x68] sm:$0xff]
    %v1300 = vld [vmem:[%s1 + $0x70] sm:$0xff]
    %v1301 = vld [vmem:[%s1 + $0x78] sm:$0xff]
    %v1302 = vld [vmem:[%s1 + $0x80] sm:$0xff]
    %v1303 = vld [vmem:[%s1 + $0x88] sm:$0xff]
    %v1304 = vld [vmem:[%s1 + $0x90] sm:$0xff]
    %v1305 = vld [vmem:[%s1 + $0x98] sm:$0xff]
    %v1306 = vld [vmem:[%s1 + $0xa0] sm:$0xff]
    %v1307 = vld [vmem:[%s1 + $0xa8] sm:$0xff]
    %v1308 = vld [vmem:[%s1 + $0xb0] sm:$0xff]
    %v1309 = vld [vmem:[%s1 + $0xb8] sm:$0xff]
    %v1310 = vld [vmem:[%s1 + $0xc0] sm:$0xff]
    %v1311 = vld [vmem:[%s1 + $0xc8] sm:$0xff]
    %v1312 = vld [vmem:[%s1 + $0xd0] sm:$0xff]
    %v1313 = vld [vmem:[%s1 + $0xd8] sm:$0xff]
    %v1314 = vld [vmem:[%s2 + $0x7] sm:$0x1]
    %v1315 = vlaneseq
    %v1316 = vshrl.u32 %v1315, 7
    %v1317 = vsub.s32 0, %v1316
    %v1318 = vrot.slane %v1314, %v1317
    %1319 = vmatprep.subr.mxu0 0.0
    %1320 = vmatpush1.msra.mxu0 %v1298
    %1321 = vmatprep.subr.mxu0 0.0
    %1322 = vmatpush1.msra.mxu0 %v1299
    %1323 = vmatprep.subr.mxu0 0.0
    %1324 = vmatpush1.msra.mxu0 %v1300
    %1325 = vmatprep.subr.mxu0 0.0
    %1326 = vmatpush1.msra.mxu0 %v1301
    %1327 = vmatprep.subr.mxu0 0.0
    %1328 = vmatpush1.msra.mxu0 %v1302
    %1329 = vmatprep.subr.mxu0 0.0
    %1330 = vmatpush1.msra.mxu0 %v1303
    %1331 = vmatprep.subr.mxu0 0.0
    %1332 = vmatpush1.msra.mxu0 %v1304
    %1333 = vmatprep.subr.mxu0 0.0
    %1334 = vmatpush1.msra.mxu0 %v1305
    %1335 = vmatprep.subr.mxu0 0.0
    %1336 = vmatpush1.msra.mxu0 %v1306
    %1337 = vmatprep.subr.mxu0 0.0
    %1338 = vmatpush1.msra.mxu0 %v1307
    %1339 = vmatprep.subr.mxu0 0.0
    %1340 = vmatpush1.msra.mxu0 %v1308
    %1341 = vmatprep.subr.mxu0 0.0
    %1342 = vmatpush1.msra.mxu0 %v1309
    %1343 = vmatprep.subr.mxu0 0.0
    %1344 = vmatpush1.msra.mxu0 %v1310
    %1345 = vmatprep.subr.mxu0 0.0
    %1346 = vmatpush1.msra.mxu0 %v1311
    %1347 = vmatprep.subr.mxu0 0.0
    %1348 = vmatpush1.msra.mxu0 %v1312
    %1349 = vmatprep.subr.mxu0 0.0
    %1350 = vmatpush1.msra.mxu0 %v1313
    %1351 = vmatprep.subr.mxu0 0.0
    %1352 = vmatpush1.msra.mxu0 0.0
    %1353 = vmatprep.subr.mxu0 0.0
    %1354 = vmatpush1.msra.mxu0 0.0
    %1355 = vmatprep.subr.mxu0 0.0
    %1356 = vmatpush1.msra.mxu0 0.0
    %1357 = vmatprep.subr.mxu0 0.0
    %1358 = vmatpush1.msra.mxu0 0.0
    %1359 = vmatprep.subr.mxu0 0.0
    %1360 = vmatpush1.msra.mxu0 0.0
    %1361 = vmatprep.subr.mxu0 0.0
    %1362 = vmatpush1.msra.mxu0 0.0
    %1363 = vmatprep.subr.mxu0 0.0
    %1364 = vmatpush1.msra.mxu0 0.0
    %1365 = vmatprep.subr.mxu0 0.0
    %1366 = vmatpush1.msra.mxu0 0.0
    %1367 = vmatprep.subr.mxu0 0.0
    %1368 = vmatpush1.msra.mxu0 0.0
    %1369 = vmatprep.subr.mxu0 0.0
    %1370 = vmatpush1.msra.mxu0 0.0
    %1371 = vmatprep.subr.mxu0 0.0
    %1372 = vmatpush1.msra.mxu0 0.0
    %1373 = vmatprep.subr.mxu0 0.0
    %1374 = vmatpush1.msra.mxu0 0.0
    %1375 = vmatprep.subr.mxu0 0.0
    %1376 = vmatpush1.msra.mxu0 0.0
    %1377 = vmatprep.subr.mxu0 0.0
    %1378 = vmatpush1.msra.mxu0 0.0
    %1379 = vmatprep.subr.mxu0 0.0
    %1380 = vmatpush1.msra.mxu0 0.0
    %1381 = vmatprep.subr.mxu0 0.0
    %1382 = vmatpush1.msra.mxu0 0.0
    %1383 = vmatprep.mubr.f32.mxu0 0.0
    %1384 = vmatmul.mubr.f32.gmra.mrb[0].mxu0 %v1296
    %v1385 = vpop.f32.mrb[0].mxu0
    %v1386 = vadd.f32 %v1318, %v1385
    %v1387 = vpop.f32.mrb[0].mxu0
    %1388 = vmatprep.mubr.f32.mxu0 0.0
    %1389 = vmatmul.mubr.f32.gmra.mrb[0].mxu0 %v1297
    %v1390 = vpop.f32.mrb[0].mxu0
    %v1391 = vadd.f32 %v1318, %v1390
    %v1392 = vpop.f32.mrb[0].mxu0
    %1393 = vdwg.mxu0
    %v1394 = vadd.f32 %v1150, %v1386
    %v1395 = vadd.f32 %v1151, %v1391
    %s1396 = scalar_lea.vmem %s2, 8
    %v1397 = vld [vmem:[%s1396] sm:$0x1]
    %v1398 = vld [vmem:[%s1396 + $0x1] sm:$0x1]
    %v1399 = vsel %vm133, %v1394, 0.0
    %1400 = vadd.xlane.f32.xlu0 %v1399
    %v1401 = vpop.xlane.xlu0 %1400
    %v1402 = vsel %vm133, %v1395, 0.0
    %1403 = vadd.xlane.f32.xlu0 %v1402
    %v1404 = vpop.xlane.xlu0 %1403
    %v1405 = vmul.f32 %v1401, %v140
    %v1406 = vmul.f32 %v1404, %v140
    %v1407 = vsub.f32 %v1394, %v1405
    %v1408 = vsub.f32 %v1395, %v1406
    %v1409 = vmul.f32 %v1407, %v1407
    %v1410 = vmul.f32 %v1408, %v1408
    %v1411 = vsel %vm133, %v1409, 0.0
    %1412 = vadd.xlane.f32.xlu0 %v1411
    %v1413 = vpop.xlane.xlu0 %1412
    %v1414 = vsel %vm133, %v1410, 0.0
    %1415 = vadd.xlane.f32.xlu0 %v1414
    %v1416 = vpop.xlane.xlu0 %1415
    %v1417 = vmul.f32 %v1413, %v140
    %v1418 = vmul.f32 %v1416, %v140
    %v1419 = vadd.f32 %v1417, 1e-05
    %v1420 = vadd.f32 %v1418, 1e-05
    %v1421 = vrsqrt.pop %v1419
    %v1422 = vrsqrt.pop %v1420
    %v1423 = vmul.f32 %v1407, %v1421
    %v1424 = vmul.f32 %v1408, %v1422
    %v1425 = vlaneseq
    %v1426 = vshrl.u32 %v1425, 7
    %v1427 = vsub.s32 0, %v1426
    %v1428 = vrot.slane %v1397, %v1427
    %v1429 = vmul.f32 %v1423, %v1428
    %v1430 = vmul.f32 %v1424, %v1428
    %v1431 = vlaneseq
    %v1432 = vshrl.u32 %v1431, 7
    %v1433 = vsub.s32 0, %v1432
    %v1434 = vrot.slane %v1398, %v1433
    %v1435 = vadd.f32 %v1429, %v1434
    %v1436 = vadd.f32 %v1430, %v1434
    %s1437 = scalar_lea.vmem %s1, 224
    %v1438 = vld [vmem:[%s1437] sm:$0xff]
    %v1439 = vld [vmem:[%s1437 + $0x8] sm:$0xff]
    %v1440 = vld [vmem:[%s1437 + $0x10] sm:$0xff]
    %v1441 = vld [vmem:[%s1437 + $0x18] sm:$0xff]
    %v1442 = vld [vmem:[%s1396 + $0x4] sm:$0x1]
    %v1443 = vlaneseq
    %v1444 = vshrl.u32 %v1443, 7
    %v1445 = vsub.s32 0, %v1444
    %v1446 = vrot.slane %v1442, %v1445
    %v1448 = vsel %vm133, %v1435, 0
    %v1451 = vsel %vm133, %v1436, 0
    %1453 = vmatprep.subr.mxu0 0.0
    %1454 = vmatpush1.msra.mxu0 %v1438
    %1455 = vmatprep.subr.mxu0 0.0
    %1456 = vmatpush1.msra.mxu0 %v1439
    %1457 = vmatprep.subr.mxu0 0.0
    %1458 = vmatpush1.msra.mxu0 %v1440
    %1459 = vmatprep.subr.mxu0 0.0
    %1460 = vmatpush1.msra.mxu0 %v1441
    %1461 = vmatprep.subr.mxu0 0.0
    %1462 = vmatpush1.msra.mxu0 0.0
    %1463 = vmatprep.subr.mxu0 0.0
    %1464 = vmatpush1.msra.mxu0 0.0
    %1465 = vmatprep.subr.mxu0 0.0
    %1466 = vmatpush1.msra.mxu0 0.0
    %1467 = vmatprep.subr.mxu0 0.0
    %1468 = vmatpush1.msra.mxu0 0.0
    %1469 = vmatprep.subr.mxu0 0.0
    %1470 = vmatpush1.msra.mxu0 0.0
    %1471 = vmatprep.subr.mxu0 0.0
    %1472 = vmatpush1.msra.mxu0 0.0
    %1473 = vmatprep.subr.mxu0 0.0
    %1474 = vmatpush1.msra.mxu0 0.0
    %1475 = vmatprep.subr.mxu0 0.0
    %1476 = vmatpush1.msra.mxu0 0.0
    %1477 = vmatprep.subr.mxu0 0.0
    %1478 = vmatpush1.msra.mxu0 0.0
    %1479 = vmatprep.subr.mxu0 0.0
    %1480 = vmatpush1.msra.mxu0 0.0
    %1481 = vmatprep.subr.mxu0 0.0
    %1482 = vmatpush1.msra.mxu0 0.0
    %1483 = vmatprep.subr.mxu0 0.0
    %1484 = vmatpush1.msra.mxu0 0.0
    %1485 = vmatprep.subr.mxu0 0.0
    %1486 = vmatpush1.msra.mxu0 0.0
    %1487 = vmatprep.subr.mxu0 0.0
    %1488 = vmatpush1.msra.mxu0 0.0
    %1489 = vmatprep.subr.mxu0 0.0
    %1490 = vmatpush1.msra.mxu0 0.0
    %1491 = vmatprep.subr.mxu0 0.0
    %1492 = vmatpush1.msra.mxu0 0.0
    %1493 = vmatprep.subr.mxu0 0.0
    %1494 = vmatpush1.msra.mxu0 0.0
    %1495 = vmatprep.subr.mxu0 0.0
    %1496 = vmatpush1.msra.mxu0 0.0
    %1497 = vmatprep.subr.mxu0 0.0
    %1498 = vmatpush1.msra.mxu0 0.0
    %1499 = vmatprep.subr.mxu0 0.0
    %1500 = vmatpush1.msra.mxu0 0.0
    %1501 = vmatprep.subr.mxu0 0.0
    %1502 = vmatpush1.msra.mxu0 0.0
    %1503 = vmatprep.subr.mxu0 0.0
    %1504 = vmatpush1.msra.mxu0 0.0
    %1505 = vmatprep.subr.mxu0 0.0
    %1506 = vmatpush1.msra.mxu0 0.0
    %1507 = vmatprep.subr.mxu0 0.0
    %1508 = vmatpush1.msra.mxu0 0.0
    %1509 = vmatprep.subr.mxu0 0.0
    %1510 = vmatpush1.msra.mxu0 0.0
    %1511 = vmatprep.subr.mxu0 0.0
    %1512 = vmatpush1.msra.mxu0 0.0
    %1513 = vmatprep.subr.mxu0 0.0
    %1514 = vmatpush1.msra.mxu0 0.0
    %1515 = vmatprep.subr.mxu0 0.0
    %1516 = vmatpush1.msra.mxu0 0.0
    %1517 = vmatprep.mubr.f32.mxu0 0.0
    %1518 = vmatmul.mubr.f32.gmra.mrb[0].mxu0 %v1448
    %v1519 = vpop.f32.mrb[0].mxu0
    %v1520 = vadd.f32 %v1446, %v1519
    %v1521 = vpop.f32.mrb[0].mxu0
    %1522 = vmatprep.mubr.f32.mxu0 0.0
    %1523 = vmatmul.mubr.f32.gmra.mrb[0].mxu0 %v1451
    %v1524 = vpop.f32.mrb[0].mxu0
    %v1525 = vadd.f32 %v1446, %v1524
    %v1526 = vpop.f32.mrb[0].mxu0
    %1527 = vdwg.mxu0
    %v1528 = vld [vmem:[%s1396 + $0x5] sm:$0x1]
    %1530 = vrot.lane.b32.xlu0 %v1520, 96
    %v1531 = vpop.permute.xlu0 %1530
    %v1532 = vsel %vm311, %v1520, 0
    %v1534 = vsel %vm311, %v1531, 0
    %1536 = vmatprep.subr.mxu0 0.0
    %1537 = vmatpush1.xpose.msra.mxu0 %v1534
    %1538 = vmatprep.subr.mxu0 0.0
    %1539 = vmatpush1.xpose.msra.mxu0 0.0
    %1540 = vmatprep.subr.mxu0 0.0
    %1541 = vmatpush1.xpose.msra.mxu0 0.0
    %1542 = vmatprep.subr.mxu0 0.0
    %1543 = vmatpush1.xpose.msra.mxu0 0.0
    %1544 = vmatprep.subr.mxu0 0.0
    %1545 = vmatpush1.xpose.msra.mxu0 0.0
    %1546 = vmatprep.subr.mxu0 0.0
    %1547 = vmatpush1.xpose.msra.mxu0 0.0
    %1548 = vmatprep.subr.mxu0 0.0
    %1549 = vmatpush1.xpose.msra.mxu0 0.0
    %1550 = vmatprep.subr.mxu0 0.0
    %1551 = vmatpush1.xpose.msra.mxu0 0.0
    %1552 = vmatprep.subr.mxu0 0.0
    %1553 = vmatpush1.xpose.msra.mxu0 0.0
    %1554 = vmatprep.subr.mxu0 0.0
    %1555 = vmatpush1.xpose.msra.mxu0 0.0
    %1556 = vmatprep.subr.mxu0 0.0
    %1557 = vmatpush1.xpose.msra.mxu0 0.0
    %1558 = vmatprep.subr.mxu0 0.0
    %1559 = vmatpush1.xpose.msra.mxu0 0.0
    %1560 = vmatprep.subr.mxu0 0.0
    %1561 = vmatpush1.xpose.msra.mxu0 0.0
    %1562 = vmatprep.subr.mxu0 0.0
    %1563 = vmatpush1.xpose.msra.mxu0 0.0
    %1564 = vmatprep.subr.mxu0 0.0
    %1565 = vmatpush1.xpose.msra.mxu0 0.0
    %1566 = vmatprep.subr.mxu0 0.0
    %1567 = vmatpush1.xpose.msra.mxu0 0.0
    %1568 = vmatprep.subr.mxu0 0.0
    %1569 = vmatpush1.xpose.msra.mxu0 0.0
    %1570 = vmatprep.subr.mxu0 0.0
    %1571 = vmatpush1.xpose.msra.mxu0 0.0
    %1572 = vmatprep.subr.mxu0 0.0
    %1573 = vmatpush1.xpose.msra.mxu0 0.0
    %1574 = vmatprep.subr.mxu0 0.0
    %1575 = vmatpush1.xpose.msra.mxu0 0.0
    %1576 = vmatprep.subr.mxu0 0.0
    %1577 = vmatpush1.xpose.msra.mxu0 0.0
    %1578 = vmatprep.subr.mxu0 0.0
    %1579 = vmatpush1.xpose.msra.mxu0 0.0
    %1580 = vmatprep.subr.mxu0 0.0
    %1581 = vmatpush1.xpose.msra.mxu0 0.0
    %1582 = vmatprep.subr.mxu0 0.0
    %1583 = vmatpush1.xpose.msra.mxu0 0.0
    %1584 = vmatprep.subr.mxu0 0.0
    %1585 = vmatpush1.xpose.msra.mxu0 0.0
    %1586 = vmatprep.subr.mxu0 0.0
    %1587 = vmatpush1.xpose.msra.mxu0 0.0
    %1588 = vmatprep.subr.mxu0 0.0
    %1589 = vmatpush1.xpose.msra.mxu0 0.0
    %1590 = vmatprep.subr.mxu0 0.0
    %1591 = vmatpush1.xpose.msra.mxu0 0.0
    %1592 = vmatprep.subr.mxu0 0.0
    %1593 = vmatpush1.xpose.msra.mxu0 0.0
    %1594 = vmatprep.subr.mxu0 0.0
    %1595 = vmatpush1.xpose.msra.mxu0 0.0
    %1596 = vmatprep.subr.mxu0 0.0
    %1597 = vmatpush1.xpose.msra.mxu0 0.0
    %1598 = vmatprep.subr.mxu0 0.0
    %1599 = vmatpush1.xpose.msra.mxu0 0.0
    %1600 = vmatprep.mubr.f32.mxu0 0.0
    %1601 = vmatmul.mubr.f32.gmra.mrb[0].mxu0 %v1532
    %v1602 = vpop.f32.mrb[0].mxu0
    %v1603 = vadd.f32 0.0, %v1602
    %v1604 = vpop.f32.mrb[0].mxu0
    %1605 = vdwg.mxu0
    %1607 = vrot.lane.b32.xlu0 %v1525, 96
    %v1608 = vpop.permute.xlu0 %1607
    %v1609 = vsel %vm311, %v1525, 0
    %v1611 = vsel %vm311, %v1608, 0
    %1613 = vmatprep.subr.mxu0 0.0
    %1614 = vmatpush1.xpose.msra.mxu0 %v1611
    %1615 = vmatprep.subr.mxu0 0.0
    %1616 = vmatpush1.xpose.msra.mxu0 0.0
    %1617 = vmatprep.subr.mxu0 0.0
    %1618 = vmatpush1.xpose.msra.mxu0 0.0
    %1619 = vmatprep.subr.mxu0 0.0
    %1620 = vmatpush1.xpose.msra.mxu0 0.0
    %1621 = vmatprep.subr.mxu0 0.0
    %1622 = vmatpush1.xpose.msra.mxu0 0.0
    %1623 = vmatprep.subr.mxu0 0.0
    %1624 = vmatpush1.xpose.msra.mxu0 0.0
    %1625 = vmatprep.subr.mxu0 0.0
    %1626 = vmatpush1.xpose.msra.mxu0 0.0
    %1627 = vmatprep.subr.mxu0 0.0
    %1628 = vmatpush1.xpose.msra.mxu0 0.0
    %1629 = vmatprep.subr.mxu0 0.0
    %1630 = vmatpush1.xpose.msra.mxu0 0.0
    %1631 = vmatprep.subr.mxu0 0.0
    %1632 = vmatpush1.xpose.msra.mxu0 0.0
    %1633 = vmatprep.subr.mxu0 0.0
    %1634 = vmatpush1.xpose.msra.mxu0 0.0
    %1635 = vmatprep.subr.mxu0 0.0
    %1636 = vmatpush1.xpose.msra.mxu0 0.0
    %1637 = vmatprep.subr.mxu0 0.0
    %1638 = vmatpush1.xpose.msra.mxu0 0.0
    %1639 = vmatprep.subr.mxu0 0.0
    %1640 = vmatpush1.xpose.msra.mxu0 0.0
    %1641 = vmatprep.subr.mxu0 0.0
    %1642 = vmatpush1.xpose.msra.mxu0 0.0
    %1643 = vmatprep.subr.mxu0 0.0
    %1644 = vmatpush1.xpose.msra.mxu0 0.0
    %1645 = vmatprep.subr.mxu0 0.0
    %1646 = vmatpush1.xpose.msra.mxu0 0.0
    %1647 = vmatprep.subr.mxu0 0.0
    %1648 = vmatpush1.xpose.msra.mxu0 0.0
    %1649 = vmatprep.subr.mxu0 0.0
    %1650 = vmatpush1.xpose.msra.mxu0 0.0
    %1651 = vmatprep.subr.mxu0 0.0
    %1652 = vmatpush1.xpose.msra.mxu0 0.0
    %1653 = vmatprep.subr.mxu0 0.0
    %1654 = vmatpush1.xpose.msra.mxu0 0.0
    %1655 = vmatprep.subr.mxu0 0.0
    %1656 = vmatpush1.xpose.msra.mxu0 0.0
    %1657 = vmatprep.subr.mxu0 0.0
    %1658 = vmatpush1.xpose.msra.mxu0 0.0
    %1659 = vmatprep.subr.mxu0 0.0
    %1660 = vmatpush1.xpose.msra.mxu0 0.0
    %1661 = vmatprep.subr.mxu0 0.0
    %1662 = vmatpush1.xpose.msra.mxu0 0.0
    %1663 = vmatprep.subr.mxu0 0.0
    %1664 = vmatpush1.xpose.msra.mxu0 0.0
    %1665 = vmatprep.subr.mxu0 0.0
    %1666 = vmatpush1.xpose.msra.mxu0 0.0
    %1667 = vmatprep.subr.mxu0 0.0
    %1668 = vmatpush1.xpose.msra.mxu0 0.0
    %1669 = vmatprep.subr.mxu0 0.0
    %1670 = vmatpush1.xpose.msra.mxu0 0.0
    %1671 = vmatprep.subr.mxu0 0.0
    %1672 = vmatpush1.xpose.msra.mxu0 0.0
    %1673 = vmatprep.subr.mxu0 0.0
    %1674 = vmatpush1.xpose.msra.mxu0 0.0
    %1675 = vmatprep.subr.mxu0 0.0
    %1676 = vmatpush1.xpose.msra.mxu0 0.0
    %1677 = vmatprep.mubr.f32.mxu0 0.0
    %1678 = vmatmul.mubr.f32.gmra.mrb[0].mxu0 %v1609
    %v1679 = vpop.f32.mrb[0].mxu0
    %v1680 = vadd.f32 0.0, %v1679
    %v1681 = vpop.f32.mrb[0].mxu0
    %1682 = vdwg.mxu0
    %v1683 = vmul.f32 %v1603, 0.25
    %v1684 = vmul.f32 %v1680, 0.25
    %v1685 = vadd.f32 %v1683, %v176
    %v1686 = vadd.f32 %v1684, %v176
    %v1687 = vsel %vm467, %v1685, -inf
    %1688 = vmax.xlane.f32.xlu0 %v1687
    %v1689 = vpop.xlane.xlu0 %1688
    %v1690 = vsel %vm467, %v1686, -inf
    %1691 = vmax.xlane.f32.xlu0 %v1690
    %v1692 = vpop.xlane.xlu0 %1691
    %v1693 = vsub.f32 %v1685, %v1689
    %v1694 = vsub.f32 %v1686, %v1692
    %v1695 = vmul.f32 %v1693, 1.442695
    %v1696 = vpow.pop %v1695
    %v1697 = vmul.f32 %v1694, 1.442695
    %v1698 = vpow.pop %v1697
    %v1699 = vsel %vm467, %v1696, 0.0
    %1700 = vadd.xlane.f32.xlu0 %v1699
    %v1701 = vpop.xlane.xlu0 %1700
    %v1702 = vsel %vm467, %v1698, 0.0
    %1703 = vadd.xlane.f32.xlu0 %v1702
    %v1704 = vpop.xlane.xlu0 %1703
    %v1705 = vrcp.pop %v1701
    %v1706 = vrcp.pop %v1704
    %v1707 = vmul.f32 %v1696, %v1705
    %v1708 = vmul.f32 %v1698, %v1706
    %1709 = vrot.lane.b32.xlu0 %v1520, 64
    %v1710 = vpop.permute.xlu0 %1709
    %v1713 = vsel %vm467, %v1707, 0
    %1715 = vmatprep.subr.mxu0 0.0
    %1716 = vmatpush1.msra.mxu0 %v1710
    %1717 = vmatprep.subr.mxu0 0.0
    %1718 = vmatpush1.msra.mxu0 0.0
    %1719 = vmatprep.subr.mxu0 0.0
    %1720 = vmatpush1.msra.mxu0 0.0
    %1721 = vmatprep.subr.mxu0 0.0
    %1722 = vmatpush1.msra.mxu0 0.0
    %1723 = vmatprep.subr.mxu0 0.0
    %1724 = vmatpush1.msra.mxu0 0.0
    %1725 = vmatprep.subr.mxu0 0.0
    %1726 = vmatpush1.msra.mxu0 0.0
    %1727 = vmatprep.subr.mxu0 0.0
    %1728 = vmatpush1.msra.mxu0 0.0
    %1729 = vmatprep.subr.mxu0 0.0
    %1730 = vmatpush1.msra.mxu0 0.0
    %1731 = vmatprep.subr.mxu0 0.0
    %1732 = vmatpush1.msra.mxu0 0.0
    %1733 = vmatprep.subr.mxu0 0.0
    %1734 = vmatpush1.msra.mxu0 0.0
    %1735 = vmatprep.subr.mxu0 0.0
    %1736 = vmatpush1.msra.mxu0 0.0
    %1737 = vmatprep.subr.mxu0 0.0
    %1738 = vmatpush1.msra.mxu0 0.0
    %1739 = vmatprep.subr.mxu0 0.0
    %1740 = vmatpush1.msra.mxu0 0.0
    %1741 = vmatprep.subr.mxu0 0.0
    %1742 = vmatpush1.msra.mxu0 0.0
    %1743 = vmatprep.subr.mxu0 0.0
    %1744 = vmatpush1.msra.mxu0 0.0
    %1745 = vmatprep.subr.mxu0 0.0
    %1746 = vmatpush1.msra.mxu0 0.0
    %1747 = vmatprep.subr.mxu0 0.0
    %1748 = vmatpush1.msra.mxu0 0.0
    %1749 = vmatprep.subr.mxu0 0.0
    %1750 = vmatpush1.msra.mxu0 0.0
    %1751 = vmatprep.subr.mxu0 0.0
    %1752 = vmatpush1.msra.mxu0 0.0
    %1753 = vmatprep.subr.mxu0 0.0
    %1754 = vmatpush1.msra.mxu0 0.0
    %1755 = vmatprep.subr.mxu0 0.0
    %1756 = vmatpush1.msra.mxu0 0.0
    %1757 = vmatprep.subr.mxu0 0.0
    %1758 = vmatpush1.msra.mxu0 0.0
    %1759 = vmatprep.subr.mxu0 0.0
    %1760 = vmatpush1.msra.mxu0 0.0
    %1761 = vmatprep.subr.mxu0 0.0
    %1762 = vmatpush1.msra.mxu0 0.0
    %1763 = vmatprep.subr.mxu0 0.0
    %1764 = vmatpush1.msra.mxu0 0.0
    %1765 = vmatprep.subr.mxu0 0.0
    %1766 = vmatpush1.msra.mxu0 0.0
    %1767 = vmatprep.subr.mxu0 0.0
    %1768 = vmatpush1.msra.mxu0 0.0
    %1769 = vmatprep.subr.mxu0 0.0
    %1770 = vmatpush1.msra.mxu0 0.0
    %1771 = vmatprep.subr.mxu0 0.0
    %1772 = vmatpush1.msra.mxu0 0.0
    %1773 = vmatprep.subr.mxu0 0.0
    %1774 = vmatpush1.msra.mxu0 0.0
    %1775 = vmatprep.subr.mxu0 0.0
    %1776 = vmatpush1.msra.mxu0 0.0
    %1777 = vmatprep.subr.mxu0 0.0
    %1778 = vmatpush1.msra.mxu0 0.0
    %1779 = vmatprep.mubr.f32.mxu0 0.0
    %1780 = vmatmul.mubr.f32.gmra.mrb[0].mxu0 %v1713
    %v1781 = vpop.f32.mrb[0].mxu0
    %v1782 = vadd.f32 0.0, %v1781
    %v1783 = vpop.f32.mrb[0].mxu0
    %1784 = vdwg.mxu0
    %1785 = vrot.lane.b32.xlu0 %v1525, 64
    %v1786 = vpop.permute.xlu0 %1785
    %v1789 = vsel %vm467, %v1708, 0
    %1791 = vmatprep.subr.mxu0 0.0
    %1792 = vmatpush1.msra.mxu0 %v1786
    %1793 = vmatprep.subr.mxu0 0.0
    %1794 = vmatpush1.msra.mxu0 0.0
    %1795 = vmatprep.subr.mxu0 0.0
    %1796 = vmatpush1.msra.mxu0 0.0
    %1797 = vmatprep.subr.mxu0 0.0
    %1798 = vmatpush1.msra.mxu0 0.0
    %1799 = vmatprep.subr.mxu0 0.0
    %1800 = vmatpush1.msra.mxu0 0.0
    %1801 = vmatprep.subr.mxu0 0.0
    %1802 = vmatpush1.msra.mxu0 0.0
    %1803 = vmatprep.subr.mxu0 0.0
    %1804 = vmatpush1.msra.mxu0 0.0
    %1805 = vmatprep.subr.mxu0 0.0
    %1806 = vmatpush1.msra.mxu0 0.0
    %1807 = vmatprep.subr.mxu0 0.0
    %1808 = vmatpush1.msra.mxu0 0.0
    %1809 = vmatprep.subr.mxu0 0.0
    %1810 = vmatpush1.msra.mxu0 0.0
    %1811 = vmatprep.subr.mxu0 0.0
    %1812 = vmatpush1.msra.mxu0 0.0
    %1813 = vmatprep.subr.mxu0 0.0
    %1814 = vmatpush1.msra.mxu0 0.0
    %1815 = vmatprep.subr.mxu0 0.0
    %1816 = vmatpush1.msra.mxu0 0.0
    %1817 = vmatprep.subr.mxu0 0.0
    %1818 = vmatpush1.msra.mxu0 0.0
    %1819 = vmatprep.subr.mxu0 0.0
    %1820 = vmatpush1.msra.mxu0 0.0
    %1821 = vmatprep.subr.mxu0 0.0
    %1822 = vmatpush1.msra.mxu0 0.0
    %1823 = vmatprep.subr.mxu0 0.0
    %1824 = vmatpush1.msra.mxu0 0.0
    %1825 = vmatprep.subr.mxu0 0.0
    %1826 = vmatpush1.msra.mxu0 0.0
    %1827 = vmatprep.subr.mxu0 0.0
    %1828 = vmatpush1.msra.mxu0 0.0
    %1829 = vmatprep.subr.mxu0 0.0
    %1830 = vmatpush1.msra.mxu0 0.0
    %1831 = vmatprep.subr.mxu0 0.0
    %1832 = vmatpush1.msra.mxu0 0.0
    %1833 = vmatprep.subr.mxu0 0.0
    %1834 = vmatpush1.msra.mxu0 0.0
    %1835 = vmatprep.subr.mxu0 0.0
    %1836 = vmatpush1.msra.mxu0 0.0
    %1837 = vmatprep.subr.mxu0 0.0
    %1838 = vmatpush1.msra.mxu0 0.0
    %1839 = vmatprep.subr.mxu0 0.0
    %1840 = vmatpush1.msra.mxu0 0.0
    %1841 = vmatprep.subr.mxu0 0.0
    %1842 = vmatpush1.msra.mxu0 0.0
    %1843 = vmatprep.subr.mxu0 0.0
    %1844 = vmatpush1.msra.mxu0 0.0
    %1845 = vmatprep.subr.mxu0 0.0
    %1846 = vmatpush1.msra.mxu0 0.0
    %1847 = vmatprep.subr.mxu0 0.0
    %1848 = vmatpush1.msra.mxu0 0.0
    %1849 = vmatprep.subr.mxu0 0.0
    %1850 = vmatpush1.msra.mxu0 0.0
    %1851 = vmatprep.subr.mxu0 0.0
    %1852 = vmatpush1.msra.mxu0 0.0
    %1853 = vmatprep.subr.mxu0 0.0
    %1854 = vmatpush1.msra.mxu0 0.0
    %1855 = vmatprep.mubr.f32.mxu0 0.0
    %1856 = vmatmul.mubr.f32.gmra.mrb[0].mxu0 %v1789
    %v1857 = vpop.f32.mrb[0].mxu0
    %v1858 = vadd.f32 0.0, %v1857
    %v1859 = vpop.f32.mrb[0].mxu0
    %1860 = vdwg.mxu0
    %v1861 = vld [vmem:[%s1437 + $0x20] sm:$0xff]
    %v1862 = vld [vmem:[%s1437 + $0x28] sm:$0xff]
    %v1864 = vsel %vm311, %v1782, 0
    %v1867 = vsel %vm311, %v1858, 0
    %1869 = vmatprep.subr.mxu0 0.0
    %1870 = vmatpush1.msra.mxu0 %v1861
    %1871 = vmatprep.subr.mxu0 0.0
    %1872 = vmatpush1.msra.mxu0 %v1862
    %1873 = vmatprep.subr.mxu0 0.0
    %1874 = vmatpush1.msra.mxu0 0.0
    %1875 = vmatprep.subr.mxu0 0.0
    %1876 = vmatpush1.msra.mxu0 0.0
    %1877 = vmatprep.subr.mxu0 0.0
    %1878 = vmatpush1.msra.mxu0 0.0
    %1879 = vmatprep.subr.mxu0 0.0
    %1880 = vmatpush1.msra.mxu0 0.0
    %1881 = vmatprep.subr.mxu0 0.0
    %1882 = vmatpush1.msra.mxu0 0.0
    %1883 = vmatprep.subr.mxu0 0.0
    %1884 = vmatpush1.msra.mxu0 0.0
    %1885 = vmatprep.subr.mxu0 0.0
    %1886 = vmatpush1.msra.mxu0 0.0
    %1887 = vmatprep.subr.mxu0 0.0
    %1888 = vmatpush1.msra.mxu0 0.0
    %1889 = vmatprep.subr.mxu0 0.0
    %1890 = vmatpush1.msra.mxu0 0.0
    %1891 = vmatprep.subr.mxu0 0.0
    %1892 = vmatpush1.msra.mxu0 0.0
    %1893 = vmatprep.subr.mxu0 0.0
    %1894 = vmatpush1.msra.mxu0 0.0
    %1895 = vmatprep.subr.mxu0 0.0
    %1896 = vmatpush1.msra.mxu0 0.0
    %1897 = vmatprep.subr.mxu0 0.0
    %1898 = vmatpush1.msra.mxu0 0.0
    %1899 = vmatprep.subr.mxu0 0.0
    %1900 = vmatpush1.msra.mxu0 0.0
    %1901 = vmatprep.subr.mxu0 0.0
    %1902 = vmatpush1.msra.mxu0 0.0
    %1903 = vmatprep.subr.mxu0 0.0
    %1904 = vmatpush1.msra.mxu0 0.0
    %1905 = vmatprep.subr.mxu0 0.0
    %1906 = vmatpush1.msra.mxu0 0.0
    %1907 = vmatprep.subr.mxu0 0.0
    %1908 = vmatpush1.msra.mxu0 0.0
    %1909 = vmatprep.subr.mxu0 0.0
    %1910 = vmatpush1.msra.mxu0 0.0
    %1911 = vmatprep.subr.mxu0 0.0
    %1912 = vmatpush1.msra.mxu0 0.0
    %1913 = vmatprep.subr.mxu0 0.0
    %1914 = vmatpush1.msra.mxu0 0.0
    %1915 = vmatprep.subr.mxu0 0.0
    %1916 = vmatpush1.msra.mxu0 0.0
    %1917 = vmatprep.subr.mxu0 0.0
    %1918 = vmatpush1.msra.mxu0 0.0
    %1919 = vmatprep.subr.mxu0 0.0
    %1920 = vmatpush1.msra.mxu0 0.0
    %1921 = vmatprep.subr.mxu0 0.0
    %1922 = vmatpush1.msra.mxu0 0.0
    %1923 = vmatprep.subr.mxu0 0.0
    %1924 = vmatpush1.msra.mxu0 0.0
    %1925 = vmatprep.subr.mxu0 0.0
    %1926 = vmatpush1.msra.mxu0 0.0
    %1927 = vmatprep.subr.mxu0 0.0
    %1928 = vmatpush1.msra.mxu0 0.0
    %1929 = vmatprep.subr.mxu0 0.0
    %1930 = vmatpush1.msra.mxu0 0.0
    %1931 = vmatprep.subr.mxu0 0.0
    %1932 = vmatpush1.msra.mxu0 0.0
    %1933 = vmatprep.mubr.f32.mxu0 0.0
    %1934 = vmatmul.mubr.f32.gmra.mrb[0].mxu0 %v1864
    %v1935 = vpop.f32.mrb[0].mxu0
    %v1936 = vadd.f32 0.0, %v1935
    %v1937 = vpop.f32.mrb[0].mxu0
    %1938 = vmatprep.mubr.f32.mxu0 0.0
    %1939 = vmatmul.mubr.f32.gmra.mrb[0].mxu0 %v1867
    %v1940 = vpop.f32.mrb[0].mxu0
    %v1941 = vadd.f32 0.0, %v1940
    %v1942 = vpop.f32.mrb[0].mxu0
    %1943 = vdwg.mxu0
    %v1944 = vlaneseq
    %v1945 = vshrl.u32 %v1944, 7
    %v1946 = vsub.s32 0, %v1945
    %v1947 = vrot.slane %v1528, %v1946
    %v1948 = vadd.f32 %v1947, %v1936
    %v1949 = vadd.f32 %v1947, %v1941
    %1950 = vrot.lane.b32.xlu0 %v1520, 112
    %v1951 = vpop.permute.xlu0 %1950
    %1952 = vrot.lane.b32.xlu0 %v1520, 80
    %v1953 = vpop.permute.xlu0 %1952
    %v1954 = vsel %vm311, %v1951, 0
    %v1956 = vsel %vm311, %v1953, 0
    %1958 = vmatprep.subr.mxu0 0.0
    %1959 = vmatpush1.xpose.msra.mxu0 %v1956
    %1960 = vmatprep.subr.mxu0 0.0
    %1961 = vmatpush1.xpose.msra.mxu0 0.0
    %1962 = vmatprep.subr.mxu0 0.0
    %1963 = vmatpush1.xpose.msra.mxu0 0.0
    %1964 = vmatprep.subr.mxu0 0.0
    %1965 = vmatpush1.xpose.msra.mxu0 0.0
    %1966 = vmatprep.subr.mxu0 0.0
    %1967 = vmatpush1.xpose.msra.mxu0 0.0
    %1968 = vmatprep.subr.mxu0 0.0
    %1969 = vmatpush1.xpose.msra.mxu0 0.0
    %1970 = vmatprep.subr.mxu0 0.0
    %1971 = vmatpush1.xpose.msra.mxu0 0.0
    %1972 = vmatprep.subr.mxu0 0.0
    %1973 = vmatpush1.xpose.msra.mxu0 0.0
    %1974 = vmatprep.subr.mxu0 0.0
    %1975 = vmatpush1.xpose.msra.mxu0 0.0
    %1976 = vmatprep.subr.mxu0 0.0
    %1977 = vmatpush1.xpose.msra.mxu0 0.0
    %1978 = vmatprep.subr.mxu0 0.0
    %1979 = vmatpush1.xpose.msra.mxu0 0.0
    %1980 = vmatprep.subr.mxu0 0.0
    %1981 = vmatpush1.xpose.msra.mxu0 0.0
    %1982 = vmatprep.subr.mxu0 0.0
    %1983 = vmatpush1.xpose.msra.mxu0 0.0
    %1984 = vmatprep.subr.mxu0 0.0
    %1985 = vmatpush1.xpose.msra.mxu0 0.0
    %1986 = vmatprep.subr.mxu0 0.0
    %1987 = vmatpush1.xpose.msra.mxu0 0.0
    %1988 = vmatprep.subr.mxu0 0.0
    %1989 = vmatpush1.xpose.msra.mxu0 0.0
    %1990 = vmatprep.subr.mxu0 0.0
    %1991 = vmatpush1.xpose.msra.mxu0 0.0
    %1992 = vmatprep.subr.mxu0 0.0
    %1993 = vmatpush1.xpose.msra.mxu0 0.0
    %1994 = vmatprep.subr.mxu0 0.0
    %1995 = vmatpush1.xpose.msra.mxu0 0.0
    %1996 = vmatprep.subr.mxu0 0.0
    %1997 = vmatpush1.xpose.msra.mxu0 0.0
    %1998 = vmatprep.subr.mxu0 0.0
    %1999 = vmatpush1.xpose.msra.mxu0 0.0
    %2000 = vmatprep.subr.mxu0 0.0
    %2001 = vmatpush1.xpose.msra.mxu0 0.0
    %2002 = vmatprep.subr.mxu0 0.0
    %2003 = vmatpush1.xpose.msra.mxu0 0.0
    %2004 = vmatprep.subr.mxu0 0.0
    %2005 = vmatpush1.xpose.msra.mxu0 0.0
    %2006 = vmatprep.subr.mxu0 0.0
    %2007 = vmatpush1.xpose.msra.mxu0 0.0
    %2008 = vmatprep.subr.mxu0 0.0
    %2009 = vmatpush1.xpose.msra.mxu0 0.0
    %2010 = vmatprep.subr.mxu0 0.0
    %2011 = vmatpush1.xpose.msra.mxu0 0.0
    %2012 = vmatprep.subr.mxu0 0.0
    %2013 = vmatpush1.xpose.msra.mxu0 0.0
    %2014 = vmatprep.subr.mxu0 0.0
    %2015 = vmatpush1.xpose.msra.mxu0 0.0
    %2016 = vmatprep.subr.mxu0 0.0
    %2017 = vmatpush1.xpose.msra.mxu0 0.0
    %2018 = vmatprep.subr.mxu0 0.0
    %2019 = vmatpush1.xpose.msra.mxu0 0.0
    %2020 = vmatprep.subr.mxu0 0.0
    %2021 = vmatpush1.xpose.msra.mxu0 0.0
    %2022 = vmatprep.mubr.f32.mxu0 0.0
    %2023 = vmatmul.mubr.f32.gmra.mrb[0].mxu0 %v1954
    %v2024 = vpop.f32.mrb[0].mxu0
    %v2025 = vadd.f32 0.0, %v2024
    %v2026 = vpop.f32.mrb[0].mxu0
    %2027 = vdwg.mxu0
    %2028 = vrot.lane.b32.xlu0 %v1525, 112
    %v2029 = vpop.permute.xlu0 %2028
    %2030 = vrot.lane.b32.xlu0 %v1525, 80
    %v2031 = vpop.permute.xlu0 %2030
    %v2032 = vsel %vm311, %v2029, 0
    %v2034 = vsel %vm311, %v2031, 0
    %2036 = vmatprep.subr.mxu0 0.0
    %2037 = vmatpush1.xpose.msra.mxu0 %v2034
    %2038 = vmatprep.subr.mxu0 0.0
    %2039 = vmatpush1.xpose.msra.mxu0 0.0
    %2040 = vmatprep.subr.mxu0 0.0
    %2041 = vmatpush1.xpose.msra.mxu0 0.0
    %2042 = vmatprep.subr.mxu0 0.0
    %2043 = vmatpush1.xpose.msra.mxu0 0.0
    %2044 = vmatprep.subr.mxu0 0.0
    %2045 = vmatpush1.xpose.msra.mxu0 0.0
    %2046 = vmatprep.subr.mxu0 0.0
    %2047 = vmatpush1.xpose.msra.mxu0 0.0
    %2048 = vmatprep.subr.mxu0 0.0
    %2049 = vmatpush1.xpose.msra.mxu0 0.0
    %2050 = vmatprep.subr.mxu0 0.0
    %2051 = vmatpush1.xpose.msra.mxu0 0.0
    %2052 = vmatprep.subr.mxu0 0.0
    %2053 = vmatpush1.xpose.msra.mxu0 0.0
    %2054 = vmatprep.subr.mxu0 0.0
    %2055 = vmatpush1.xpose.msra.mxu0 0.0
    %2056 = vmatprep.subr.mxu0 0.0
    %2057 = vmatpush1.xpose.msra.mxu0 0.0
    %2058 = vmatprep.subr.mxu0 0.0
    %2059 = vmatpush1.xpose.msra.mxu0 0.0
    %2060 = vmatprep.subr.mxu0 0.0
    %2061 = vmatpush1.xpose.msra.mxu0 0.0
    %2062 = vmatprep.subr.mxu0 0.0
    %2063 = vmatpush1.xpose.msra.mxu0 0.0
    %2064 = vmatprep.subr.mxu0 0.0
    %2065 = vmatpush1.xpose.msra.mxu0 0.0
    %2066 = vmatprep.subr.mxu0 0.0
    %2067 = vmatpush1.xpose.msra.mxu0 0.0
    %2068 = vmatprep.subr.mxu0 0.0
    %2069 = vmatpush1.xpose.msra.mxu0 0.0
    %2070 = vmatprep.subr.mxu0 0.0
    %2071 = vmatpush1.xpose.msra.mxu0 0.0
    %2072 = vmatprep.subr.mxu0 0.0
    %2073 = vmatpush1.xpose.msra.mxu0 0.0
    %2074 = vmatprep.subr.mxu0 0.0
    %2075 = vmatpush1.xpose.msra.mxu0 0.0
    %2076 = vmatprep.subr.mxu0 0.0
    %2077 = vmatpush1.xpose.msra.mxu0 0.0
    %2078 = vmatprep.subr.mxu0 0.0
    %2079 = vmatpush1.xpose.msra.mxu0 0.0
    %2080 = vmatprep.subr.mxu0 0.0
    %2081 = vmatpush1.xpose.msra.mxu0 0.0
    %2082 = vmatprep.subr.mxu0 0.0
    %2083 = vmatpush1.xpose.msra.mxu0 0.0
    %2084 = vmatprep.subr.mxu0 0.0
    %2085 = vmatpush1.xpose.msra.mxu0 0.0
    %2086 = vmatprep.subr.mxu0 0.0
    %2087 = vmatpush1.xpose.msra.mxu0 0.0
    %2088 = vmatprep.subr.mxu0 0.0
    %2089 = vmatpush1.xpose.msra.mxu0 0.0
    %2090 = vmatprep.subr.mxu0 0.0
    %2091 = vmatpush1.xpose.msra.mxu0 0.0
    %2092 = vmatprep.subr.mxu0 0.0
    %2093 = vmatpush1.xpose.msra.mxu0 0.0
    %2094 = vmatprep.subr.mxu0 0.0
    %2095 = vmatpush1.xpose.msra.mxu0 0.0
    %2096 = vmatprep.subr.mxu0 0.0
    %2097 = vmatpush1.xpose.msra.mxu0 0.0
    %2098 = vmatprep.subr.mxu0 0.0
    %2099 = vmatpush1.xpose.msra.mxu0 0.0
    %2100 = vmatprep.mubr.f32.mxu0 0.0
    %2101 = vmatmul.mubr.f32.gmra.mrb[0].mxu0 %v2032
    %v2102 = vpop.f32.mrb[0].mxu0
    %v2103 = vadd.f32 0.0, %v2102
    %v2104 = vpop.f32.mrb[0].mxu0
    %2105 = vdwg.mxu0
    %v2106 = vmul.f32 %v2025, 0.25
    %v2107 = vmul.f32 %v2103, 0.25
    %v2108 = vadd.f32 %v2106, %v176
    %v2109 = vadd.f32 %v2107, %v176
    %v2110 = vsel %vm467, %v2108, -inf
    %2111 = vmax.xlane.f32.xlu0 %v2110
    %v2112 = vpop.xlane.xlu0 %2111
    %v2113 = vsel %vm467, %v2109, -inf
    %2114 = vmax.xlane.f32.xlu0 %v2113
    %v2115 = vpop.xlane.xlu0 %2114
    %v2116 = vsub.f32 %v2108, %v2112
    %v2117 = vsub.f32 %v2109, %v2115
    %v2118 = vmul.f32 %v2116, 1.442695
    %v2119 = vpow.pop %v2118
    %v2120 = vmul.f32 %v2117, 1.442695
    %v2121 = vpow.pop %v2120
    %v2122 = vsel %vm467, %v2119, 0.0
    %2123 = vadd.xlane.f32.xlu0 %v2122
    %v2124 = vpop.xlane.xlu0 %2123
    %v2125 = vsel %vm467, %v2121, 0.0
    %2126 = vadd.xlane.f32.xlu0 %v2125
    %v2127 = vpop.xlane.xlu0 %2126
    %v2128 = vrcp.pop %v2124
    %v2129 = vrcp.pop %v2127
    %v2130 = vmul.f32 %v2119, %v2128
    %v2131 = vmul.f32 %v2121, %v2129
    %2132 = vrot.lane.b32.xlu0 %v1520, 48
    %v2133 = vpop.permute.xlu0 %2132
    %v2136 = vsel %vm467, %v2130, 0
    %2138 = vmatprep.subr.mxu0 0.0
    %2139 = vmatpush1.msra.mxu0 %v2133
    %2140 = vmatprep.subr.mxu0 0.0
    %2141 = vmatpush1.msra.mxu0 0.0
    %2142 = vmatprep.subr.mxu0 0.0
    %2143 = vmatpush1.msra.mxu0 0.0
    %2144 = vmatprep.subr.mxu0 0.0
    %2145 = vmatpush1.msra.mxu0 0.0
    %2146 = vmatprep.subr.mxu0 0.0
    %2147 = vmatpush1.msra.mxu0 0.0
    %2148 = vmatprep.subr.mxu0 0.0
    %2149 = vmatpush1.msra.mxu0 0.0
    %2150 = vmatprep.subr.mxu0 0.0
    %2151 = vmatpush1.msra.mxu0 0.0
    %2152 = vmatprep.subr.mxu0 0.0
    %2153 = vmatpush1.msra.mxu0 0.0
    %2154 = vmatprep.subr.mxu0 0.0
    %2155 = vmatpush1.msra.mxu0 0.0
    %2156 = vmatprep.subr.mxu0 0.0
    %2157 = vmatpush1.msra.mxu0 0.0
    %2158 = vmatprep.subr.mxu0 0.0
    %2159 = vmatpush1.msra.mxu0 0.0
    %2160 = vmatprep.subr.mxu0 0.0
    %2161 = vmatpush1.msra.mxu0 0.0
    %2162 = vmatprep.subr.mxu0 0.0
    %2163 = vmatpush1.msra.mxu0 0.0
    %2164 = vmatprep.subr.mxu0 0.0
    %2165 = vmatpush1.msra.mxu0 0.0
    %2166 = vmatprep.subr.mxu0 0.0
    %2167 = vmatpush1.msra.mxu0 0.0
    %2168 = vmatprep.subr.mxu0 0.0
    %2169 = vmatpush1.msra.mxu0 0.0
    %2170 = vmatprep.subr.mxu0 0.0
    %2171 = vmatpush1.msra.mxu0 0.0
    %2172 = vmatprep.subr.mxu0 0.0
    %2173 = vmatpush1.msra.mxu0 0.0
    %2174 = vmatprep.subr.mxu0 0.0
    %2175 = vmatpush1.msra.mxu0 0.0
    %2176 = vmatprep.subr.mxu0 0.0
    %2177 = vmatpush1.msra.mxu0 0.0
    %2178 = vmatprep.subr.mxu0 0.0
    %2179 = vmatpush1.msra.mxu0 0.0
    %2180 = vmatprep.subr.mxu0 0.0
    %2181 = vmatpush1.msra.mxu0 0.0
    %2182 = vmatprep.subr.mxu0 0.0
    %2183 = vmatpush1.msra.mxu0 0.0
    %2184 = vmatprep.subr.mxu0 0.0
    %2185 = vmatpush1.msra.mxu0 0.0
    %2186 = vmatprep.subr.mxu0 0.0
    %2187 = vmatpush1.msra.mxu0 0.0
    %2188 = vmatprep.subr.mxu0 0.0
    %2189 = vmatpush1.msra.mxu0 0.0
    %2190 = vmatprep.subr.mxu0 0.0
    %2191 = vmatpush1.msra.mxu0 0.0
    %2192 = vmatprep.subr.mxu0 0.0
    %2193 = vmatpush1.msra.mxu0 0.0
    %2194 = vmatprep.subr.mxu0 0.0
    %2195 = vmatpush1.msra.mxu0 0.0
    %2196 = vmatprep.subr.mxu0 0.0
    %2197 = vmatpush1.msra.mxu0 0.0
    %2198 = vmatprep.subr.mxu0 0.0
    %2199 = vmatpush1.msra.mxu0 0.0
    %2200 = vmatprep.subr.mxu0 0.0
    %2201 = vmatpush1.msra.mxu0 0.0
    %2202 = vmatprep.mubr.f32.mxu0 0.0
    %2203 = vmatmul.mubr.f32.gmra.mrb[0].mxu0 %v2136
    %v2204 = vpop.f32.mrb[0].mxu0
    %v2205 = vadd.f32 0.0, %v2204
    %v2206 = vpop.f32.mrb[0].mxu0
    %2207 = vdwg.mxu0
    %2208 = vrot.lane.b32.xlu0 %v1525, 48
    %v2209 = vpop.permute.xlu0 %2208
    %v2212 = vsel %vm467, %v2131, 0
    %2214 = vmatprep.subr.mxu0 0.0
    %2215 = vmatpush1.msra.mxu0 %v2209
    %2216 = vmatprep.subr.mxu0 0.0
    %2217 = vmatpush1.msra.mxu0 0.0
    %2218 = vmatprep.subr.mxu0 0.0
    %2219 = vmatpush1.msra.mxu0 0.0
    %2220 = vmatprep.subr.mxu0 0.0
    %2221 = vmatpush1.msra.mxu0 0.0
    %2222 = vmatprep.subr.mxu0 0.0
    %2223 = vmatpush1.msra.mxu0 0.0
    %2224 = vmatprep.subr.mxu0 0.0
    %2225 = vmatpush1.msra.mxu0 0.0
    %2226 = vmatprep.subr.mxu0 0.0
    %2227 = vmatpush1.msra.mxu0 0.0
    %2228 = vmatprep.subr.mxu0 0.0
    %2229 = vmatpush1.msra.mxu0 0.0
    %2230 = vmatprep.subr.mxu0 0.0
    %2231 = vmatpush1.msra.mxu0 0.0
    %2232 = vmatprep.subr.mxu0 0.0
    %2233 = vmatpush1.msra.mxu0 0.0
    %2234 = vmatprep.subr.mxu0 0.0
    %2235 = vmatpush1.msra.mxu0 0.0
    %2236 = vmatprep.subr.mxu0 0.0
    %2237 = vmatpush1.msra.mxu0 0.0
    %2238 = vmatprep.subr.mxu0 0.0
    %2239 = vmatpush1.msra.mxu0 0.0
    %2240 = vmatprep.subr.mxu0 0.0
    %2241 = vmatpush1.msra.mxu0 0.0
    %2242 = vmatprep.subr.mxu0 0.0
    %2243 = vmatpush1.msra.mxu0 0.0
    %2244 = vmatprep.subr.mxu0 0.0
    %2245 = vmatpush1.msra.mxu0 0.0
    %2246 = vmatprep.subr.mxu0 0.0
    %2247 = vmatpush1.msra.mxu0 0.0
    %2248 = vmatprep.subr.mxu0 0.0
    %2249 = vmatpush1.msra.mxu0 0.0
    %2250 = vmatprep.subr.mxu0 0.0
    %2251 = vmatpush1.msra.mxu0 0.0
    %2252 = vmatprep.subr.mxu0 0.0
    %2253 = vmatpush1.msra.mxu0 0.0
    %2254 = vmatprep.subr.mxu0 0.0
    %2255 = vmatpush1.msra.mxu0 0.0
    %2256 = vmatprep.subr.mxu0 0.0
    %2257 = vmatpush1.msra.mxu0 0.0
    %2258 = vmatprep.subr.mxu0 0.0
    %2259 = vmatpush1.msra.mxu0 0.0
    %2260 = vmatprep.subr.mxu0 0.0
    %2261 = vmatpush1.msra.mxu0 0.0
    %2262 = vmatprep.subr.mxu0 0.0
    %2263 = vmatpush1.msra.mxu0 0.0
    %2264 = vmatprep.subr.mxu0 0.0
    %2265 = vmatpush1.msra.mxu0 0.0
    %2266 = vmatprep.subr.mxu0 0.0
    %2267 = vmatpush1.msra.mxu0 0.0
    %2268 = vmatprep.subr.mxu0 0.0
    %2269 = vmatpush1.msra.mxu0 0.0
    %2270 = vmatprep.subr.mxu0 0.0
    %2271 = vmatpush1.msra.mxu0 0.0
    %2272 = vmatprep.subr.mxu0 0.0
    %2273 = vmatpush1.msra.mxu0 0.0
    %2274 = vmatprep.subr.mxu0 0.0
    %2275 = vmatpush1.msra.mxu0 0.0
    %2276 = vmatprep.subr.mxu0 0.0
    %2277 = vmatpush1.msra.mxu0 0.0
    %2278 = vmatprep.mubr.f32.mxu0 0.0
    %2279 = vmatmul.mubr.f32.gmra.mrb[0].mxu0 %v2212
    %v2280 = vpop.f32.mrb[0].mxu0
    %v2281 = vadd.f32 0.0, %v2280
    %v2282 = vpop.f32.mrb[0].mxu0
    %2283 = vdwg.mxu0
    %v2284 = vld [vmem:[%s1437 + $0x30] sm:$0xff]
    %v2285 = vld [vmem:[%s1437 + $0x38] sm:$0xff]
    %v2287 = vsel %vm311, %v2205, 0
    %v2290 = vsel %vm311, %v2281, 0
    %2292 = vmatprep.subr.mxu0 0.0
    %2293 = vmatpush1.msra.mxu0 %v2284
    %2294 = vmatprep.subr.mxu0 0.0
    %2295 = vmatpush1.msra.mxu0 %v2285
    %2296 = vmatprep.subr.mxu0 0.0
    %2297 = vmatpush1.msra.mxu0 0.0
    %2298 = vmatprep.subr.mxu0 0.0
    %2299 = vmatpush1.msra.mxu0 0.0
    %2300 = vmatprep.subr.mxu0 0.0
    %2301 = vmatpush1.msra.mxu0 0.0
    %2302 = vmatprep.subr.mxu0 0.0
    %2303 = vmatpush1.msra.mxu0 0.0
    %2304 = vmatprep.subr.mxu0 0.0
    %2305 = vmatpush1.msra.mxu0 0.0
    %2306 = vmatprep.subr.mxu0 0.0
    %2307 = vmatpush1.msra.mxu0 0.0
    %2308 = vmatprep.subr.mxu0 0.0
    %2309 = vmatpush1.msra.mxu0 0.0
    %2310 = vmatprep.subr.mxu0 0.0
    %2311 = vmatpush1.msra.mxu0 0.0
    %2312 = vmatprep.subr.mxu0 0.0
    %2313 = vmatpush1.msra.mxu0 0.0
    %2314 = vmatprep.subr.mxu0 0.0
    %2315 = vmatpush1.msra.mxu0 0.0
    %2316 = vmatprep.subr.mxu0 0.0
    %2317 = vmatpush1.msra.mxu0 0.0
    %2318 = vmatprep.subr.mxu0 0.0
    %2319 = vmatpush1.msra.mxu0 0.0
    %2320 = vmatprep.subr.mxu0 0.0
    %2321 = vmatpush1.msra.mxu0 0.0
    %2322 = vmatprep.subr.mxu0 0.0
    %2323 = vmatpush1.msra.mxu0 0.0
    %2324 = vmatprep.subr.mxu0 0.0
    %2325 = vmatpush1.msra.mxu0 0.0
    %2326 = vmatprep.subr.mxu0 0.0
    %2327 = vmatpush1.msra.mxu0 0.0
    %2328 = vmatprep.subr.mxu0 0.0
    %2329 = vmatpush1.msra.mxu0 0.0
    %2330 = vmatprep.subr.mxu0 0.0
    %2331 = vmatpush1.msra.mxu0 0.0
    %2332 = vmatprep.subr.mxu0 0.0
    %2333 = vmatpush1.msra.mxu0 0.0
    %2334 = vmatprep.subr.mxu0 0.0
    %2335 = vmatpush1.msra.mxu0 0.0
    %2336 = vmatprep.subr.mxu0 0.0
    %2337 = vmatpush1.msra.mxu0 0.0
    %2338 = vmatprep.subr.mxu0 0.0
    %2339 = vmatpush1.msra.mxu0 0.0
    %2340 = vmatprep.subr.mxu0 0.0
    %2341 = vmatpush1.msra.mxu0 0.0
    %2342 = vmatprep.subr.mxu0 0.0
    %2343 = vmatpush1.msra.mxu0 0.0
    %2344 = vmatprep.subr.mxu0 0.0
    %2345 = vmatpush1.msra.mxu0 0.0
    %2346 = vmatprep.subr.mxu0 0.0
    %2347 = vmatpush1.msra.mxu0 0.0
    %2348 = vmatprep.subr.mxu0 0.0
    %2349 = vmatpush1.msra.mxu0 0.0
    %2350 = vmatprep.subr.mxu0 0.0
    %2351 = vmatpush1.msra.mxu0 0.0
    %2352 = vmatprep.subr.mxu0 0.0
    %2353 = vmatpush1.msra.mxu0 0.0
    %2354 = vmatprep.subr.mxu0 0.0
    %2355 = vmatpush1.msra.mxu0 0.0
    %2356 = vmatprep.mubr.f32.mxu0 0.0
    %2357 = vmatmul.mubr.f32.gmra.mrb[0].mxu0 %v2287
    %v2358 = vpop.f32.mrb[0].mxu0
    %v2359 = vadd.f32 0.0, %v2358
    %v2360 = vpop.f32.mrb[0].mxu0
    %2361 = vmatprep.mubr.f32.mxu0 0.0
    %2362 = vmatmul.mubr.f32.gmra.mrb[0].mxu0 %v2290
    %v2363 = vpop.f32.mrb[0].mxu0
    %v2364 = vadd.f32 0.0, %v2363
    %v2365 = vpop.f32.mrb[0].mxu0
    %2366 = vdwg.mxu0
    %v2367 = vadd.f32 %v1948, %v2359
    %v2368 = vadd.f32 %v1949, %v2364
    %v2369 = vadd.f32 %v1394, %v2367
    %v2370 = vadd.f32 %v1395, %v2368
    %v2371 = vld [vmem:[%s1396 + $0x2] sm:$0x1]
    %v2372 = vld [vmem:[%s1396 + $0x3] sm:$0x1]
    %v2373 = vsel %vm133, %v2369, 0.0
    %2374 = vadd.xlane.f32.xlu0 %v2373
    %v2375 = vpop.xlane.xlu0 %2374
    %v2376 = vsel %vm133, %v2370, 0.0
    %2377 = vadd.xlane.f32.xlu0 %v2376
    %v2378 = vpop.xlane.xlu0 %2377
    %v2379 = vmul.f32 %v2375, %v140
    %v2380 = vmul.f32 %v2378, %v140
    %v2381 = vsub.f32 %v2369, %v2379
    %v2382 = vsub.f32 %v2370, %v2380
    %v2383 = vmul.f32 %v2381, %v2381
    %v2384 = vmul.f32 %v2382, %v2382
    %v2385 = vsel %vm133, %v2383, 0.0
    %2386 = vadd.xlane.f32.xlu0 %v2385
    %v2387 = vpop.xlane.xlu0 %2386
    %v2388 = vsel %vm133, %v2384, 0.0
    %2389 = vadd.xlane.f32.xlu0 %v2388
    %v2390 = vpop.xlane.xlu0 %2389
    %v2391 = vmul.f32 %v2387, %v140
    %v2392 = vmul.f32 %v2390, %v140
    %v2393 = vadd.f32 %v2391, 1e-05
    %v2394 = vadd.f32 %v2392, 1e-05
    %v2395 = vrsqrt.pop %v2393
    %v2396 = vrsqrt.pop %v2394
    %v2397 = vmul.f32 %v2381, %v2395
    %v2398 = vmul.f32 %v2382, %v2396
    %v2399 = vlaneseq
    %v2400 = vshrl.u32 %v2399, 7
    %v2401 = vsub.s32 0, %v2400
    %v2402 = vrot.slane %v2371, %v2401
    %v2403 = vmul.f32 %v2397, %v2402
    %v2404 = vmul.f32 %v2398, %v2402
    %v2405 = vlaneseq
    %v2406 = vshrl.u32 %v2405, 7
    %v2407 = vsub.s32 0, %v2406
    %v2408 = vrot.slane %v2372, %v2407
    %v2409 = vadd.f32 %v2403, %v2408
    %v2410 = vadd.f32 %v2404, %v2408
    %v2411 = vld [vmem:[%s1437 + $0x40] sm:$0xff]
    %v2412 = vld [vmem:[%s1437 + $0x48] sm:$0xff]
    %v2413 = vld [vmem:[%s1437 + $0x50] sm:$0xff]
    %v2414 = vld [vmem:[%s1437 + $0x58] sm:$0xff]
    %v2415 = vld [vmem:[%s1396 + $0x6] sm:$0x1]
    %v2416 = vlaneseq
    %v2417 = vshrl.u32 %v2416, 7
    %v2418 = vsub.s32 0, %v2417
    %v2419 = vrot.slane %v2415, %v2418
    %v2421 = vsel %vm133, %v2409, 0
    %v2424 = vsel %vm133, %v2410, 0
    %2426 = vmatprep.subr.mxu0 0.0
    %2427 = vmatpush1.msra.mxu0 %v2411
    %2428 = vmatprep.subr.mxu0 0.0
    %2429 = vmatpush1.msra.mxu0 %v2412
    %2430 = vmatprep.subr.mxu0 0.0
    %2431 = vmatpush1.msra.mxu0 %v2413
    %2432 = vmatprep.subr.mxu0 0.0
    %2433 = vmatpush1.msra.mxu0 %v2414
    %2434 = vmatprep.subr.mxu0 0.0
    %2435 = vmatpush1.msra.mxu0 0.0
    %2436 = vmatprep.subr.mxu0 0.0
    %2437 = vmatpush1.msra.mxu0 0.0
    %2438 = vmatprep.subr.mxu0 0.0
    %2439 = vmatpush1.msra.mxu0 0.0
    %2440 = vmatprep.subr.mxu0 0.0
    %2441 = vmatpush1.msra.mxu0 0.0
    %2442 = vmatprep.subr.mxu0 0.0
    %2443 = vmatpush1.msra.mxu0 0.0
    %2444 = vmatprep.subr.mxu0 0.0
    %2445 = vmatpush1.msra.mxu0 0.0
    %2446 = vmatprep.subr.mxu0 0.0
    %2447 = vmatpush1.msra.mxu0 0.0
    %2448 = vmatprep.subr.mxu0 0.0
    %2449 = vmatpush1.msra.mxu0 0.0
    %2450 = vmatprep.subr.mxu0 0.0
    %2451 = vmatpush1.msra.mxu0 0.0
    %2452 = vmatprep.subr.mxu0 0.0
    %2453 = vmatpush1.msra.mxu0 0.0
    %2454 = vmatprep.subr.mxu0 0.0
    %2455 = vmatpush1.msra.mxu0 0.0
    %2456 = vmatprep.subr.mxu0 0.0
    %2457 = vmatpush1.msra.mxu0 0.0
    %2458 = vmatprep.subr.mxu0 0.0
    %2459 = vmatpush1.msra.mxu0 0.0
    %2460 = vmatprep.subr.mxu0 0.0
    %2461 = vmatpush1.msra.mxu0 0.0
    %2462 = vmatprep.subr.mxu0 0.0
    %2463 = vmatpush1.msra.mxu0 0.0
    %2464 = vmatprep.subr.mxu0 0.0
    %2465 = vmatpush1.msra.mxu0 0.0
    %2466 = vmatprep.subr.mxu0 0.0
    %2467 = vmatpush1.msra.mxu0 0.0
    %2468 = vmatprep.subr.mxu0 0.0
    %2469 = vmatpush1.msra.mxu0 0.0
    %2470 = vmatprep.subr.mxu0 0.0
    %2471 = vmatpush1.msra.mxu0 0.0
    %2472 = vmatprep.subr.mxu0 0.0
    %2473 = vmatpush1.msra.mxu0 0.0
    %2474 = vmatprep.subr.mxu0 0.0
    %2475 = vmatpush1.msra.mxu0 0.0
    %2476 = vmatprep.subr.mxu0 0.0
    %2477 = vmatpush1.msra.mxu0 0.0
    %2478 = vmatprep.subr.mxu0 0.0
    %2479 = vmatpush1.msra.mxu0 0.0
    %2480 = vmatprep.subr.mxu0 0.0
    %2481 = vmatpush1.msra.mxu0 0.0
    %2482 = vmatprep.subr.mxu0 0.0
    %2483 = vmatpush1.msra.mxu0 0.0
    %2484 = vmatprep.subr.mxu0 0.0
    %2485 = vmatpush1.msra.mxu0 0.0
    %2486 = vmatprep.subr.mxu0 0.0
    %2487 = vmatpush1.msra.mxu0 0.0
    %2488 = vmatprep.subr.mxu0 0.0
    %2489 = vmatpush1.msra.mxu0 0.0
    %2490 = vmatprep.mubr.f32.mxu0 0.0
    %2491 = vmatmul.mubr.f32.gmra.mrb[0].mxu0 %v2421
    %v2492 = vpop.f32.mrb[0].mxu0
    %v2493 = vadd.f32 %v2419, %v2492
    %v2494 = vpop.f32.mrb[0].mxu0
    %2495 = vmatprep.mubr.f32.mxu0 0.0
    %2496 = vmatmul.mubr.f32.gmra.mrb[0].mxu0 %v2424
    %v2497 = vpop.f32.mrb[0].mxu0
    %v2498 = vadd.f32 %v2419, %v2497
    %v2499 = vpop.f32.mrb[0].mxu0
    %2500 = vdwg.mxu0
    %v2501 = vmul.f32 %v2493, 1.702
    %v2502 = vmul.f32 %v2498, 1.702
    %v2503 = vxor.u32 %v2501, 2147483648
    %v2504 = vxor.u32 %v2502, 2147483648
    %v2505 = vmul.f32 %v2503, 1.442695
    %v2506 = vpow.pop %v2505
    %v2507 = vmul.f32 %v2504, 1.442695
    %v2508 = vpow.pop %v2507
    %v2509 = vadd.f32 %v2506, 1.0
    %v2510 = vadd.f32 %v2508, 1.0
    %v2511 = vrcp.pop %v2509
    %v2512 = vmul.f32 1.0, %v2511
    %v2513 = vrcp.pop %v2510
    %v2514 = vmul.f32 1.0, %v2513
    %v2515 = vmul.f32 %v2493, %v2512
    %v2516 = vmul.f32 %v2498, %v2514
    %v2517 = vld [vmem:[%s1437 + $0x60] sm:$0xff]
    %v2518 = vld [vmem:[%s1437 + $0x68] sm:$0xff]
    %v2519 = vld [vmem:[%s1437 + $0x70] sm:$0xff]
    %v2520 = vld [vmem:[%s1437 + $0x78] sm:$0xff]
    %v2521 = vld [vmem:[%s1437 + $0x80] sm:$0xff]
    %v2522 = vld [vmem:[%s1437 + $0x88] sm:$0xff]
    %v2523 = vld [vmem:[%s1437 + $0x90] sm:$0xff]
    %v2524 = vld [vmem:[%s1437 + $0x98] sm:$0xff]
    %v2525 = vld [vmem:[%s1437 + $0xa0] sm:$0xff]
    %v2526 = vld [vmem:[%s1437 + $0xa8] sm:$0xff]
    %v2527 = vld [vmem:[%s1437 + $0xb0] sm:$0xff]
    %v2528 = vld [vmem:[%s1437 + $0xb8] sm:$0xff]
    %v2529 = vld [vmem:[%s1437 + $0xc0] sm:$0xff]
    %v2530 = vld [vmem:[%s1437 + $0xc8] sm:$0xff]
    %v2531 = vld [vmem:[%s1437 + $0xd0] sm:$0xff]
    %v2532 = vld [vmem:[%s1437 + $0xd8] sm:$0xff]
    %v2533 = vld [vmem:[%s1396 + $0x7] sm:$0x1]
    %v2534 = vlaneseq
    %v2535 = vshrl.u32 %v2534, 7
    %v2536 = vsub.s32 0, %v2535
    %v2537 = vrot.slane %v2533, %v2536
    %2538 = vmatprep.subr.mxu0 0.0
    %2539 = vmatpush1.msra.mxu0 %v2517
    %2540 = vmatprep.subr.mxu0 0.0
    %2541 = vmatpush1.msra.mxu0 %v2518
    %2542 = vmatprep.subr.mxu0 0.0
    %2543 = vmatpush1.msra.mxu0 %v2519
    %2544 = vmatprep.subr.mxu0 0.0
    %2545 = vmatpush1.msra.mxu0 %v2520
    %2546 = vmatprep.subr.mxu0 0.0
    %2547 = vmatpush1.msra.mxu0 %v2521
    %2548 = vmatprep.subr.mxu0 0.0
    %2549 = vmatpush1.msra.mxu0 %v2522
    %2550 = vmatprep.subr.mxu0 0.0
    %2551 = vmatpush1.msra.mxu0 %v2523
    %2552 = vmatprep.subr.mxu0 0.0
    %2553 = vmatpush1.msra.mxu0 %v2524
    %2554 = vmatprep.subr.mxu0 0.0
    %2555 = vmatpush1.msra.mxu0 %v2525
    %2556 = vmatprep.subr.mxu0 0.0
    %2557 = vmatpush1.msra.mxu0 %v2526
    %2558 = vmatprep.subr.mxu0 0.0
    %2559 = vmatpush1.msra.mxu0 %v2527
    %2560 = vmatprep.subr.mxu0 0.0
    %2561 = vmatpush1.msra.mxu0 %v2528
    %2562 = vmatprep.subr.mxu0 0.0
    %2563 = vmatpush1.msra.mxu0 %v2529
    %2564 = vmatprep.subr.mxu0 0.0
    %2565 = vmatpush1.msra.mxu0 %v2530
    %2566 = vmatprep.subr.mxu0 0.0
    %2567 = vmatpush1.msra.mxu0 %v2531
    %2568 = vmatprep.subr.mxu0 0.0
    %2569 = vmatpush1.msra.mxu0 %v2532
    %2570 = vmatprep.subr.mxu0 0.0
    %2571 = vmatpush1.msra.mxu0 0.0
    %2572 = vmatprep.subr.mxu0 0.0
    %2573 = vmatpush1.msra.mxu0 0.0
    %2574 = vmatprep.subr.mxu0 0.0
    %2575 = vmatpush1.msra.mxu0 0.0
    %2576 = vmatprep.subr.mxu0 0.0
    %2577 = vmatpush1.msra.mxu0 0.0
    %2578 = vmatprep.subr.mxu0 0.0
    %2579 = vmatpush1.msra.mxu0 0.0
    %2580 = vmatprep.subr.mxu0 0.0
    %2581 = vmatpush1.msra.mxu0 0.0
    %2582 = vmatprep.subr.mxu0 0.0
    %2583 = vmatpush1.msra.mxu0 0.0
    %2584 = vmatprep.subr.mxu0 0.0
    %2585 = vmatpush1.msra.mxu0 0.0
    %2586 = vmatprep.subr.mxu0 0.0
    %2587 = vmatpush1.msra.mxu0 0.0
    %2588 = vmatprep.subr.mxu0 0.0
    %2589 = vmatpush1.msra.mxu0 0.0
    %2590 = vmatprep.subr.mxu0 0.0
    %2591 = vmatpush1.msra.mxu0 0.0
    %2592 = vmatprep.subr.mxu0 0.0
    %2593 = vmatpush1.msra.mxu0 0.0
    %2594 = vmatprep.subr.mxu0 0.0
    %2595 = vmatpush1.msra.mxu0 0.0
    %2596 = vmatprep.subr.mxu0 0.0
    %2597 = vmatpush1.msra.mxu0 0.0
    %2598 = vmatprep.subr.mxu0 0.0
    %2599 = vmatpush1.msra.mxu0 0.0
    %2600 = vmatprep.subr.mxu0 0.0
    %2601 = vmatpush1.msra.mxu0 0.0
    %2602 = vmatprep.mubr.f32.mxu0 0.0
    %2603 = vmatmul.mubr.f32.gmra.mrb[0].mxu0 %v2515
    %v2604 = vpop.f32.mrb[0].mxu0
    %v2605 = vadd.f32 %v2537, %v2604
    %v2606 = vpop.f32.mrb[0].mxu0
    %2607 = vmatprep.mubr.f32.mxu0 0.0
    %2608 = vmatmul.mubr.f32.gmra.mrb[0].mxu0 %v2516
    %v2609 = vpop.f32.mrb[0].mxu0
    %v2610 = vadd.f32 %v2537, %v2609
    %v2611 = vpop.f32.mrb[0].mxu0
    %2612 = vdwg.mxu0
    %v2613 = vadd.f32 %v2369, %v2605
    %v2614 = vadd.f32 %v2370, %v2610
    %v2615 = vld [vmem:[%s3 + $0xfa] sm:$0x1]
    %v2616 = vld [vmem:[%s3 + $0xfb] sm:$0x1]
    %v2619 = vrot.slane %v2614, 7
    %vm2620 = vcmask 1041409
    %v2621 = vsel %vm2620, %v2619, %v2613
    %vm2623 = vcmask 254976
    %v2624 = vsel %vm2623, %v2621, 0.0
    %2625 = vadd.xlane.f32.xlu0 %v2624
    %v2626 = vpop.xlane.xlu0 %2625
    %v2627 = vmul.f32 %v2626, %v140
    %v2629 = vrot.slane %v2627, 1
    %v2632 = vsub.f32 %v2613, %v2627
    %v2633 = vsub.f32 %v2614, %v2629
    %v2634 = vmul.f32 %v2632, %v2632
    %v2635 = vmul.f32 %v2633, %v2633
    %v2638 = vrot.slane %v2635, 7
    %v2639 = vsel %vm2620, %v2638, %v2634
    %v2641 = vsel %vm2623, %v2639, 0.0
    %2642 = vadd.xlane.f32.xlu0 %v2641
    %v2643 = vpop.xlane.xlu0 %2642
    %v2644 = vmul.f32 %v2643, %v140
    %v2645 = vadd.f32 %v2644, 1e-05
    %v2646 = vrsqrt.pop %v2645
    %v2648 = vrot.slane %v2646, 1
    %v2651 = vmul.f32 %v2632, %v2646
    %v2652 = vmul.f32 %v2633, %v2648
    %v2653 = vlaneseq
    %v2654 = vshrl.u32 %v2653, 7
    %v2655 = vsub.s32 0, %v2654
    %v2656 = vrot.slane %v2615, %v2655
    %v2657 = vmul.f32 %v2651, %v2656
    %v2658 = vmul.f32 %v2652, %v2656
    %v2659 = vlaneseq
    %v2660 = vshrl.u32 %v2659, 7
    %v2661 = vsub.s32 0, %v2660
    %v2662 = vrot.slane %v2616, %v2661
    %v2663 = vadd.f32 %v2657, %v2662
    %v2664 = vadd.f32 %v2658, %v2662
    %v2665 = vld [vmem:[%s3 + $0xc8] sm:$0xff]
    %v2666 = vld [vmem:[%s3 + $0xd0] sm:$0xff]
    %v2667 = vld [vmem:[%s3 + $0xd8] sm:$0xff]
    %v2668 = vld [vmem:[%s3 + $0xe0] sm:$0xff]
    %v2671 = vrot.slane %v2664, 7
    %v2672 = vsel %vm2620, %v2671, %v2663
    %v2673 = vsel %vm133, %v2672, 0
    %2675 = vmatprep.subr.mxu0 0.0
    %2676 = vmatpush1.msra.mxu0 %v2665
    %2677 = vmatprep.subr.mxu0 0.0
    %2678 = vmatpush1.msra.mxu0 %v2666
    %2679 = vmatprep.subr.mxu0 0.0
    %2680 = vmatpush1.msra.mxu0 %v2667
    %2681 = vmatprep.subr.mxu0 0.0
    %2682 = vmatpush1.msra.mxu0 %v2668
    %2683 = vmatprep.subr.mxu0 0.0
    %2684 = vmatpush1.msra.mxu0 0.0
    %2685 = vmatprep.subr.mxu0 0.0
    %2686 = vmatpush1.msra.mxu0 0.0
    %2687 = vmatprep.subr.mxu0 0.0
    %2688 = vmatpush1.msra.mxu0 0.0
    %2689 = vmatprep.subr.mxu0 0.0
    %2690 = vmatpush1.msra.mxu0 0.0
    %2691 = vmatprep.subr.mxu0 0.0
    %2692 = vmatpush1.msra.mxu0 0.0
    %2693 = vmatprep.subr.mxu0 0.0
    %2694 = vmatpush1.msra.mxu0 0.0
    %2695 = vmatprep.subr.mxu0 0.0
    %2696 = vmatpush1.msra.mxu0 0.0
    %2697 = vmatprep.subr.mxu0 0.0
    %2698 = vmatpush1.msra.mxu0 0.0
    %2699 = vmatprep.subr.mxu0 0.0
    %2700 = vmatpush1.msra.mxu0 0.0
    %2701 = vmatprep.subr.mxu0 0.0
    %2702 = vmatpush1.msra.mxu0 0.0
    %2703 = vmatprep.subr.mxu0 0.0
    %2704 = vmatpush1.msra.mxu0 0.0
    %2705 = vmatprep.subr.mxu0 0.0
    %2706 = vmatpush1.msra.mxu0 0.0
    %2707 = vmatprep.subr.mxu0 0.0
    %2708 = vmatpush1.msra.mxu0 0.0
    %2709 = vmatprep.subr.mxu0 0.0
    %2710 = vmatpush1.msra.mxu0 0.0
    %2711 = vmatprep.subr.mxu0 0.0
    %2712 = vmatpush1.msra.mxu0 0.0
    %2713 = vmatprep.subr.mxu0 0.0
    %2714 = vmatpush1.msra.mxu0 0.0
    %2715 = vmatprep.subr.mxu0 0.0
    %2716 = vmatpush1.msra.mxu0 0.0
    %2717 = vmatprep.subr.mxu0 0.0
    %2718 = vmatpush1.msra.mxu0 0.0
    %2719 = vmatprep.subr.mxu0 0.0
    %2720 = vmatpush1.msra.mxu0 0.0
    %2721 = vmatprep.subr.mxu0 0.0
    %2722 = vmatpush1.msra.mxu0 0.0
    %2723 = vmatprep.subr.mxu0 0.0
    %2724 = vmatpush1.msra.mxu0 0.0
    %2725 = vmatprep.subr.mxu0 0.0
    %2726 = vmatpush1.msra.mxu0 0.0
    %2727 = vmatprep.subr.mxu0 0.0
    %2728 = vmatpush1.msra.mxu0 0.0
    %2729 = vmatprep.subr.mxu0 0.0
    %2730 = vmatpush1.msra.mxu0 0.0
    %2731 = vmatprep.subr.mxu0 0.0
    %2732 = vmatpush1.msra.mxu0 0.0
    %2733 = vmatprep.subr.mxu0 0.0
    %2734 = vmatpush1.msra.mxu0 0.0
    %2735 = vmatprep.subr.mxu0 0.0
    %2736 = vmatpush1.msra.mxu0 0.0
    %2737 = vmatprep.subr.mxu0 0.0
    %2738 = vmatpush1.msra.mxu0 0.0
    %2739 = vmatprep.mubr.f32.mxu0 0.0
    %2740 = vmatmul.mubr.f32.gmra.mrb[0].mxu0 %v2673
    %v2741 = vpop.f32.mrb[0].mxu0
    %v2742 = vadd.f32 0.0, %v2741
    %v2743 = vpop.f32.mrb[0].mxu0
    %2744 = vdwg.mxu0
    %v2745 = vld [vmem:[%s3 + $0xfc] sm:$0x1]
    %v2746 = vlaneseq
    %v2747 = vshrl.u32 %v2746, 7
    %v2748 = vsub.s32 0, %v2747
    %v2749 = vrot.slane %v2745, %v2748
    %v2750 = vsub.f32 %v2742, %v2749
    %v2751 = vld [vmem:[%s3 + $0xfd] sm:$0x1]
    %v2752 = vadd.f32 %v2751, 1e-06
    %v2753 = vrsqrt.pop %v2752
    %v2754 = vlaneseq
    %v2755 = vshrl.u32 %v2754, 7
    %v2756 = vsub.s32 0, %v2755
    %v2757 = vrot.slane %v2753, %v2756
    %v2758 = vmul.f32 %v2750, %v2757
    %v2759 = vld [vmem:[%s3 + $0xe8] sm:$0xff]
    %v2760 = vld [vmem:[%s3 + $0xf0] sm:$0xff]
    %v2761 = vld [vmem:[%s3 + $0xfe] sm:$0x1]
    %v2762 = vlaneseq
    %v2763 = vshrl.u32 %v2762, 7
    %v2764 = vsub.s32 0, %v2763
    %v2765 = vrot.slane %v2761, %v2764
    %v2767 = vsel %vm311, %v2758, 0
    %2769 = vmatprep.subr.mxu0 0.0
    %2770 = vmatpush1.msra.mxu0 %v2759
    %2771 = vmatprep.subr.mxu0 0.0
    %2772 = vmatpush1.msra.mxu0 %v2760
    %2773 = vmatprep.subr.mxu0 0.0
    %2774 = vmatpush1.msra.mxu0 0.0
    %2775 = vmatprep.subr.mxu0 0.0
    %2776 = vmatpush1.msra.mxu0 0.0
    %2777 = vmatprep.subr.mxu0 0.0
    %2778 = vmatpush1.msra.mxu0 0.0
    %2779 = vmatprep.subr.mxu0 0.0
    %2780 = vmatpush1.msra.mxu0 0.0
    %2781 = vmatprep.subr.mxu0 0.0
    %2782 = vmatpush1.msra.mxu0 0.0
    %2783 = vmatprep.subr.mxu0 0.0
    %2784 = vmatpush1.msra.mxu0 0.0
    %2785 = vmatprep.subr.mxu0 0.0
    %2786 = vmatpush1.msra.mxu0 0.0
    %2787 = vmatprep.subr.mxu0 0.0
    %2788 = vmatpush1.msra.mxu0 0.0
    %2789 = vmatprep.subr.mxu0 0.0
    %2790 = vmatpush1.msra.mxu0 0.0
    %2791 = vmatprep.subr.mxu0 0.0
    %2792 = vmatpush1.msra.mxu0 0.0
    %2793 = vmatprep.subr.mxu0 0.0
    %2794 = vmatpush1.msra.mxu0 0.0
    %2795 = vmatprep.subr.mxu0 0.0
    %2796 = vmatpush1.msra.mxu0 0.0
    %2797 = vmatprep.subr.mxu0 0.0
    %2798 = vmatpush1.msra.mxu0 0.0
    %2799 = vmatprep.subr.mxu0 0.0
    %2800 = vmatpush1.msra.mxu0 0.0
    %2801 = vmatprep.subr.mxu0 0.0
    %2802 = vmatpush1.msra.mxu0 0.0
    %2803 = vmatprep.subr.mxu0 0.0
    %2804 = vmatpush1.msra.mxu0 0.0
    %2805 = vmatprep.subr.mxu0 0.0
    %2806 = vmatpush1.msra.mxu0 0.0
    %2807 = vmatprep.subr.mxu0 0.0
    %2808 = vmatpush1.msra.mxu0 0.0
    %2809 = vmatprep.subr.mxu0 0.0
    %2810 = vmatpush1.msra.mxu0 0.0
    %2811 = vmatprep.subr.mxu0 0.0
    %2812 = vmatpush1.msra.mxu0 0.0
    %2813 = vmatprep.subr.mxu0 0.0
    %2814 = vmatpush1.msra.mxu0 0.0
    %2815 = vmatprep.subr.mxu0 0.0
    %2816 = vmatpush1.msra.mxu0 0.0
    %2817 = vmatprep.subr.mxu0 0.0
    %2818 = vmatpush1.msra.mxu0 0.0
    %2819 = vmatprep.subr.mxu0 0.0
    %2820 = vmatpush1.msra.mxu0 0.0
    %2821 = vmatprep.subr.mxu0 0.0
    %2822 = vmatpush1.msra.mxu0 0.0
    %2823 = vmatprep.subr.mxu0 0.0
    %2824 = vmatpush1.msra.mxu0 0.0
    %2825 = vmatprep.subr.mxu0 0.0
    %2826 = vmatpush1.msra.mxu0 0.0
    %2827 = vmatprep.subr.mxu0 0.0
    %2828 = vmatpush1.msra.mxu0 0.0
    %2829 = vmatprep.subr.mxu0 0.0
    %2830 = vmatpush1.msra.mxu0 0.0
    %2831 = vmatprep.subr.mxu0 0.0
    %2832 = vmatpush1.msra.mxu0 0.0
    %2833 = vmatprep.mubr.f32.mxu0 0.0
    %2834 = vmatmul.mubr.f32.gmra.mrb[0].mxu0 %v2767
    %v2835 = vpop.f32.mrb[0].mxu0
    %v2836 = vadd.f32 %v2765, %v2835
    %v2837 = vpop.f32.mrb[0].mxu0
    %2838 = vdwg.mxu0
    %2839 = vst [vmem:[#allocation2] sm:$0x3] %v2836
    // Predicated region
    $region18: #{vitlens_lp_forward.1} parent=1 // pred_check
      _
    $region19: #{vitlens_lp_forward.1} parent=1 // pred_check_branch
      %2841 = sbr.rel (0) target = $region21
    $region20: #{vitlens_lp_forward.1} parent=1 // pred_region
      %s2843 = ssub.s32 32, 32
      %2844 = vsyncadd [#allocation3], %s2843
      %s2846 = sshll.u32 [#allocation2], 4
      %s2847 = int_to_ptr.vmem [resolvable:$true] %s2846
      %2849 = dma.vmem_to_hbm [thread:$0]  %s2847, 32, %s4, [#allocation3]
    $region21: #{vitlens_lp_forward.1} parent=1 // pred_fallthru
      _
    // Predicated region
    $region22: #{vitlens_lp_forward.1} parent=1 // pred_check
      _
    $region23: #{vitlens_lp_forward.1} parent=1 // pred_check_branch
      %2851 = sbr.rel (0) target = $region25
    $region24: #{vitlens_lp_forward.1} parent=1 // pred_region
      %2852 = dma.done [#allocation3], 32
    $region25: #{vitlens_lp_forward.1} parent=1 // pred_fallthru
      _
    %2853 = vsyncpa [#allocation3], 1

</llo_original>
